<compile_context>
chip_gen: v6e
topology: v6e:2x2x1
jax: 0.10.0
libtpu: 0.0.40
codegen_flags: <defaults>
</compile_context>

<pallas_src>
import math
import jax
import jax.numpy as jnp
from jax.experimental import pallas as pl
from jax.experimental.pallas import tpu as pltpu

INPUT_SIZE = 7
D_MODEL = 128
NHEAD = 8
NUM_LAYERS = 3
OUTPUT_SIZE = 2
DIM_FF = D_MODEL * 4
D_HALF = D_MODEL // 2
HEAD_PAD = 128          # padded hidden width of the output head (true cols [:64])
OUT_PAD = 128           # padded output width (true outputs in cols [:2])
LN_EPS = 1e-5


def _layernorm(x, g, b):
    mu = jnp.mean(x, axis=-1, keepdims=True)
    xc = x - mu
    var = jnp.mean(xc * xc, axis=-1, keepdims=True)
    return xc * jax.lax.rsqrt(var + LN_EPS) * g + b


def transformer_kernel(x_ref, wp_ref, bp_ref,
                       wa_ref, ba_ref,
                       g1_ref, be1_ref, w1_ref, b1_ref,
                       w2_ref, b2_ref, g2_ref, be2_ref,
                       wh1_ref, bh1_ref, wh2_ref, bh2_ref,
                       o_ref):
    f32 = jnp.float32

    # input projection (+ folded positional encoding in bp)
    x = x_ref[...].astype(wp_ref.dtype)                                 # (TB, 7)
    h = jnp.dot(x, wp_ref[...], preferred_element_type=f32) + bp_ref[...]

    for l in range(NUM_LAYERS):                                         # unrolled, static
        # ---- self-attention block ----
        # seq len == 1: softmax over the single key is exactly 1, attn == V, and the
        # V projection + output projection are folded into one (D,D) weight (wa/ba).
        sa = jnp.dot(h.astype(wa_ref.dtype), wa_ref[l],
                     preferred_element_type=f32) + ba_ref[l]
        h = _layernorm(h + sa, g1_ref[l], be1_ref[l])                   # post-norm

        # ---- feed-forward block ----
        ff1 = jnp.maximum(
            jnp.dot(h.astype(w1_ref.dtype), w1_ref[l],
                    preferred_element_type=f32) + b1_ref[l], 0.0)
        ff = jnp.dot(ff1.astype(w2_ref.dtype), w2_ref[l],
                     preferred_element_type=f32) + b2_ref[l]
        h = _layernorm(h + ff, g2_ref[l], be2_ref[l])

    # ---- output head: Linear -> ReLU -> (Dropout=id) -> Linear (padded 128x128) ----
    y = jnp.maximum(
        jnp.dot(h.astype(wh1_ref.dtype), wh1_ref[...],
                preferred_element_type=f32) + bh1_ref[...], 0.0)
    out = jnp.dot(y.astype(wh2_ref.dtype), wh2_ref[...],
                  preferred_element_type=f32) + bh2_ref[...]
    o_ref[...] = out.astype(o_ref.dtype)


def _round_up(a, m):
    return ((a + m - 1) // m) * m


def transformer_predictor(x, params, *, tb=1024, weights_dtype=jnp.bfloat16):
    """Run the Pallas forward pass.

    x: (B, INPUT_SIZE) float32.  The PyTorch model always runs with seq len 1
    (x.unsqueeze(1)); this kernel hard-codes that, so only 2-D inputs are valid.
    weights_dtype: matmul-operand dtype.  bf16 (default) is MXU-native on
    v5e/v6e/v7x with f32 accumulation; pass jnp.float32 for near-bit-exact output.
    """
    assert x.ndim == 2 and x.shape[1] == INPUT_SIZE, (
        "kernel assumes the model's fixed seq-len-1 layout: x must be (batch, input_size)")
    B = x.shape[0]

    # ---- batch tiling -------------------------------------------------------
    tb = max(8, min(tb, _round_up(B, 8)))
    # Megacore (v7x): guarantee >=2 grid blocks when there is enough work, so the
    # 'parallel' axis shards across both TensorCores (padding waste kept to <8 rows).
    if B >= 512:
        tb = min(tb, _round_up(pl.cdiv(B, 2), 8))
    n_blocks = pl.cdiv(B, tb)
    Bp = n_blocks * tb
    if Bp != B:                       # pad remainder batch rows (zeros), sliced off below
        x = jnp.pad(x, ((0, Bp - B), (0, 0)))

    # ---- weight preparation (all folding done in f32, then cast) -----------
    f32 = jnp.float32
    cast = lambda w: w.astype(weights_dtype)           # matmul weights only; biases/LN stay f32

    # fold pos_encoding[:1] into the input-projection bias (exact)
    bp = (params["bp"] + params["pos"]).astype(f32)

    # attn == V (seq len 1)  =>  h @ wv @ wo == h @ (wv @ wo): fold into one weight/layer
    wv = params["wqkv"][:, :, 2 * D_MODEL:3 * D_MODEL]                  # (L, D, D)
    bv = params["bqkv"][:, :, 2 * D_MODEL:3 * D_MODEL]                  # (L, 1, D)
    wa = jnp.einsum("lij,ljk->lik", wv, params["wo"])                   # (L, D, D)
    ba = jnp.einsum("lij,ljk->lik", bv, params["wo"]) + params["bo"]    # (L, 1, D)

    # lane-dense output head: zero-pad hidden (64->128) and output (2->128) widths.
    # Exact: padded bh1 cols are 0, ReLU(0)=0, and padded wh2 rows multiply zeros.
    wh1 = jnp.zeros((D_MODEL, HEAD_PAD), f32).at[:, :D_HALF].set(params["wh1"])
    bh1 = jnp.zeros((1, HEAD_PAD), f32).at[:, :D_HALF].set(params["bh1"])
    wh2 = jnp.zeros((HEAD_PAD, OUT_PAD), f32).at[:D_HALF, :OUTPUT_SIZE].set(params["wh2"])
    bh2 = jnp.zeros((1, OUT_PAD), f32).at[:, :OUTPUT_SIZE].set(params["bh2"])

    weights = [
        cast(params["wp"]), bp,
        cast(wa), ba,
        params["g1"], params["be1"], cast(params["w1"]), params["b1"],
        cast(params["w2"]), params["b2"], params["g2"], params["be2"],
        cast(wh1), bh1, cast(wh2), bh2,
    ]

    def full_spec(arr):
        nd = arr.ndim
        return pl.BlockSpec(arr.shape, lambda i, _nd=nd: (0,) * _nd)

    in_specs = [pl.BlockSpec((tb, INPUT_SIZE), lambda i: (i, 0))]
    in_specs += [full_spec(w) for w in weights]
    out_spec = pl.BlockSpec((tb, OUT_PAD), lambda i: (i, 0))

    out = pl.pallas_call(
        transformer_kernel,
        out_shape=jax.ShapeDtypeStruct((Bp, OUT_PAD), jnp.float32),
        grid_spec=pltpu.PrefetchScalarGridSpec(
            num_scalar_prefetch=0,
            grid=(n_blocks,),
            in_specs=in_specs,
            out_specs=out_spec,
        ),
        compiler_params=pltpu.CompilerParams(
            dimension_semantics=("parallel",),
            vmem_limit_bytes=32 << 20,
        ),
    )(x, *weights)
    return out[:B, :OUTPUT_SIZE]


def init_params(seed=0):
    """Deterministic synthetic init (xavier-uniform style for matrices)."""
    key = jax.random.PRNGKey(seed)
    keys = iter(jax.random.split(key, 128))

    def xav(shape, fan_in, fan_out):
        a = math.sqrt(6.0 / (fan_in + fan_out))
        return jax.random.uniform(next(keys), shape, jnp.float32, -a, a)

    def bias(shape, fan_in):
        a = 1.0 / math.sqrt(fan_in)
        return jax.random.uniform(next(keys), shape, jnp.float32, -a, a)

    def stack(fn):
        return jnp.stack([fn() for _ in range(NUM_LAYERS)], axis=0)

    p = {}
    p["wp"] = xav((INPUT_SIZE, D_MODEL), INPUT_SIZE, D_MODEL)
    p["bp"] = bias((1, D_MODEL), INPUT_SIZE)
    p["pos"] = xav((1, D_MODEL), D_MODEL, 1000)       # pos_encoding[:1] (seq len is 1)
    p["wqkv"] = stack(lambda: xav((D_MODEL, 3 * D_MODEL), D_MODEL, 3 * D_MODEL))
    p["bqkv"] = stack(lambda: bias((1, 3 * D_MODEL), D_MODEL))
    p["wo"] = stack(lambda: xav((D_MODEL, D_MODEL), D_MODEL, D_MODEL))
    p["bo"] = stack(lambda: bias((1, D_MODEL), D_MODEL))
    p["g1"] = jnp.ones((NUM_LAYERS, 1, D_MODEL), jnp.float32)
    p["be1"] = jnp.zeros((NUM_LAYERS, 1, D_MODEL), jnp.float32)
    p["w1"] = stack(lambda: xav((D_MODEL, DIM_FF), D_MODEL, DIM_FF))
    p["b1"] = stack(lambda: bias((1, DIM_FF), D_MODEL))
    p["w2"] = stack(lambda: xav((DIM_FF, D_MODEL), DIM_FF, D_MODEL))
    p["b2"] = stack(lambda: bias((1, D_MODEL), DIM_FF))
    p["g2"] = jnp.ones((NUM_LAYERS, 1, D_MODEL), jnp.float32)
    p["be2"] = jnp.zeros((NUM_LAYERS, 1, D_MODEL), jnp.float32)
    p["wh1"] = xav((D_MODEL, D_HALF), D_MODEL, D_HALF)
    p["bh1"] = bias((1, D_HALF), D_MODEL)
    p["wh2"] = xav((D_HALF, OUTPUT_SIZE), D_HALF, OUTPUT_SIZE)
    p["bh2"] = bias((1, OUTPUT_SIZE), D_HALF)
    return p


def reference_forward(x, p):
    """Pure-JAX f32 reference with the full multi-head attention math (seq len 1)."""
    dk = D_MODEL // NHEAD
    B = x.shape[0]
    h = x @ p["wp"] + p["bp"]
    h = h + p["pos"]
    for l in range(NUM_LAYERS):
        qkv = h @ p["wqkv"][l] + p["bqkv"][l]
        q, k, v = (qkv[:, :D_MODEL], qkv[:, D_MODEL:2 * D_MODEL], qkv[:, 2 * D_MODEL:])
        qh = q.reshape(B, NHEAD, dk)
        kh = k.reshape(B, NHEAD, dk)
        vh = v.reshape(B, NHEAD, dk)
        s = jnp.sum(qh * kh, axis=-1, keepdims=True) / math.sqrt(dk)   # (B, H, 1)
        w = jax.nn.softmax(s, axis=-1)                                  # over single key
        attn = (w * vh).reshape(B, D_MODEL)
        sa = attn @ p["wo"][l] + p["bo"][l]
        h = _layernorm(h + sa, p["g1"][l], p["be1"][l])
        ff = jnp.maximum(h @ p["w1"][l] + p["b1"][l], 0.0) @ p["w2"][l] + p["b2"][l]
        h = _layernorm(h + ff, p["g2"][l], p["be2"][l])
    y = jnp.maximum(h @ p["wh1"] + p["bh1"], 0.0)
    return y @ p["wh2"] + p["bh2"]


if __name__ == "__main__":
    B = 64
    key = jax.random.PRNGKey(0)
    x = jax.random.normal(key, (B, INPUT_SIZE), jnp.float32)
    params = init_params(0)
    ref = reference_forward(x, params)

    # f32 matmuls: tight check against the full-attention JAX reference
    # (only the f32 rounding order of the folded wv@wo differs).
    out_f32 = jax.block_until_ready(
        transformer_predictor(x, params, weights_dtype=jnp.float32))
    assert out_f32.shape == (B, OUTPUT_SIZE)
    assert bool(jnp.all(jnp.isfinite(out_f32)))
    assert bool(jnp.allclose(out_f32, ref, atol=1e-3, rtol=1e-3)), "f32 mismatch vs reference"

    # bf16 matmuls (default, MXU-native on v5e/v6e/v7x): looser tolerance vs f32 reference.
    out = jax.block_until_ready(transformer_predictor(x, params))
    assert out.shape == (B, OUTPUT_SIZE)
    assert bool(jnp.all(jnp.isfinite(out)))
    assert bool(jnp.allclose(out, ref, atol=5e-2, rtol=5e-2)), "bf16 mismatch vs reference"
    print("KERNEL_OK")
</pallas_src>

<mosaic_0001>
module attributes {stable_mosaic.version = 11 : i64} {
  func.func @transformer_kernel(%arg0: i32, %arg1: memref<64x7xf32, #tpu.memory_space<vmem>>, %arg2: memref<7x128xf32, #tpu.memory_space<vmem>>, %arg3: memref<1x128xf32, #tpu.memory_space<vmem>>, %arg4: memref<3x128x128xf32, #tpu.memory_space<vmem>>, %arg5: memref<3x1x128xf32, #tpu.memory_space<vmem>>, %arg6: memref<3x1x128xf32, #tpu.memory_space<vmem>>, %arg7: memref<3x1x128xf32, #tpu.memory_space<vmem>>, %arg8: memref<3x128x512xf32, #tpu.memory_space<vmem>>, %arg9: memref<3x1x512xf32, #tpu.memory_space<vmem>>, %arg10: memref<3x512x128xf32, #tpu.memory_space<vmem>>, %arg11: memref<3x1x128xf32, #tpu.memory_space<vmem>>, %arg12: memref<3x1x128xf32, #tpu.memory_space<vmem>>, %arg13: memref<3x1x128xf32, #tpu.memory_space<vmem>>, %arg14: memref<128x128xf32, #tpu.memory_space<vmem>>, %arg15: memref<1x128xf32, #tpu.memory_space<vmem>>, %arg16: memref<128x128xf32, #tpu.memory_space<vmem>>, %arg17: memref<1x128xf32, #tpu.memory_space<vmem>>, %arg18: memref<64x128xf32, #tpu.memory_space<vmem>>) attributes {dimension_semantics = [#tpu.dimension_semantics<parallel>], iteration_bounds = array<i64: 1>, scalar_prefetch = 0 : i64, scratch_operands = 0 : i64, tpu.core_type = #tpu.core_type<tc>, window_params = [{transform_indices = @transform_0, window_bounds = array<i64: 64, 7>}, {pipeline_mode = #tpu.pipeline_mode<synchronous>, transform_indices = @transform_1, window_bounds = array<i64: 7, 128>}, {pipeline_mode = #tpu.pipeline_mode<synchronous>, transform_indices = @transform_2, window_bounds = array<i64: 1, 128>}, {pipeline_mode = #tpu.pipeline_mode<synchronous>, transform_indices = @transform_3, window_bounds = array<i64: 3, 128, 128>}, {pipeline_mode = #tpu.pipeline_mode<synchronous>, transform_indices = @transform_4, window_bounds = array<i64: 3, 1, 128>}, {pipeline_mode = #tpu.pipeline_mode<synchronous>, transform_indices = @transform_5, window_bounds = array<i64: 3, 1, 128>}, {pipeline_mode = #tpu.pipeline_mode<synchronous>, transform_indices = @transform_6, window_bounds = array<i64: 3, 1, 128>}, {pipeline_mode = #tpu.pipeline_mode<synchronous>, transform_indices = @transform_7, window_bounds = array<i64: 3, 128, 512>}, {pipeline_mode = #tpu.pipeline_mode<synchronous>, transform_indices = @transform_8, window_bounds = array<i64: 3, 1, 512>}, {pipeline_mode = #tpu.pipeline_mode<synchronous>, transform_indices = @transform_9, window_bounds = array<i64: 3, 512, 128>}, {pipeline_mode = #tpu.pipeline_mode<synchronous>, transform_indices = @transform_10, window_bounds = array<i64: 3, 1, 128>}, {pipeline_mode = #tpu.pipeline_mode<synchronous>, transform_indices = @transform_11, window_bounds = array<i64: 3, 1, 128>}, {pipeline_mode = #tpu.pipeline_mode<synchronous>, transform_indices = @transform_12, window_bounds = array<i64: 3, 1, 128>}, {pipeline_mode = #tpu.pipeline_mode<synchronous>, transform_indices = @transform_13, window_bounds = array<i64: 128, 128>}, {pipeline_mode = #tpu.pipeline_mode<synchronous>, transform_indices = @transform_14, window_bounds = array<i64: 1, 128>}, {pipeline_mode = #tpu.pipeline_mode<synchronous>, transform_indices = @transform_15, window_bounds = array<i64: 128, 128>}, {pipeline_mode = #tpu.pipeline_mode<synchronous>, transform_indices = @transform_16, window_bounds = array<i64: 1, 128>}, {transform_indices = @transform_17, window_bounds = array<i64: 64, 128>}]} {
    %c0 = arith.constant 0 : index
    %c0_0 = arith.constant 0 : index
    %0 = vector.load %arg1[%c0, %c0_0] : memref<64x7xf32, #tpu.memory_space<vmem>>, vector<64x7xf32>
    %c0_1 = arith.constant 0 : index
    %c0_2 = arith.constant 0 : index
    %1 = vector.load %arg2[%c0_1, %c0_2] : memref<7x128xf32, #tpu.memory_space<vmem>>, vector<7x128xf32>
    %cst = arith.constant dense<0.000000e+00> : vector<64x128xf32>
    %2 = tpu.matmul %0, %1, %cst {dimension_numbers = #tpu.dot_dimension_numbers<[1], [0], [0], [1], [0, 0, 1, 1], [], []>} : vector<64x7xf32>, vector<7x128xf32>, vector<64x128xf32> -> vector<64x128xf32>
    %c0_3 = arith.constant 0 : index
    %c0_4 = arith.constant 0 : index
    %3 = vector.load %arg3[%c0_3, %c0_4] : memref<1x128xf32, #tpu.memory_space<vmem>>, vector<1x128xf32>
    %4 = vector.broadcast %3 : vector<1x128xf32> to vector<64x128xf32>
    %5 = arith.addf %2, %4 : vector<64x128xf32>
    %c0_5 = arith.constant 0 : index
    %c0_6 = arith.constant 0 : index
    %c0_7 = arith.constant 0 : index
    %6 = vector.load %arg4[%c0_5, %c0_6, %c0_7] : memref<3x128x128xf32, #tpu.memory_space<vmem>>, vector<1x128x128xf32>
    %7 = vector.shape_cast %6 : vector<1x128x128xf32> to vector<128x128xf32>
    %cst_8 = arith.constant dense<0.000000e+00> : vector<64x128xf32>
    %8 = tpu.matmul %5, %7, %cst_8 {dimension_numbers = #tpu.dot_dimension_numbers<[1], [0], [0], [1], [0, 0, 1, 1], [], []>} : vector<64x128xf32>, vector<128x128xf32>, vector<64x128xf32> -> vector<64x128xf32>
    %c0_9 = arith.constant 0 : index
    %c0_10 = arith.constant 0 : index
    %c0_11 = arith.constant 0 : index
    %9 = vector.load %arg5[%c0_9, %c0_10, %c0_11] : memref<3x1x128xf32, #tpu.memory_space<vmem>>, vector<1x1x128xf32>
    %10 = vector.shape_cast %9 : vector<1x1x128xf32> to vector<1x128xf32>
    %11 = vector.broadcast %10 : vector<1x128xf32> to vector<64x128xf32>
    %12 = arith.addf %8, %11 : vector<64x128xf32>
    %13 = arith.addf %5, %12 : vector<64x128xf32>
    %c0_12 = arith.constant 0 : index
    %c0_13 = arith.constant 0 : index
    %c0_14 = arith.constant 0 : index
    %14 = vector.load %arg6[%c0_12, %c0_13, %c0_14] : memref<3x1x128xf32, #tpu.memory_space<vmem>>, vector<1x1x128xf32>
    %15 = vector.shape_cast %14 : vector<1x1x128xf32> to vector<1x128xf32>
    %c0_15 = arith.constant 0 : index
    %c0_16 = arith.constant 0 : index
    %c0_17 = arith.constant 0 : index
    %16 = vector.load %arg7[%c0_15, %c0_16, %c0_17] : memref<3x1x128xf32, #tpu.memory_space<vmem>>, vector<1x1x128xf32>
    %17 = vector.shape_cast %16 : vector<1x1x128xf32> to vector<1x128xf32>
    %cst_18 = arith.constant dense<0.000000e+00> : vector<64xf32>
    %18 = vector.multi_reduction <add>, %13, %cst_18 [1] : vector<64x128xf32> to vector<64xf32>
    %19 = vector.shape_cast %18 : vector<64xf32> to vector<64x1xf32>
    %cst_19 = arith.constant 1.280000e+02 : f32
    %20 = vector.broadcast %cst_19 : f32 to vector<64x1xf32>
    %21 = arith.divf %19, %20 : vector<64x1xf32>
    %22 = vector.broadcast %21 : vector<64x1xf32> to vector<64x128xf32>
    %23 = arith.subf %13, %22 : vector<64x128xf32>
    %24 = arith.mulf %23, %23 : vector<64x128xf32>
    %cst_20 = arith.constant dense<0.000000e+00> : vector<64xf32>
    %25 = vector.multi_reduction <add>, %24, %cst_20 [1] : vector<64x128xf32> to vector<64xf32>
    %26 = vector.shape_cast %25 : vector<64xf32> to vector<64x1xf32>
    %cst_21 = arith.constant 1.280000e+02 : f32
    %27 = vector.broadcast %cst_21 : f32 to vector<64x1xf32>
    %28 = arith.divf %26, %27 : vector<64x1xf32>
    %cst_22 = arith.constant 9.99999974E-6 : f32
    %29 = vector.broadcast %cst_22 : f32 to vector<64x1xf32>
    %30 = arith.addf %28, %29 : vector<64x1xf32>
    %31 = math.rsqrt %30 : vector<64x1xf32>
    %32 = vector.broadcast %31 : vector<64x1xf32> to vector<64x128xf32>
    %33 = arith.mulf %23, %32 : vector<64x128xf32>
    %34 = vector.broadcast %15 : vector<1x128xf32> to vector<64x128xf32>
    %35 = arith.mulf %33, %34 : vector<64x128xf32>
    %36 = vector.broadcast %17 : vector<1x128xf32> to vector<64x128xf32>
    %37 = arith.addf %35, %36 : vector<64x128xf32>
    %c0_23 = arith.constant 0 : index
    %c0_24 = arith.constant 0 : index
    %c0_25 = arith.constant 0 : index
    %38 = vector.load %arg8[%c0_23, %c0_24, %c0_25] : memref<3x128x512xf32, #tpu.memory_space<vmem>>, vector<1x128x512xf32>
    %39 = vector.shape_cast %38 : vector<1x128x512xf32> to vector<128x512xf32>
    %cst_26 = arith.constant dense<0.000000e+00> : vector<64x512xf32>
    %40 = tpu.matmul %37, %39, %cst_26 {dimension_numbers = #tpu.dot_dimension_numbers<[1], [0], [0], [1], [0, 0, 1, 1], [], []>} : vector<64x128xf32>, vector<128x512xf32>, vector<64x512xf32> -> vector<64x512xf32>
    %c0_27 = arith.constant 0 : index
    %c0_28 = arith.constant 0 : index
    %c0_29 = arith.constant 0 : index
    %41 = vector.load %arg9[%c0_27, %c0_28, %c0_29] : memref<3x1x512xf32, #tpu.memory_space<vmem>>, vector<1x1x512xf32>
    %42 = vector.shape_cast %41 : vector<1x1x512xf32> to vector<1x512xf32>
    %43 = vector.broadcast %42 : vector<1x512xf32> to vector<64x512xf32>
    %44 = arith.addf %40, %43 : vector<64x512xf32>
    %cst_30 = arith.constant 0.000000e+00 : f32
    %45 = vector.broadcast %cst_30 : f32 to vector<64x512xf32>
    %46 = arith.maximumf %44, %45 : vector<64x512xf32>
    %c0_31 = arith.constant 0 : index
    %c0_32 = arith.constant 0 : index
    %c0_33 = arith.constant 0 : index
    %47 = vector.load %arg10[%c0_31, %c0_32, %c0_33] : memref<3x512x128xf32, #tpu.memory_space<vmem>>, vector<1x512x128xf32>
    %48 = vector.shape_cast %47 : vector<1x512x128xf32> to vector<512x128xf32>
    %cst_34 = arith.constant dense<0.000000e+00> : vector<64x128xf32>
    %49 = tpu.matmul %46, %48, %cst_34 {dimension_numbers = #tpu.dot_dimension_numbers<[1], [0], [0], [1], [0, 0, 1, 1], [], []>} : vector<64x512xf32>, vector<512x128xf32>, vector<64x128xf32> -> vector<64x128xf32>
    %c0_35 = arith.constant 0 : index
    %c0_36 = arith.constant 0 : index
    %c0_37 = arith.constant 0 : index
    %50 = vector.load %arg11[%c0_35, %c0_36, %c0_37] : memref<3x1x128xf32, #tpu.memory_space<vmem>>, vector<1x1x128xf32>
    %51 = vector.shape_cast %50 : vector<1x1x128xf32> to vector<1x128xf32>
    %52 = vector.broadcast %51 : vector<1x128xf32> to vector<64x128xf32>
    %53 = arith.addf %49, %52 : vector<64x128xf32>
    %54 = arith.addf %37, %53 : vector<64x128xf32>
    %c0_38 = arith.constant 0 : index
    %c0_39 = arith.constant 0 : index
    %c0_40 = arith.constant 0 : index
    %55 = vector.load %arg12[%c0_38, %c0_39, %c0_40] : memref<3x1x128xf32, #tpu.memory_space<vmem>>, vector<1x1x128xf32>
    %56 = vector.shape_cast %55 : vector<1x1x128xf32> to vector<1x128xf32>
    %c0_41 = arith.constant 0 : index
    %c0_42 = arith.constant 0 : index
    %c0_43 = arith.constant 0 : index
    %57 = vector.load %arg13[%c0_41, %c0_42, %c0_43] : memref<3x1x128xf32, #tpu.memory_space<vmem>>, vector<1x1x128xf32>
    %58 = vector.shape_cast %57 : vector<1x1x128xf32> to vector<1x128xf32>
    %cst_44 = arith.constant dense<0.000000e+00> : vector<64xf32>
    %59 = vector.multi_reduction <add>, %54, %cst_44 [1] : vector<64x128xf32> to vector<64xf32>
    %60 = vector.shape_cast %59 : vector<64xf32> to vector<64x1xf32>
    %cst_45 = arith.constant 1.280000e+02 : f32
    %61 = vector.broadcast %cst_45 : f32 to vector<64x1xf32>
    %62 = arith.divf %60, %61 : vector<64x1xf32>
    %63 = vector.broadcast %62 : vector<64x1xf32> to vector<64x128xf32>
    %64 = arith.subf %54, %63 : vector<64x128xf32>
    %65 = arith.mulf %64, %64 : vector<64x128xf32>
    %cst_46 = arith.constant dense<0.000000e+00> : vector<64xf32>
    %66 = vector.multi_reduction <add>, %65, %cst_46 [1] : vector<64x128xf32> to vector<64xf32>
    %67 = vector.shape_cast %66 : vector<64xf32> to vector<64x1xf32>
    %cst_47 = arith.constant 1.280000e+02 : f32
    %68 = vector.broadcast %cst_47 : f32 to vector<64x1xf32>
    %69 = arith.divf %67, %68 : vector<64x1xf32>
    %cst_48 = arith.constant 9.99999974E-6 : f32
    %70 = vector.broadcast %cst_48 : f32 to vector<64x1xf32>
    %71 = arith.addf %69, %70 : vector<64x1xf32>
    %72 = math.rsqrt %71 : vector<64x1xf32>
    %73 = vector.broadcast %72 : vector<64x1xf32> to vector<64x128xf32>
    %74 = arith.mulf %64, %73 : vector<64x128xf32>
    %75 = vector.broadcast %56 : vector<1x128xf32> to vector<64x128xf32>
    %76 = arith.mulf %74, %75 : vector<64x128xf32>
    %77 = vector.broadcast %58 : vector<1x128xf32> to vector<64x128xf32>
    %78 = arith.addf %76, %77 : vector<64x128xf32>
    %c1 = arith.constant 1 : index
    %c0_49 = arith.constant 0 : index
    %c0_50 = arith.constant 0 : index
    %79 = vector.load %arg4[%c1, %c0_49, %c0_50] : memref<3x128x128xf32, #tpu.memory_space<vmem>>, vector<1x128x128xf32>
    %80 = vector.shape_cast %79 : vector<1x128x128xf32> to vector<128x128xf32>
    %cst_51 = arith.constant dense<0.000000e+00> : vector<64x128xf32>
    %81 = tpu.matmul %78, %80, %cst_51 {dimension_numbers = #tpu.dot_dimension_numbers<[1], [0], [0], [1], [0, 0, 1, 1], [], []>} : vector<64x128xf32>, vector<128x128xf32>, vector<64x128xf32> -> vector<64x128xf32>
    %c1_52 = arith.constant 1 : index
    %c0_53 = arith.constant 0 : index
    %c0_54 = arith.constant 0 : index
    %82 = vector.load %arg5[%c1_52, %c0_53, %c0_54] : memref<3x1x128xf32, #tpu.memory_space<vmem>>, vector<1x1x128xf32>
    %83 = vector.shape_cast %82 : vector<1x1x128xf32> to vector<1x128xf32>
    %84 = vector.broadcast %83 : vector<1x128xf32> to vector<64x128xf32>
    %85 = arith.addf %81, %84 : vector<64x128xf32>
    %86 = arith.addf %78, %85 : vector<64x128xf32>
    %c1_55 = arith.constant 1 : index
    %c0_56 = arith.constant 0 : index
    %c0_57 = arith.constant 0 : index
    %87 = vector.load %arg6[%c1_55, %c0_56, %c0_57] : memref<3x1x128xf32, #tpu.memory_space<vmem>>, vector<1x1x128xf32>
    %88 = vector.shape_cast %87 : vector<1x1x128xf32> to vector<1x128xf32>
    %c1_58 = arith.constant 1 : index
    %c0_59 = arith.constant 0 : index
    %c0_60 = arith.constant 0 : index
    %89 = vector.load %arg7[%c1_58, %c0_59, %c0_60] : memref<3x1x128xf32, #tpu.memory_space<vmem>>, vector<1x1x128xf32>
    %90 = vector.shape_cast %89 : vector<1x1x128xf32> to vector<1x128xf32>
    %cst_61 = arith.constant dense<0.000000e+00> : vector<64xf32>
    %91 = vector.multi_reduction <add>, %86, %cst_61 [1] : vector<64x128xf32> to vector<64xf32>
    %92 = vector.shape_cast %91 : vector<64xf32> to vector<64x1xf32>
    %cst_62 = arith.constant 1.280000e+02 : f32
    %93 = vector.broadcast %cst_62 : f32 to vector<64x1xf32>
    %94 = arith.divf %92, %93 : vector<64x1xf32>
    %95 = vector.broadcast %94 : vector<64x1xf32> to vector<64x128xf32>
    %96 = arith.subf %86, %95 : vector<64x128xf32>
    %97 = arith.mulf %96, %96 : vector<64x128xf32>
    %cst_63 = arith.constant dense<0.000000e+00> : vector<64xf32>
    %98 = vector.multi_reduction <add>, %97, %cst_63 [1] : vector<64x128xf32> to vector<64xf32>
    %99 = vector.shape_cast %98 : vector<64xf32> to vector<64x1xf32>
    %cst_64 = arith.constant 1.280000e+02 : f32
    %100 = vector.broadcast %cst_64 : f32 to vector<64x1xf32>
    %101 = arith.divf %99, %100 : vector<64x1xf32>
    %cst_65 = arith.constant 9.99999974E-6 : f32
    %102 = vector.broadcast %cst_65 : f32 to vector<64x1xf32>
    %103 = arith.addf %101, %102 : vector<64x1xf32>
    %104 = math.rsqrt %103 : vector<64x1xf32>
    %105 = vector.broadcast %104 : vector<64x1xf32> to vector<64x128xf32>
    %106 = arith.mulf %96, %105 : vector<64x128xf32>
    %107 = vector.broadcast %88 : vector<1x128xf32> to vector<64x128xf32>
    %108 = arith.mulf %106, %107 : vector<64x128xf32>
    %109 = vector.broadcast %90 : vector<1x128xf32> to vector<64x128xf32>
    %110 = arith.addf %108, %109 : vector<64x128xf32>
    %c1_66 = arith.constant 1 : index
    %c0_67 = arith.constant 0 : index
    %c0_68 = arith.constant 0 : index
    %111 = vector.load %arg8[%c1_66, %c0_67, %c0_68] : memref<3x128x512xf32, #tpu.memory_space<vmem>>, vector<1x128x512xf32>
    %112 = vector.shape_cast %111 : vector<1x128x512xf32> to vector<128x512xf32>
    %cst_69 = arith.constant dense<0.000000e+00> : vector<64x512xf32>
    %113 = tpu.matmul %110, %112, %cst_69 {dimension_numbers = #tpu.dot_dimension_numbers<[1], [0], [0], [1], [0, 0, 1, 1], [], []>} : vector<64x128xf32>, vector<128x512xf32>, vector<64x512xf32> -> vector<64x512xf32>
    %c1_70 = arith.constant 1 : index
    %c0_71 = arith.constant 0 : index
    %c0_72 = arith.constant 0 : index
    %114 = vector.load %arg9[%c1_70, %c0_71, %c0_72] : memref<3x1x512xf32, #tpu.memory_space<vmem>>, vector<1x1x512xf32>
    %115 = vector.shape_cast %114 : vector<1x1x512xf32> to vector<1x512xf32>
    %116 = vector.broadcast %115 : vector<1x512xf32> to vector<64x512xf32>
    %117 = arith.addf %113, %116 : vector<64x512xf32>
    %cst_73 = arith.constant 0.000000e+00 : f32
    %118 = vector.broadcast %cst_73 : f32 to vector<64x512xf32>
    %119 = arith.maximumf %117, %118 : vector<64x512xf32>
    %c1_74 = arith.constant 1 : index
    %c0_75 = arith.constant 0 : index
    %c0_76 = arith.constant 0 : index
    %120 = vector.load %arg10[%c1_74, %c0_75, %c0_76] : memref<3x512x128xf32, #tpu.memory_space<vmem>>, vector<1x512x128xf32>
    %121 = vector.shape_cast %120 : vector<1x512x128xf32> to vector<512x128xf32>
    %cst_77 = arith.constant dense<0.000000e+00> : vector<64x128xf32>
    %122 = tpu.matmul %119, %121, %cst_77 {dimension_numbers = #tpu.dot_dimension_numbers<[1], [0], [0], [1], [0, 0, 1, 1], [], []>} : vector<64x512xf32>, vector<512x128xf32>, vector<64x128xf32> -> vector<64x128xf32>
    %c1_78 = arith.constant 1 : index
    %c0_79 = arith.constant 0 : index
    %c0_80 = arith.constant 0 : index
    %123 = vector.load %arg11[%c1_78, %c0_79, %c0_80] : memref<3x1x128xf32, #tpu.memory_space<vmem>>, vector<1x1x128xf32>
    %124 = vector.shape_cast %123 : vector<1x1x128xf32> to vector<1x128xf32>
    %125 = vector.broadcast %124 : vector<1x128xf32> to vector<64x128xf32>
    %126 = arith.addf %122, %125 : vector<64x128xf32>
    %127 = arith.addf %110, %126 : vector<64x128xf32>
    %c1_81 = arith.constant 1 : index
    %c0_82 = arith.constant 0 : index
    %c0_83 = arith.constant 0 : index
    %128 = vector.load %arg12[%c1_81, %c0_82, %c0_83] : memref<3x1x128xf32, #tpu.memory_space<vmem>>, vector<1x1x128xf32>
    %129 = vector.shape_cast %128 : vector<1x1x128xf32> to vector<1x128xf32>
    %c1_84 = arith.constant 1 : index
    %c0_85 = arith.constant 0 : index
    %c0_86 = arith.constant 0 : index
    %130 = vector.load %arg13[%c1_84, %c0_85, %c0_86] : memref<3x1x128xf32, #tpu.memory_space<vmem>>, vector<1x1x128xf32>
    %131 = vector.shape_cast %130 : vector<1x1x128xf32> to vector<1x128xf32>
    %cst_87 = arith.constant dense<0.000000e+00> : vector<64xf32>
    %132 = vector.multi_reduction <add>, %127, %cst_87 [1] : vector<64x128xf32> to vector<64xf32>
    %133 = vector.shape_cast %132 : vector<64xf32> to vector<64x1xf32>
    %cst_88 = arith.constant 1.280000e+02 : f32
    %134 = vector.broadcast %cst_88 : f32 to vector<64x1xf32>
    %135 = arith.divf %133, %134 : vector<64x1xf32>
    %136 = vector.broadcast %135 : vector<64x1xf32> to vector<64x128xf32>
    %137 = arith.subf %127, %136 : vector<64x128xf32>
    %138 = arith.mulf %137, %137 : vector<64x128xf32>
    %cst_89 = arith.constant dense<0.000000e+00> : vector<64xf32>
    %139 = vector.multi_reduction <add>, %138, %cst_89 [1] : vector<64x128xf32> to vector<64xf32>
    %140 = vector.shape_cast %139 : vector<64xf32> to vector<64x1xf32>
    %cst_90 = arith.constant 1.280000e+02 : f32
    %141 = vector.broadcast %cst_90 : f32 to vector<64x1xf32>
    %142 = arith.divf %140, %141 : vector<64x1xf32>
    %cst_91 = arith.constant 9.99999974E-6 : f32
    %143 = vector.broadcast %cst_91 : f32 to vector<64x1xf32>
    %144 = arith.addf %142, %143 : vector<64x1xf32>
    %145 = math.rsqrt %144 : vector<64x1xf32>
    %146 = vector.broadcast %145 : vector<64x1xf32> to vector<64x128xf32>
    %147 = arith.mulf %137, %146 : vector<64x128xf32>
    %148 = vector.broadcast %129 : vector<1x128xf32> to vector<64x128xf32>
    %149 = arith.mulf %147, %148 : vector<64x128xf32>
    %150 = vector.broadcast %131 : vector<1x128xf32> to vector<64x128xf32>
    %151 = arith.addf %149, %150 : vector<64x128xf32>
    %c2 = arith.constant 2 : index
    %c0_92 = arith.constant 0 : index
    %c0_93 = arith.constant 0 : index
    %152 = vector.load %arg4[%c2, %c0_92, %c0_93] : memref<3x128x128xf32, #tpu.memory_space<vmem>>, vector<1x128x128xf32>
    %153 = vector.shape_cast %152 : vector<1x128x128xf32> to vector<128x128xf32>
    %cst_94 = arith.constant dense<0.000000e+00> : vector<64x128xf32>
    %154 = tpu.matmul %151, %153, %cst_94 {dimension_numbers = #tpu.dot_dimension_numbers<[1], [0], [0], [1], [0, 0, 1, 1], [], []>} : vector<64x128xf32>, vector<128x128xf32>, vector<64x128xf32> -> vector<64x128xf32>
    %c2_95 = arith.constant 2 : index
    %c0_96 = arith.constant 0 : index
    %c0_97 = arith.constant 0 : index
    %155 = vector.load %arg5[%c2_95, %c0_96, %c0_97] : memref<3x1x128xf32, #tpu.memory_space<vmem>>, vector<1x1x128xf32>
    %156 = vector.shape_cast %155 : vector<1x1x128xf32> to vector<1x128xf32>
    %157 = vector.broadcast %156 : vector<1x128xf32> to vector<64x128xf32>
    %158 = arith.addf %154, %157 : vector<64x128xf32>
    %159 = arith.addf %151, %158 : vector<64x128xf32>
    %c2_98 = arith.constant 2 : index
    %c0_99 = arith.constant 0 : index
    %c0_100 = arith.constant 0 : index
    %160 = vector.load %arg6[%c2_98, %c0_99, %c0_100] : memref<3x1x128xf32, #tpu.memory_space<vmem>>, vector<1x1x128xf32>
    %161 = vector.shape_cast %160 : vector<1x1x128xf32> to vector<1x128xf32>
    %c2_101 = arith.constant 2 : index
    %c0_102 = arith.constant 0 : index
    %c0_103 = arith.constant 0 : index
    %162 = vector.load %arg7[%c2_101, %c0_102, %c0_103] : memref<3x1x128xf32, #tpu.memory_space<vmem>>, vector<1x1x128xf32>
    %163 = vector.shape_cast %162 : vector<1x1x128xf32> to vector<1x128xf32>
    %cst_104 = arith.constant dense<0.000000e+00> : vector<64xf32>
    %164 = vector.multi_reduction <add>, %159, %cst_104 [1] : vector<64x128xf32> to vector<64xf32>
    %165 = vector.shape_cast %164 : vector<64xf32> to vector<64x1xf32>
    %cst_105 = arith.constant 1.280000e+02 : f32
    %166 = vector.broadcast %cst_105 : f32 to vector<64x1xf32>
    %167 = arith.divf %165, %166 : vector<64x1xf32>
    %168 = vector.broadcast %167 : vector<64x1xf32> to vector<64x128xf32>
    %169 = arith.subf %159, %168 : vector<64x128xf32>
    %170 = arith.mulf %169, %169 : vector<64x128xf32>
    %cst_106 = arith.constant dense<0.000000e+00> : vector<64xf32>
    %171 = vector.multi_reduction <add>, %170, %cst_106 [1] : vector<64x128xf32> to vector<64xf32>
    %172 = vector.shape_cast %171 : vector<64xf32> to vector<64x1xf32>
    %cst_107 = arith.constant 1.280000e+02 : f32
    %173 = vector.broadcast %cst_107 : f32 to vector<64x1xf32>
    %174 = arith.divf %172, %173 : vector<64x1xf32>
    %cst_108 = arith.constant 9.99999974E-6 : f32
    %175 = vector.broadcast %cst_108 : f32 to vector<64x1xf32>
    %176 = arith.addf %174, %175 : vector<64x1xf32>
    %177 = math.rsqrt %176 : vector<64x1xf32>
    %178 = vector.broadcast %177 : vector<64x1xf32> to vector<64x128xf32>
    %179 = arith.mulf %169, %178 : vector<64x128xf32>
    %180 = vector.broadcast %161 : vector<1x128xf32> to vector<64x128xf32>
    %181 = arith.mulf %179, %180 : vector<64x128xf32>
    %182 = vector.broadcast %163 : vector<1x128xf32> to vector<64x128xf32>
    %183 = arith.addf %181, %182 : vector<64x128xf32>
    %c2_109 = arith.constant 2 : index
    %c0_110 = arith.constant 0 : index
    %c0_111 = arith.constant 0 : index
    %184 = vector.load %arg8[%c2_109, %c0_110, %c0_111] : memref<3x128x512xf32, #tpu.memory_space<vmem>>, vector<1x128x512xf32>
    %185 = vector.shape_cast %184 : vector<1x128x512xf32> to vector<128x512xf32>
    %cst_112 = arith.constant dense<0.000000e+00> : vector<64x512xf32>
    %186 = tpu.matmul %183, %185, %cst_112 {dimension_numbers = #tpu.dot_dimension_numbers<[1], [0], [0], [1], [0, 0, 1, 1], [], []>} : vector<64x128xf32>, vector<128x512xf32>, vector<64x512xf32> -> vector<64x512xf32>
    %c2_113 = arith.constant 2 : index
    %c0_114 = arith.constant 0 : index
    %c0_115 = arith.constant 0 : index
    %187 = vector.load %arg9[%c2_113, %c0_114, %c0_115] : memref<3x1x512xf32, #tpu.memory_space<vmem>>, vector<1x1x512xf32>
    %188 = vector.shape_cast %187 : vector<1x1x512xf32> to vector<1x512xf32>
    %189 = vector.broadcast %188 : vector<1x512xf32> to vector<64x512xf32>
    %190 = arith.addf %186, %189 : vector<64x512xf32>
    %cst_116 = arith.constant 0.000000e+00 : f32
    %191 = vector.broadcast %cst_116 : f32 to vector<64x512xf32>
    %192 = arith.maximumf %190, %191 : vector<64x512xf32>
    %c2_117 = arith.constant 2 : index
    %c0_118 = arith.constant 0 : index
    %c0_119 = arith.constant 0 : index
    %193 = vector.load %arg10[%c2_117, %c0_118, %c0_119] : memref<3x512x128xf32, #tpu.memory_space<vmem>>, vector<1x512x128xf32>
    %194 = vector.shape_cast %193 : vector<1x512x128xf32> to vector<512x128xf32>
    %cst_120 = arith.constant dense<0.000000e+00> : vector<64x128xf32>
    %195 = tpu.matmul %192, %194, %cst_120 {dimension_numbers = #tpu.dot_dimension_numbers<[1], [0], [0], [1], [0, 0, 1, 1], [], []>} : vector<64x512xf32>, vector<512x128xf32>, vector<64x128xf32> -> vector<64x128xf32>
    %c2_121 = arith.constant 2 : index
    %c0_122 = arith.constant 0 : index
    %c0_123 = arith.constant 0 : index
    %196 = vector.load %arg11[%c2_121, %c0_122, %c0_123] : memref<3x1x128xf32, #tpu.memory_space<vmem>>, vector<1x1x128xf32>
    %197 = vector.shape_cast %196 : vector<1x1x128xf32> to vector<1x128xf32>
    %198 = vector.broadcast %197 : vector<1x128xf32> to vector<64x128xf32>
    %199 = arith.addf %195, %198 : vector<64x128xf32>
    %200 = arith.addf %183, %199 : vector<64x128xf32>
    %c2_124 = arith.constant 2 : index
    %c0_125 = arith.constant 0 : index
    %c0_126 = arith.constant 0 : index
    %201 = vector.load %arg12[%c2_124, %c0_125, %c0_126] : memref<3x1x128xf32, #tpu.memory_space<vmem>>, vector<1x1x128xf32>
    %202 = vector.shape_cast %201 : vector<1x1x128xf32> to vector<1x128xf32>
    %c2_127 = arith.constant 2 : index
    %c0_128 = arith.constant 0 : index
    %c0_129 = arith.constant 0 : index
    %203 = vector.load %arg13[%c2_127, %c0_128, %c0_129] : memref<3x1x128xf32, #tpu.memory_space<vmem>>, vector<1x1x128xf32>
    %204 = vector.shape_cast %203 : vector<1x1x128xf32> to vector<1x128xf32>
    %cst_130 = arith.constant dense<0.000000e+00> : vector<64xf32>
    %205 = vector.multi_reduction <add>, %200, %cst_130 [1] : vector<64x128xf32> to vector<64xf32>
    %206 = vector.shape_cast %205 : vector<64xf32> to vector<64x1xf32>
    %cst_131 = arith.constant 1.280000e+02 : f32
    %207 = vector.broadcast %cst_131 : f32 to vector<64x1xf32>
    %208 = arith.divf %206, %207 : vector<64x1xf32>
    %209 = vector.broadcast %208 : vector<64x1xf32> to vector<64x128xf32>
    %210 = arith.subf %200, %209 : vector<64x128xf32>
    %211 = arith.mulf %210, %210 : vector<64x128xf32>
    %cst_132 = arith.constant dense<0.000000e+00> : vector<64xf32>
    %212 = vector.multi_reduction <add>, %211, %cst_132 [1] : vector<64x128xf32> to vector<64xf32>
    %213 = vector.shape_cast %212 : vector<64xf32> to vector<64x1xf32>
    %cst_133 = arith.constant 1.280000e+02 : f32
    %214 = vector.broadcast %cst_133 : f32 to vector<64x1xf32>
    %215 = arith.divf %213, %214 : vector<64x1xf32>
    %cst_134 = arith.constant 9.99999974E-6 : f32
    %216 = vector.broadcast %cst_134 : f32 to vector<64x1xf32>
    %217 = arith.addf %215, %216 : vector<64x1xf32>
    %218 = math.rsqrt %217 : vector<64x1xf32>
    %219 = vector.broadcast %218 : vector<64x1xf32> to vector<64x128xf32>
    %220 = arith.mulf %210, %219 : vector<64x128xf32>
    %221 = vector.broadcast %202 : vector<1x128xf32> to vector<64x128xf32>
    %222 = arith.mulf %220, %221 : vector<64x128xf32>
    %223 = vector.broadcast %204 : vector<1x128xf32> to vector<64x128xf32>
    %224 = arith.addf %222, %223 : vector<64x128xf32>
    %c0_135 = arith.constant 0 : index
    %c0_136 = arith.constant 0 : index
    %225 = vector.load %arg14[%c0_135, %c0_136] : memref<128x128xf32, #tpu.memory_space<vmem>>, vector<128x128xf32>
    %cst_137 = arith.constant dense<0.000000e+00> : vector<64x128xf32>
    %226 = tpu.matmul %224, %225, %cst_137 {dimension_numbers = #tpu.dot_dimension_numbers<[1], [0], [0], [1], [0, 0, 1, 1], [], []>} : vector<64x128xf32>, vector<128x128xf32>, vector<64x128xf32> -> vector<64x128xf32>
    %c0_138 = arith.constant 0 : index
    %c0_139 = arith.constant 0 : index
    %227 = vector.load %arg15[%c0_138, %c0_139] : memref<1x128xf32, #tpu.memory_space<vmem>>, vector<1x128xf32>
    %228 = vector.broadcast %227 : vector<1x128xf32> to vector<64x128xf32>
    %229 = arith.addf %226, %228 : vector<64x128xf32>
    %cst_140 = arith.constant 0.000000e+00 : f32
    %230 = vector.broadcast %cst_140 : f32 to vector<64x128xf32>
    %231 = arith.maximumf %229, %230 : vector<64x128xf32>
    %c0_141 = arith.constant 0 : index
    %c0_142 = arith.constant 0 : index
    %232 = vector.load %arg16[%c0_141, %c0_142] : memref<128x128xf32, #tpu.memory_space<vmem>>, vector<128x128xf32>
    %cst_143 = arith.constant dense<0.000000e+00> : vector<64x128xf32>
    %233 = tpu.matmul %231, %232, %cst_143 {dimension_numbers = #tpu.dot_dimension_numbers<[1], [0], [0], [1], [0, 0, 1, 1], [], []>} : vector<64x128xf32>, vector<128x128xf32>, vector<64x128xf32> -> vector<64x128xf32>
    %c0_144 = arith.constant 0 : index
    %c0_145 = arith.constant 0 : index
    %234 = vector.load %arg17[%c0_144, %c0_145] : memref<1x128xf32, #tpu.memory_space<vmem>>, vector<1x128xf32>
    %235 = vector.broadcast %234 : vector<1x128xf32> to vector<64x128xf32>
    %236 = arith.addf %233, %235 : vector<64x128xf32>
    %c0_146 = arith.constant 0 : index
    %c0_147 = arith.constant 0 : index
    %237 = vector.load %arg18[%c0_146, %c0_147] : memref<64x128xf32, #tpu.memory_space<vmem>>, vector<64x128xf32>
    tpu.vector_store %arg18[%c0_146, %c0_147], %236 {strides = array<i32>} : memref<64x128xf32, #tpu.memory_space<vmem>>, vector<64x128xf32>,
    return
  }
  func.func @transform_0(%arg0: i32) -> (i32, i32) {
    %c0_i32 = arith.constant 0 : i32
    %c0_i32_0 = arith.constant 0 : i32
    return %arg0, %c0_i32 : i32, i32
  }
  func.func @transform_1(%arg0: i32) -> (i32, i32) {
    %c0_i32 = arith.constant 0 : i32
    %c0_i32_0 = arith.constant 0 : i32
    %c0_i32_1 = arith.constant 0 : i32
    return %c0_i32, %c0_i32_0 : i32, i32
  }
  func.func @transform_2(%arg0: i32) -> (i32, i32) {
    %c0_i32 = arith.constant 0 : i32
    %c0_i32_0 = arith.constant 0 : i32
    %c0_i32_1 = arith.constant 0 : i32
    return %c0_i32, %c0_i32_0 : i32, i32
  }
  func.func @transform_3(%arg0: i32) -> (i32, i32, i32) {
    %c0_i32 = arith.constant 0 : i32
    %c0_i32_0 = arith.constant 0 : i32
    %c0_i32_1 = arith.constant 0 : i32
    %c0_i32_2 = arith.constant 0 : i32
    return %c0_i32, %c0_i32_0, %c0_i32_1 : i32, i32, i32
  }
  func.func @transform_4(%arg0: i32) -> (i32, i32, i32) {
    %c0_i32 = arith.constant 0 : i32
    %c0_i32_0 = arith.constant 0 : i32
    %c0_i32_1 = arith.constant 0 : i32
    %c0_i32_2 = arith.constant 0 : i32
    return %c0_i32, %c0_i32_0, %c0_i32_1 : i32, i32, i32
  }
  func.func @transform_5(%arg0: i32) -> (i32, i32, i32) {
    %c0_i32 = arith.constant 0 : i32
    %c0_i32_0 = arith.constant 0 : i32
    %c0_i32_1 = arith.constant 0 : i32
    %c0_i32_2 = arith.constant 0 : i32
    return %c0_i32, %c0_i32_0, %c0_i32_1 : i32, i32, i32
  }
  func.func @transform_6(%arg0: i32) -> (i32, i32, i32) {
    %c0_i32 = arith.constant 0 : i32
    %c0_i32_0 = arith.constant 0 : i32
    %c0_i32_1 = arith.constant 0 : i32
    %c0_i32_2 = arith.constant 0 : i32
    return %c0_i32, %c0_i32_0, %c0_i32_1 : i32, i32, i32
  }
  func.func @transform_7(%arg0: i32) -> (i32, i32, i32) {
    %c0_i32 = arith.constant 0 : i32
    %c0_i32_0 = arith.constant 0 : i32
    %c0_i32_1 = arith.constant 0 : i32
    %c0_i32_2 = arith.constant 0 : i32
    return %c0_i32, %c0_i32_0, %c0_i32_1 : i32, i32, i32
  }
  func.func @transform_8(%arg0: i32) -> (i32, i32, i32) {
    %c0_i32 = arith.constant 0 : i32
    %c0_i32_0 = arith.constant 0 : i32
    %c0_i32_1 = arith.constant 0 : i32
    %c0_i32_2 = arith.constant 0 : i32
    return %c0_i32, %c0_i32_0, %c0_i32_1 : i32, i32, i32
  }
  func.func @transform_9(%arg0: i32) -> (i32, i32, i32) {
    %c0_i32 = arith.constant 0 : i32
    %c0_i32_0 = arith.constant 0 : i32
    %c0_i32_1 = arith.constant 0 : i32
    %c0_i32_2 = arith.constant 0 : i32
    return %c0_i32, %c0_i32_0, %c0_i32_1 : i32, i32, i32
  }
  func.func @transform_10(%arg0: i32) -> (i32, i32, i32) {
    %c0_i32 = arith.constant 0 : i32
    %c0_i32_0 = arith.constant 0 : i32
    %c0_i32_1 = arith.constant 0 : i32
    %c0_i32_2 = arith.constant 0 : i32
    return %c0_i32, %c0_i32_0, %c0_i32_1 : i32, i32, i32
  }
  func.func @transform_11(%arg0: i32) -> (i32, i32, i32) {
    %c0_i32 = arith.constant 0 : i32
    %c0_i32_0 = arith.constant 0 : i32
    %c0_i32_1 = arith.constant 0 : i32
    %c0_i32_2 = arith.constant 0 : i32
    return %c0_i32, %c0_i32_0, %c0_i32_1 : i32, i32, i32
  }
  func.func @transform_12(%arg0: i32) -> (i32, i32, i32) {
    %c0_i32 = arith.constant 0 : i32
    %c0_i32_0 = arith.constant 0 : i32
    %c0_i32_1 = arith.constant 0 : i32
    %c0_i32_2 = arith.constant 0 : i32
    return %c0_i32, %c0_i32_0, %c0_i32_1 : i32, i32, i32
  }
  func.func @transform_13(%arg0: i32) -> (i32, i32) {
    %c0_i32 = arith.constant 0 : i32
    %c0_i32_0 = arith.constant 0 : i32
    %c0_i32_1 = arith.constant 0 : i32
    return %c0_i32, %c0_i32_0 : i32, i32
  }
  func.func @transform_14(%arg0: i32) -> (i32, i32) {
    %c0_i32 = arith.constant 0 : i32
    %c0_i32_0 = arith.constant 0 : i32
    %c0_i32_1 = arith.constant 0 : i32
    return %c0_i32, %c0_i32_0 : i32, i32
  }
  func.func @transform_15(%arg0: i32) -> (i32, i32) {
    %c0_i32 = arith.constant 0 : i32
    %c0_i32_0 = arith.constant 0 : i32
    %c0_i32_1 = arith.constant 0 : i32
    return %c0_i32, %c0_i32_0 : i32, i32
  }
  func.func @transform_16(%arg0: i32) -> (i32, i32) {
    %c0_i32 = arith.constant 0 : i32
    %c0_i32_0 = arith.constant 0 : i32
    %c0_i32_1 = arith.constant 0 : i32
    return %c0_i32, %c0_i32_0 : i32, i32
  }
  func.func @transform_17(%arg0: i32) -> (i32, i32) {
    %c0_i32 = arith.constant 0 : i32
    %c0_i32_0 = arith.constant 0 : i32
    return %arg0, %c0_i32 : i32, i32
  }
}

</mosaic_0001>

<llo_original>
// kernel: tpu_custom_call.1
$region0: #{tpu_custom_call.1}
  #allocation0 [shape = 'u32[]', space=smem, size = 0x4, offset = 0x4, fixed_abs, tag = 'smem constant byte address 0x4 - core index']
  #allocation1 [shape = 'u32[144,128]{1,0:T(1,128)}', space=vmem, size = 0x12000, scoped, tag = 'internal scratch']
  %s0 = inlined_call_operand.vmem [shape: f32[64,7], index: 0, kind: input, shape index: {}]
  %s1 = inlined_call_operand.vmem [shape: f32[7,128], index: 1, kind: input, shape index: {}]
  %s2 = inlined_call_operand.vmem [shape: f32[1,128], index: 2, kind: input, shape index: {}]
  %s3 = inlined_call_operand.hbm [shape: f32[3,128,128], index: 3, kind: input, shape index: {}]
  %s4 = inlined_call_operand.vmem [shape: f32[3,1,128], index: 4, kind: input, shape index: {}]
  %s5 = inlined_call_operand.vmem [shape: f32[3,1,128], index: 5, kind: input, shape index: {}]
  %s6 = inlined_call_operand.vmem [shape: f32[3,1,128], index: 6, kind: input, shape index: {}]
  %s7 = inlined_call_operand.hbm [shape: f32[3,128,512], index: 7, kind: input, shape index: {}]
  %s8 = inlined_call_operand.vmem [shape: f32[3,1,512], index: 8, kind: input, shape index: {}]
  %s9 = inlined_call_operand.hbm [shape: f32[3,512,128], index: 9, kind: input, shape index: {}]
  %s10 = inlined_call_operand.vmem [shape: f32[3,1,128], index: 10, kind: input, shape index: {}]
  %s11 = inlined_call_operand.vmem [shape: f32[3,1,128], index: 11, kind: input, shape index: {}]
  %s12 = inlined_call_operand.vmem [shape: f32[3,1,128], index: 12, kind: input, shape index: {}]
  %s13 = inlined_call_operand.hbm [shape: f32[128,128], index: 13, kind: input, shape index: {}]
  %s14 = inlined_call_operand.vmem [shape: f32[1,128], index: 14, kind: input, shape index: {}]
  %s15 = inlined_call_operand.hbm [shape: f32[128,128], index: 15, kind: input, shape index: {}]
  %s16 = inlined_call_operand.vmem [shape: f32[1,128], index: 16, kind: input, shape index: {}]
  %s17 = inlined_call_operand.hbm [shape: f32[64,128], index: 17, kind: output, shape index: {}]
  %s18 = sld [smem:[#allocation0]]
  $region98: #{tpu_custom_call.1} parent=0
    _
  %s20 = ssub.s32 1, %s18
  %s21 = scalar_select 0, %s20, %s18
  $region1: #{tpu_custom_call.1} parent=0
    #allocation2 [shape = 'u8[196608]{0}', space=vmem, size = 0x30000, scoped, tag = 'input window, operand 3, single buffered']
    #allocation3 [shape = 's32[1]{0}', space=sflag, size = 0x4, scoped, tag = 'scoped memory for tpu_custom_call.1']
    #allocation4 [shape = 's32[1]{0}', space=sflag, size = 0x4, scoped, tag = 'scoped memory for tpu_custom_call.1']
    #allocation5 [shape = 'u8[786432]{0}', space=vmem, size = 0xc0000, scoped, tag = 'input window, operand 7, single buffered']
    #allocation6 [shape = 's32[1]{0}', space=sflag, size = 0x4, scoped, tag = 'scoped memory for tpu_custom_call.1']
    #allocation7 [shape = 'u8[786432]{0}', space=vmem, size = 0xc0000, scoped, tag = 'input window, operand 9, single buffered']
    #allocation8 [shape = 'u8[65536]{0}', space=vmem, size = 0x10000, scoped, tag = 'input window, operand 13, single buffered']
    #allocation9 [shape = 's32[1]{0}', space=sflag, size = 0x4, scoped, tag = 'scoped memory for tpu_custom_call.1']
    #allocation10 [shape = 'u8[65536]{0}', space=vmem, size = 0x10000, scoped, tag = 'input window, operand 15, single buffered']
    #allocation11 [shape = 'u8[32768]{0}', space=vmem, size = 0x8000, scoped, tag = 'output window, operand 0, single buffered']
    %22 = vsyncpa [#allocation3], 0
    %23 = vsyncpa [#allocation6], 0
    %24 = vsyncpa [#allocation9], 0
    %25 = vsyncpa [#allocation4], 0
    // Predicated region
    $region2: #{tpu_custom_call.1} parent=1 // pred_check
      _
    $region3: #{tpu_custom_call.1} parent=1 // pred_check_branch
      %27 = sbr.rel (0) target = $region5
    $region4: #{tpu_custom_call.1} parent=1 // pred_region
      _
    $region5: #{tpu_custom_call.1} parent=1 // pred_fallthru
      _
    // Predicated region
    $region6: #{tpu_custom_call.1} parent=1 // pred_check
      _
    $region7: #{tpu_custom_call.1} parent=1 // pred_check_branch
      %29 = sbr.rel (0) target = $region9
    $region8: #{tpu_custom_call.1} parent=1 // pred_region
      _
    $region9: #{tpu_custom_call.1} parent=1 // pred_fallthru
      _
    // Predicated region
    $region10: #{tpu_custom_call.1} parent=1 // pred_check
      _
    $region11: #{tpu_custom_call.1} parent=1 // pred_check_branch
      %31 = sbr.rel (0) target = $region13
    $region12: #{tpu_custom_call.1} parent=1 // pred_region
      _
    $region13: #{tpu_custom_call.1} parent=1 // pred_fallthru
      _
    // Predicated region
    $region14: #{tpu_custom_call.1} parent=1 // pred_check
      _
    $region15: #{tpu_custom_call.1} parent=1 // pred_check_branch
      %33 = sbr.rel (0) target = $region17
    $region16: #{tpu_custom_call.1} parent=1 // pred_region
      %s35 = ssub.s32 6144, 6144
      %36 = vsyncadd [#allocation3], %s35
      %s37 = sshll.u32 [#allocation2], 4
      %s38 = int_to_ptr.vmem [resolvable:$true] %s37
      %43 = dma.hbm_to_vmem [thread:$0]  %s3, 6144, %s38, [#allocation3], 128, 128, 8
    $region17: #{tpu_custom_call.1} parent=1 // pred_fallthru
      _
    // Predicated region
    $region18: #{tpu_custom_call.1} parent=1 // pred_check
      _
    $region19: #{tpu_custom_call.1} parent=1 // pred_check_branch
      %45 = sbr.rel (0) target = $region21
    $region20: #{tpu_custom_call.1} parent=1 // pred_region
      _
    $region21: #{tpu_custom_call.1} parent=1 // pred_fallthru
      _
    // Predicated region
    $region22: #{tpu_custom_call.1} parent=1 // pred_check
      _
    $region23: #{tpu_custom_call.1} parent=1 // pred_check_branch
      %47 = sbr.rel (0) target = $region25
    $region24: #{tpu_custom_call.1} parent=1 // pred_region
      _
    $region25: #{tpu_custom_call.1} parent=1 // pred_fallthru
      _
    // Predicated region
    $region26: #{tpu_custom_call.1} parent=1 // pred_check
      _
    $region27: #{tpu_custom_call.1} parent=1 // pred_check_branch
      %49 = sbr.rel (0) target = $region29
    $region28: #{tpu_custom_call.1} parent=1 // pred_region
      _
    $region29: #{tpu_custom_call.1} parent=1 // pred_fallthru
      _
    // Predicated region
    $region30: #{tpu_custom_call.1} parent=1 // pred_check
      _
    $region31: #{tpu_custom_call.1} parent=1 // pred_check_branch
      %51 = sbr.rel (0) target = $region33
    $region32: #{tpu_custom_call.1} parent=1 // pred_region
      %s53 = ssub.s32 24576, 24576
      %54 = vsyncadd [#allocation6], %s53
      %s55 = sshll.u32 [#allocation5], 4
      %s56 = int_to_ptr.vmem [resolvable:$true] %s55
      %61 = dma.hbm_to_vmem [thread:$0]  %s7, 24576, %s56, [#allocation6], 512, 512, 32
    $region33: #{tpu_custom_call.1} parent=1 // pred_fallthru
      _
    // Predicated region
    $region34: #{tpu_custom_call.1} parent=1 // pred_check
      _
    $region35: #{tpu_custom_call.1} parent=1 // pred_check_branch
      %63 = sbr.rel (0) target = $region37
    $region36: #{tpu_custom_call.1} parent=1 // pred_region
      _
    $region37: #{tpu_custom_call.1} parent=1 // pred_fallthru
      _
    // Predicated region
    $region38: #{tpu_custom_call.1} parent=1 // pred_check
      _
    $region39: #{tpu_custom_call.1} parent=1 // pred_check_branch
      %65 = sbr.rel (0) target = $region41
    $region40: #{tpu_custom_call.1} parent=1 // pred_region
      %s67 = ssub.s32 24576, 24576
      %68 = vsyncadd [#allocation6], %s67
      %s69 = sshll.u32 [#allocation7], 4
      %s70 = int_to_ptr.vmem [resolvable:$true] %s69
      %75 = dma.hbm_to_vmem [thread:$0]  %s9, 24576, %s70, [#allocation6], 128, 128, 8
    $region41: #{tpu_custom_call.1} parent=1 // pred_fallthru
      _
    // Predicated region
    $region42: #{tpu_custom_call.1} parent=1 // pred_check
      _
    $region43: #{tpu_custom_call.1} parent=1 // pred_check_branch
      %77 = sbr.rel (0) target = $region45
    $region44: #{tpu_custom_call.1} parent=1 // pred_region
      _
    $region45: #{tpu_custom_call.1} parent=1 // pred_fallthru
      _
    // Predicated region
    $region46: #{tpu_custom_call.1} parent=1 // pred_check
      _
    $region47: #{tpu_custom_call.1} parent=1 // pred_check_branch
      %79 = sbr.rel (0) target = $region49
    $region48: #{tpu_custom_call.1} parent=1 // pred_region
      _
    $region49: #{tpu_custom_call.1} parent=1 // pred_fallthru
      _
    // Predicated region
    $region50: #{tpu_custom_call.1} parent=1 // pred_check
      _
    $region51: #{tpu_custom_call.1} parent=1 // pred_check_branch
      %81 = sbr.rel (0) target = $region53
    $region52: #{tpu_custom_call.1} parent=1 // pred_region
      _
    $region53: #{tpu_custom_call.1} parent=1 // pred_fallthru
      _
    // Predicated region
    $region54: #{tpu_custom_call.1} parent=1 // pred_check
      _
    $region55: #{tpu_custom_call.1} parent=1 // pred_check_branch
      %83 = sbr.rel (0) target = $region57
    $region56: #{tpu_custom_call.1} parent=1 // pred_region
      %s85 = ssub.s32 2048, 2048
      %86 = vsyncadd [#allocation9], %s85
      %s87 = sshll.u32 [#allocation8], 4
      %s88 = int_to_ptr.vmem [resolvable:$true] %s87
      %93 = dma.hbm_to_vmem [thread:$0]  %s13, 2048, %s88, [#allocation9], 128, 128, 8
    $region57: #{tpu_custom_call.1} parent=1 // pred_fallthru
      _
    // Predicated region
    $region58: #{tpu_custom_call.1} parent=1 // pred_check
      _
    $region59: #{tpu_custom_call.1} parent=1 // pred_check_branch
      %95 = sbr.rel (0) target = $region61
    $region60: #{tpu_custom_call.1} parent=1 // pred_region
      _
    $region61: #{tpu_custom_call.1} parent=1 // pred_fallthru
      _
    // Predicated region
    $region62: #{tpu_custom_call.1} parent=1 // pred_check
      _
    $region63: #{tpu_custom_call.1} parent=1 // pred_check_branch
      %97 = sbr.rel (0) target = $region65
    $region64: #{tpu_custom_call.1} parent=1 // pred_region
      %s99 = ssub.s32 2048, 2048
      %100 = vsyncadd [#allocation9], %s99
      %s101 = sshll.u32 [#allocation10], 4
      %s102 = int_to_ptr.vmem [resolvable:$true] %s101
      %107 = dma.hbm_to_vmem [thread:$0]  %s15, 2048, %s102, [#allocation9], 128, 128, 8
    $region65: #{tpu_custom_call.1} parent=1 // pred_fallthru
      _
    // Predicated region
    $region66: #{tpu_custom_call.1} parent=1 // pred_check
      _
    $region67: #{tpu_custom_call.1} parent=1 // pred_check_branch
      %109 = sbr.rel (0) target = $region69
    $region68: #{tpu_custom_call.1} parent=1 // pred_region
      _
    $region69: #{tpu_custom_call.1} parent=1 // pred_fallthru
      _
    // Predicated region
    $region70: #{tpu_custom_call.1} parent=1 // pred_check
      _
    $region71: #{tpu_custom_call.1} parent=1 // pred_check_branch
      %111 = sbr.rel (0) target = $region73
    $region72: #{tpu_custom_call.1} parent=1 // pred_region
      %112 = dma.done [#allocation3], 6144
    $region73: #{tpu_custom_call.1} parent=1 // pred_fallthru
      _
    // Predicated region
    $region74: #{tpu_custom_call.1} parent=1 // pred_check
      _
    $region75: #{tpu_custom_call.1} parent=1 // pred_check_branch
      %114 = sbr.rel (0) target = $region77
    $region76: #{tpu_custom_call.1} parent=1 // pred_region
      %115 = dma.done [#allocation6], 24576
    $region77: #{tpu_custom_call.1} parent=1 // pred_fallthru
      _
    // Predicated region
    $region78: #{tpu_custom_call.1} parent=1 // pred_check
      _
    $region79: #{tpu_custom_call.1} parent=1 // pred_check_branch
      %117 = sbr.rel (0) target = $region81
    $region80: #{tpu_custom_call.1} parent=1 // pred_region
      %118 = dma.done [#allocation6], 24576
    $region81: #{tpu_custom_call.1} parent=1 // pred_fallthru
      _
    // Predicated region
    $region82: #{tpu_custom_call.1} parent=1 // pred_check
      _
    $region83: #{tpu_custom_call.1} parent=1 // pred_check_branch
      %120 = sbr.rel (0) target = $region85
    $region84: #{tpu_custom_call.1} parent=1 // pred_region
      %121 = dma.done [#allocation9], 2048
    $region85: #{tpu_custom_call.1} parent=1 // pred_fallthru
      _
    // Predicated region
    $region86: #{tpu_custom_call.1} parent=1 // pred_check
      _
    $region87: #{tpu_custom_call.1} parent=1 // pred_check_branch
      %123 = sbr.rel (0) target = $region89
    $region88: #{tpu_custom_call.1} parent=1 // pred_region
      %124 = dma.done [#allocation9], 2048
    $region89: #{tpu_custom_call.1} parent=1 // pred_fallthru
      _
    %v125 = vld [vmem:[%s0] sm:$0xff]
    %v126 = vld [vmem:[%s0 + $0x8] sm:$0xff]
    %v127 = vld [vmem:[%s0 + $0x10] sm:$0xff]
    %v128 = vld [vmem:[%s0 + $0x18] sm:$0xff]
    %v129 = vld [vmem:[%s0 + $0x20] sm:$0xff]
    %v130 = vld [vmem:[%s0 + $0x28] sm:$0xff]
    %v131 = vld [vmem:[%s0 + $0x30] sm:$0xff]
    %v132 = vld [vmem:[%s0 + $0x38] sm:$0xff]
    %v133 = vld [vmem:[%s1] sm:$0x7f]
    %v134 = vld [vmem:[%s2] sm:$0x1]
    %v136 = vlaneseq
    %v137 = vshrl.u32 %v136, 7
    %v138 = vsub.s32 0, %v137
    %v139 = vrot.slane %v134, %v138
    %vm141 = vcmask 56320
    %v143 = vsel %vm141, %v125, 0
    %v146 = vsel %vm141, %v126, 0
    %v149 = vsel %vm141, %v127, 0
    %v152 = vsel %vm141, %v128, 0
    %v155 = vsel %vm141, %v129, 0
    %v158 = vsel %vm141, %v130, 0
    %v161 = vsel %vm141, %v131, 0
    %v164 = vsel %vm141, %v132, 0
    %vm166 = vcmask 1046528
    %v168 = vsel %vm166, %v133, 0
    %170 = vmatprep.subr.mxu0 0.0
    %171 = vmatpush1.msra.mxu0 0.0
    %172 = vmatprep.subr.mxu0 0.0
    %173 = vmatpush1.msra.mxu0 0.0
    %174 = vmatprep.subr.mxu0 0.0
    %175 = vmatpush1.msra.mxu0 0.0
    %176 = vmatprep.subr.mxu0 0.0
    %177 = vmatpush1.msra.mxu0 0.0
    %178 = vmatprep.subr.mxu0 0.0
    %179 = vmatpush1.msra.mxu0 0.0
    %180 = vmatprep.subr.mxu0 0.0
    %181 = vmatpush1.msra.mxu0 0.0
    %182 = vmatprep.subr.mxu0 0.0
    %183 = vmatpush1.msra.mxu0 0.0
    %184 = vmatprep.subr.mxu0 0.0
    %185 = vmatpush1.msra.mxu0 0.0
    %186 = vmatprep.subr.mxu0 0.0
    %187 = vmatpush1.msra.mxu0 0.0
    %188 = vmatprep.subr.mxu0 0.0
    %189 = vmatpush1.msra.mxu0 0.0
    %190 = vmatprep.subr.mxu0 0.0
    %191 = vmatpush1.msra.mxu0 0.0
    %192 = vmatprep.subr.mxu0 0.0
    %193 = vmatpush1.msra.mxu0 0.0
    %194 = vmatprep.subr.mxu0 0.0
    %195 = vmatpush1.msra.mxu0 0.0
    %196 = vmatprep.subr.mxu0 0.0
    %197 = vmatpush1.msra.mxu0 0.0
    %198 = vmatprep.subr.mxu0 0.0
    %199 = vmatpush1.msra.mxu0 0.0
    %200 = vmatprep.subr.mxu0 0.0
    %201 = vmatpush1.msra.mxu0 %v168
    %202 = vmatprep.subr.mxu0 0.0
    %203 = vmatpush2.msra.mxu0 0.0
    %204 = vmatprep.subr.mxu0 0.0
    %205 = vmatpush2.msra.mxu0 0.0
    %206 = vmatprep.subr.mxu0 0.0
    %207 = vmatpush2.msra.mxu0 0.0
    %208 = vmatprep.subr.mxu0 0.0
    %209 = vmatpush2.msra.mxu0 0.0
    %210 = vmatprep.subr.mxu0 0.0
    %211 = vmatpush2.msra.mxu0 0.0
    %212 = vmatprep.subr.mxu0 0.0
    %213 = vmatpush2.msra.mxu0 0.0
    %214 = vmatprep.subr.mxu0 0.0
    %215 = vmatpush2.msra.mxu0 0.0
    %216 = vmatprep.subr.mxu0 0.0
    %217 = vmatpush2.msra.mxu0 0.0
    %218 = vmatprep.subr.mxu0 0.0
    %219 = vmatpush2.msra.mxu0 0.0
    %220 = vmatprep.subr.mxu0 0.0
    %221 = vmatpush2.msra.mxu0 0.0
    %222 = vmatprep.subr.mxu0 0.0
    %223 = vmatpush2.msra.mxu0 0.0
    %224 = vmatprep.subr.mxu0 0.0
    %225 = vmatpush2.msra.mxu0 0.0
    %226 = vmatprep.subr.mxu0 0.0
    %227 = vmatpush2.msra.mxu0 0.0
    %228 = vmatprep.subr.mxu0 0.0
    %229 = vmatpush2.msra.mxu0 0.0
    %230 = vmatprep.subr.mxu0 0.0
    %231 = vmatpush2.msra.mxu0 0.0
    %232 = vmatprep.subr.mxu0 0.0
    %233 = vmatpush2.msra.mxu0 0.0
    %234 = vmatprep.mubr.f32.mxu0 0.0
    %235 = vmatmul.mubr.f32.gmra.mxu0 %v143
    %v236 = vpop.f32.mrf.mxu0
    %v237 = vadd.f32 %v139, %v236
    %v238 = vpop.f32.mrf.mxu0
    %239 = vmatprep.mubr.f32.mxu0 0.0
    %240 = vmatmul.mubr.f32.gmra.mxu0 %v146
    %v241 = vpop.f32.mrf.mxu0
    %v242 = vadd.f32 %v139, %v241
    %v243 = vpop.f32.mrf.mxu0
    %244 = vmatprep.mubr.f32.mxu0 0.0
    %245 = vmatmul.mubr.f32.gmra.mxu0 %v149
    %v246 = vpop.f32.mrf.mxu0
    %v247 = vadd.f32 %v139, %v246
    %v248 = vpop.f32.mrf.mxu0
    %249 = vmatprep.mubr.f32.mxu0 0.0
    %250 = vmatmul.mubr.f32.gmra.mxu0 %v152
    %v251 = vpop.f32.mrf.mxu0
    %v252 = vadd.f32 %v139, %v251
    %v253 = vpop.f32.mrf.mxu0
    %254 = vmatprep.mubr.f32.mxu0 0.0
    %255 = vmatmul.mubr.f32.gmra.mxu0 %v155
    %v256 = vpop.f32.mrf.mxu0
    %v257 = vadd.f32 %v139, %v256
    %v258 = vpop.f32.mrf.mxu0
    %259 = vmatprep.mubr.f32.mxu0 0.0
    %260 = vmatmul.mubr.f32.gmra.mxu0 %v158
    %v261 = vpop.f32.mrf.mxu0
    %v262 = vadd.f32 %v139, %v261
    %v263 = vpop.f32.mrf.mxu0
    %264 = vmatprep.mubr.f32.mxu0 0.0
    %265 = vmatmul.mubr.f32.gmra.mxu0 %v161
    %v266 = vpop.f32.mrf.mxu0
    %v267 = vadd.f32 %v139, %v266
    %v268 = vpop.f32.mrf.mxu0
    %269 = vmatprep.mubr.f32.mxu0 0.0
    %270 = vmatmul.mubr.f32.gmra.mxu0 %v164
    %v271 = vpop.f32.mrf.mxu0
    %v272 = vadd.f32 %v139, %v271
    %v273 = vpop.f32.mrf.mxu0
    %274 = vdwg.mxu0
    %v275 = vld [vmem:[#allocation2] sm:$0xff]
    %v276 = vld [vmem:[#allocation2 + $0x8] sm:$0xff]
    %v277 = vld [vmem:[#allocation2 + $0x10] sm:$0xff]
    %v278 = vld [vmem:[#allocation2 + $0x18] sm:$0xff]
    %v279 = vld [vmem:[#allocation2 + $0x20] sm:$0xff]
    %v280 = vld [vmem:[#allocation2 + $0x28] sm:$0xff]
    %v281 = vld [vmem:[#allocation2 + $0x30] sm:$0xff]
    %v282 = vld [vmem:[#allocation2 + $0x38] sm:$0xff]
    %v283 = vld [vmem:[#allocation2 + $0x40] sm:$0xff]
    %v284 = vld [vmem:[#allocation2 + $0x48] sm:$0xff]
    %v285 = vld [vmem:[#allocation2 + $0x50] sm:$0xff]
    %v286 = vld [vmem:[#allocation2 + $0x58] sm:$0xff]
    %v287 = vld [vmem:[#allocation2 + $0x60] sm:$0xff]
    %v288 = vld [vmem:[#allocation2 + $0x68] sm:$0xff]
    %v289 = vld [vmem:[#allocation2 + $0x70] sm:$0xff]
    %v290 = vld [vmem:[#allocation2 + $0x78] sm:$0xff]
    %v291 = vld [vmem:[%s4] sm:$0x1]
    %v293 = vlaneseq
    %v294 = vshrl.u32 %v293, 7
    %v295 = vsub.s32 0, %v294
    %v296 = vrot.slane %v291, %v295
    %298 = vmatprep.subr.mxu0 0.0
    %299 = vmatpush1.msra.mxu0 %v290
    %300 = vmatprep.subr.mxu0 0.0
    %301 = vmatpush1.msra.mxu0 %v289
    %302 = vmatprep.subr.mxu0 0.0
    %303 = vmatpush1.msra.mxu0 %v288
    %304 = vmatprep.subr.mxu0 0.0
    %305 = vmatpush1.msra.mxu0 %v287
    %306 = vmatprep.subr.mxu0 0.0
    %307 = vmatpush1.msra.mxu0 %v286
    %308 = vmatprep.subr.mxu0 0.0
    %309 = vmatpush1.msra.mxu0 %v285
    %310 = vmatprep.subr.mxu0 0.0
    %311 = vmatpush1.msra.mxu0 %v284
    %312 = vmatprep.subr.mxu0 0.0
    %313 = vmatpush1.msra.mxu0 %v283
    %314 = vmatprep.subr.mxu0 0.0
    %315 = vmatpush1.msra.mxu0 %v282
    %316 = vmatprep.subr.mxu0 0.0
    %317 = vmatpush1.msra.mxu0 %v281
    %318 = vmatprep.subr.mxu0 0.0
    %319 = vmatpush1.msra.mxu0 %v280
    %320 = vmatprep.subr.mxu0 0.0
    %321 = vmatpush1.msra.mxu0 %v279
    %322 = vmatprep.subr.mxu0 0.0
    %323 = vmatpush1.msra.mxu0 %v278
    %324 = vmatprep.subr.mxu0 0.0
    %325 = vmatpush1.msra.mxu0 %v277
    %326 = vmatprep.subr.mxu0 0.0
    %327 = vmatpush1.msra.mxu0 %v276
    %328 = vmatprep.subr.mxu0 0.0
    %329 = vmatpush1.msra.mxu0 %v275
    %330 = vmatprep.subr.mxu0 0.0
    %331 = vmatpush2.msra.mxu0 0.0
    %332 = vmatprep.subr.mxu0 0.0
    %333 = vmatpush2.msra.mxu0 0.0
    %334 = vmatprep.subr.mxu0 0.0
    %335 = vmatpush2.msra.mxu0 0.0
    %336 = vmatprep.subr.mxu0 0.0
    %337 = vmatpush2.msra.mxu0 0.0
    %338 = vmatprep.subr.mxu0 0.0
    %339 = vmatpush2.msra.mxu0 0.0
    %340 = vmatprep.subr.mxu0 0.0
    %341 = vmatpush2.msra.mxu0 0.0
    %342 = vmatprep.subr.mxu0 0.0
    %343 = vmatpush2.msra.mxu0 0.0
    %344 = vmatprep.subr.mxu0 0.0
    %345 = vmatpush2.msra.mxu0 0.0
    %346 = vmatprep.subr.mxu0 0.0
    %347 = vmatpush2.msra.mxu0 0.0
    %348 = vmatprep.subr.mxu0 0.0
    %349 = vmatpush2.msra.mxu0 0.0
    %350 = vmatprep.subr.mxu0 0.0
    %351 = vmatpush2.msra.mxu0 0.0
    %352 = vmatprep.subr.mxu0 0.0
    %353 = vmatpush2.msra.mxu0 0.0
    %354 = vmatprep.subr.mxu0 0.0
    %355 = vmatpush2.msra.mxu0 0.0
    %356 = vmatprep.subr.mxu0 0.0
    %357 = vmatpush2.msra.mxu0 0.0
    %358 = vmatprep.subr.mxu0 0.0
    %359 = vmatpush2.msra.mxu0 0.0
    %360 = vmatprep.subr.mxu0 0.0
    %361 = vmatpush2.msra.mxu0 0.0
    %362 = vmatprep.mubr.f32.mxu0 0.0
    %363 = vmatmul.mubr.f32.gmra.mxu0 %v237
    %v364 = vpop.f32.mrf.mxu0
    %v365 = vadd.f32 %v296, %v364
    %v366 = vpop.f32.mrf.mxu0
    %367 = vmatprep.mubr.f32.mxu0 0.0
    %368 = vmatmul.mubr.f32.gmra.mxu0 %v242
    %v369 = vpop.f32.mrf.mxu0
    %v370 = vadd.f32 %v296, %v369
    %v371 = vpop.f32.mrf.mxu0
    %372 = vmatprep.mubr.f32.mxu0 0.0
    %373 = vmatmul.mubr.f32.gmra.mxu0 %v247
    %v374 = vpop.f32.mrf.mxu0
    %v375 = vadd.f32 %v296, %v374
    %v376 = vpop.f32.mrf.mxu0
    %377 = vmatprep.mubr.f32.mxu0 0.0
    %378 = vmatmul.mubr.f32.gmra.mxu0 %v252
    %v379 = vpop.f32.mrf.mxu0
    %v380 = vadd.f32 %v296, %v379
    %v381 = vpop.f32.mrf.mxu0
    %382 = vmatprep.mubr.f32.mxu0 0.0
    %383 = vmatmul.mubr.f32.gmra.mxu0 %v257
    %v384 = vpop.f32.mrf.mxu0
    %v385 = vadd.f32 %v296, %v384
    %v386 = vpop.f32.mrf.mxu0
    %387 = vmatprep.mubr.f32.mxu0 0.0
    %388 = vmatmul.mubr.f32.gmra.mxu0 %v262
    %v389 = vpop.f32.mrf.mxu0
    %v390 = vadd.f32 %v296, %v389
    %v391 = vpop.f32.mrf.mxu0
    %392 = vmatprep.mubr.f32.mxu0 0.0
    %393 = vmatmul.mubr.f32.gmra.mxu0 %v267
    %v394 = vpop.f32.mrf.mxu0
    %v395 = vadd.f32 %v296, %v394
    %v396 = vpop.f32.mrf.mxu0
    %397 = vmatprep.mubr.f32.mxu0 0.0
    %398 = vmatmul.mubr.f32.gmra.mxu0 %v272
    %v399 = vpop.f32.mrf.mxu0
    %v400 = vadd.f32 %v296, %v399
    %v401 = vpop.f32.mrf.mxu0
    %402 = vdwg.mxu0
    %v403 = vadd.f32 %v237, %v365
    %v404 = vadd.f32 %v242, %v370
    %v405 = vadd.f32 %v247, %v375
    %v406 = vadd.f32 %v252, %v380
    %v407 = vadd.f32 %v257, %v385
    %v408 = vadd.f32 %v262, %v390
    %v409 = vadd.f32 %v267, %v395
    %v410 = vadd.f32 %v272, %v400
    %v411 = vld [vmem:[%s5] sm:$0x1]
    %v412 = vld [vmem:[%s6] sm:$0x1]
    %413 = vadd.xlane.f32.xlu0 %v403
    %v414 = vpop.xlane.xlu0 %413
    %415 = vadd.xlane.f32.xlu0 %v404
    %v416 = vpop.xlane.xlu0 %415
    %417 = vadd.xlane.f32.xlu0 %v405
    %v418 = vpop.xlane.xlu0 %417
    %419 = vadd.xlane.f32.xlu0 %v406
    %v420 = vpop.xlane.xlu0 %419
    %421 = vadd.xlane.f32.xlu0 %v407
    %v422 = vpop.xlane.xlu0 %421
    %423 = vadd.xlane.f32.xlu0 %v408
    %v424 = vpop.xlane.xlu0 %423
    %425 = vadd.xlane.f32.xlu0 %v409
    %v426 = vpop.xlane.xlu0 %425
    %427 = vadd.xlane.f32.xlu0 %v410
    %v428 = vpop.xlane.xlu0 %427
    %v429 = vrcp.pop 128.0
    %v430 = vmul.f32 %v414, %v429
    %v431 = vmul.f32 %v416, %v429
    %v432 = vmul.f32 %v418, %v429
    %v433 = vmul.f32 %v420, %v429
    %v434 = vmul.f32 %v422, %v429
    %v435 = vmul.f32 %v424, %v429
    %v436 = vmul.f32 %v426, %v429
    %v437 = vmul.f32 %v428, %v429
    %v438 = vsub.f32 %v403, %v430
    %v439 = vsub.f32 %v404, %v431
    %v440 = vsub.f32 %v405, %v432
    %v441 = vsub.f32 %v406, %v433
    %v442 = vsub.f32 %v407, %v434
    %v443 = vsub.f32 %v408, %v435
    %v444 = vsub.f32 %v409, %v436
    %v445 = vsub.f32 %v410, %v437
    %v446 = vmul.f32 %v438, %v438
    %v447 = vmul.f32 %v439, %v439
    %v448 = vmul.f32 %v440, %v440
    %v449 = vmul.f32 %v441, %v441
    %v450 = vmul.f32 %v442, %v442
    %v451 = vmul.f32 %v443, %v443
    %v452 = vmul.f32 %v444, %v444
    %v453 = vmul.f32 %v445, %v445
    %454 = vadd.xlane.f32.xlu0 %v446
    %v455 = vpop.xlane.xlu0 %454
    %456 = vadd.xlane.f32.xlu0 %v447
    %v457 = vpop.xlane.xlu0 %456
    %458 = vadd.xlane.f32.xlu0 %v448
    %v459 = vpop.xlane.xlu0 %458
    %460 = vadd.xlane.f32.xlu0 %v449
    %v461 = vpop.xlane.xlu0 %460
    %462 = vadd.xlane.f32.xlu0 %v450
    %v463 = vpop.xlane.xlu0 %462
    %464 = vadd.xlane.f32.xlu0 %v451
    %v465 = vpop.xlane.xlu0 %464
    %466 = vadd.xlane.f32.xlu0 %v452
    %v467 = vpop.xlane.xlu0 %466
    %468 = vadd.xlane.f32.xlu0 %v453
    %v469 = vpop.xlane.xlu0 %468
    %v470 = vmul.f32 %v455, %v429
    %v471 = vmul.f32 %v457, %v429
    %v472 = vmul.f32 %v459, %v429
    %v473 = vmul.f32 %v461, %v429
    %v474 = vmul.f32 %v463, %v429
    %v475 = vmul.f32 %v465, %v429
    %v476 = vmul.f32 %v467, %v429
    %v477 = vmul.f32 %v469, %v429
    %v478 = vadd.f32 %v470, 1e-05
    %v479 = vadd.f32 %v471, 1e-05
    %v480 = vadd.f32 %v472, 1e-05
    %v481 = vadd.f32 %v473, 1e-05
    %v482 = vadd.f32 %v474, 1e-05
    %v483 = vadd.f32 %v475, 1e-05
    %v484 = vadd.f32 %v476, 1e-05
    %v485 = vadd.f32 %v477, 1e-05
    %v486 = vrsqrt.pop %v478
    %v487 = vrsqrt.pop %v479
    %v488 = vrsqrt.pop %v480
    %v489 = vrsqrt.pop %v481
    %v490 = vrsqrt.pop %v482
    %v491 = vrsqrt.pop %v483
    %v492 = vrsqrt.pop %v484
    %v493 = vrsqrt.pop %v485
    %v494 = vmul.f32 %v438, %v486
    %v495 = vmul.f32 %v439, %v487
    %v496 = vmul.f32 %v440, %v488
    %v497 = vmul.f32 %v441, %v489
    %v498 = vmul.f32 %v442, %v490
    %v499 = vmul.f32 %v443, %v491
    %v500 = vmul.f32 %v444, %v492
    %v501 = vmul.f32 %v445, %v493
    %v503 = vlaneseq
    %v504 = vshrl.u32 %v503, 7
    %v505 = vsub.s32 0, %v504
    %v506 = vrot.slane %v411, %v505
    %v508 = vmul.f32 %v494, %v506
    %v509 = vmul.f32 %v495, %v506
    %v510 = vmul.f32 %v496, %v506
    %v511 = vmul.f32 %v497, %v506
    %v512 = vmul.f32 %v498, %v506
    %v513 = vmul.f32 %v499, %v506
    %v514 = vmul.f32 %v500, %v506
    %v515 = vmul.f32 %v501, %v506
    %v517 = vlaneseq
    %v518 = vshrl.u32 %v517, 7
    %v519 = vsub.s32 0, %v518
    %v520 = vrot.slane %v412, %v519
    %v522 = vadd.f32 %v508, %v520
    %v523 = vadd.f32 %v509, %v520
    %v524 = vadd.f32 %v510, %v520
    %v525 = vadd.f32 %v511, %v520
    %v526 = vadd.f32 %v512, %v520
    %v527 = vadd.f32 %v513, %v520
    %v528 = vadd.f32 %v514, %v520
    %v529 = vadd.f32 %v515, %v520
    %v530 = vld [vmem:[#allocation5] sm:$0xff]
    %v531 = vld [vmem:[#allocation5 + $0x8] sm:$0xff]
    %v532 = vld [vmem:[#allocation5 + $0x10] sm:$0xff]
    %v533 = vld [vmem:[#allocation5 + $0x18] sm:$0xff]
    %v534 = vld [vmem:[#allocation5 + $0x20] sm:$0xff]
    %v535 = vld [vmem:[#allocation5 + $0x28] sm:$0xff]
    %v536 = vld [vmem:[#allocation5 + $0x30] sm:$0xff]
    %v537 = vld [vmem:[#allocation5 + $0x38] sm:$0xff]
    %v538 = vld [vmem:[#allocation5 + $0x40] sm:$0xff]
    %v539 = vld [vmem:[#allocation5 + $0x48] sm:$0xff]
    %v540 = vld [vmem:[#allocation5 + $0x50] sm:$0xff]
    %v541 = vld [vmem:[#allocation5 + $0x58] sm:$0xff]
    %v542 = vld [vmem:[#allocation5 + $0x60] sm:$0xff]
    %v543 = vld [vmem:[#allocation5 + $0x68] sm:$0xff]
    %v544 = vld [vmem:[#allocation5 + $0x70] sm:$0xff]
    %v545 = vld [vmem:[#allocation5 + $0x78] sm:$0xff]
    %v546 = vld [vmem:[#allocation5 + $0x80] sm:$0xff]
    %v547 = vld [vmem:[#allocation5 + $0x88] sm:$0xff]
    %v548 = vld [vmem:[#allocation5 + $0x90] sm:$0xff]
    %v549 = vld [vmem:[#allocation5 + $0x98] sm:$0xff]
    %v550 = vld [vmem:[#allocation5 + $0xa0] sm:$0xff]
    %v551 = vld [vmem:[#allocation5 + $0xa8] sm:$0xff]
    %v552 = vld [vmem:[#allocation5 + $0xb0] sm:$0xff]
    %v553 = vld [vmem:[#allocation5 + $0xb8] sm:$0xff]
    %v554 = vld [vmem:[#allocation5 + $0xc0] sm:$0xff]
    %v555 = vld [vmem:[#allocation5 + $0xc8] sm:$0xff]
    %v556 = vld [vmem:[#allocation5 + $0xd0] sm:$0xff]
    %v557 = vld [vmem:[#allocation5 + $0xd8] sm:$0xff]
    %v558 = vld [vmem:[#allocation5 + $0xe0] sm:$0xff]
    %v559 = vld [vmem:[#allocation5 + $0xe8] sm:$0xff]
    %v560 = vld [vmem:[#allocation5 + $0xf0] sm:$0xff]
    %v561 = vld [vmem:[#allocation5 + $0xf8] sm:$0xff]
    %v562 = vld [vmem:[#allocation5 + $0x100] sm:$0xff]
    %v563 = vld [vmem:[#allocation5 + $0x108] sm:$0xff]
    %v564 = vld [vmem:[#allocation5 + $0x110] sm:$0xff]
    %v565 = vld [vmem:[#allocation5 + $0x118] sm:$0xff]
    %v566 = vld [vmem:[#allocation5 + $0x120] sm:$0xff]
    %v567 = vld [vmem:[#allocation5 + $0x128] sm:$0xff]
    %v568 = vld [vmem:[#allocation5 + $0x130] sm:$0xff]
    %v569 = vld [vmem:[#allocation5 + $0x138] sm:$0xff]
    %v570 = vld [vmem:[#allocation5 + $0x140] sm:$0xff]
    %v571 = vld [vmem:[#allocation5 + $0x148] sm:$0xff]
    %v572 = vld [vmem:[#allocation5 + $0x150] sm:$0xff]
    %v573 = vld [vmem:[#allocation5 + $0x158] sm:$0xff]
    %v574 = vld [vmem:[#allocation5 + $0x160] sm:$0xff]
    %v575 = vld [vmem:[#allocation5 + $0x168] sm:$0xff]
    %v576 = vld [vmem:[#allocation5 + $0x170] sm:$0xff]
    %v577 = vld [vmem:[#allocation5 + $0x178] sm:$0xff]
    %v578 = vld [vmem:[#allocation5 + $0x180] sm:$0xff]
    %v579 = vld [vmem:[#allocation5 + $0x188] sm:$0xff]
    %v580 = vld [vmem:[#allocation5 + $0x190] sm:$0xff]
    %v581 = vld [vmem:[#allocation5 + $0x198] sm:$0xff]
    %v582 = vld [vmem:[#allocation5 + $0x1a0] sm:$0xff]
    %v583 = vld [vmem:[#allocation5 + $0x1a8] sm:$0xff]
    %v584 = vld [vmem:[#allocation5 + $0x1b0] sm:$0xff]
    %v585 = vld [vmem:[#allocation5 + $0x1b8] sm:$0xff]
    %v586 = vld [vmem:[#allocation5 + $0x1c0] sm:$0xff]
    %v587 = vld [vmem:[#allocation5 + $0x1c8] sm:$0xff]
    %v588 = vld [vmem:[#allocation5 + $0x1d0] sm:$0xff]
    %v589 = vld [vmem:[#allocation5 + $0x1d8] sm:$0xff]
    %v590 = vld [vmem:[#allocation5 + $0x1e0] sm:$0xff]
    %v591 = vld [vmem:[#allocation5 + $0x1e8] sm:$0xff]
    %v592 = vld [vmem:[#allocation5 + $0x1f0] sm:$0xff]
    %v593 = vld [vmem:[#allocation5 + $0x1f8] sm:$0xff]
    %v594 = vld [vmem:[%s8] sm:$0xf]
    %v596 = vlaneseq
    %v597 = vshrl.u32 %v596, 7
    %v598 = vsub.s32 0, %v597
    %v599 = vrot.slane %v594, %v598
    %v600 = vlaneseq
    %v601 = vshrl.u32 %v600, 7
    %v602 = vsub.s32 1, %v601
    %v603 = vrot.slane %v594, %v602
    %v604 = vlaneseq
    %v605 = vshrl.u32 %v604, 7
    %v606 = vsub.s32 2, %v605
    %v607 = vrot.slane %v594, %v606
    %v608 = vlaneseq
    %v609 = vshrl.u32 %v608, 7
    %v610 = vsub.s32 3, %v609
    %v611 = vrot.slane %v594, %v610
    %616 = vmatprep.subr.mxu0 %v591
    %617 = vmatpush1.msra.mxu0 %v590
    %618 = vmatprep.subr.mxu0 %v587
    %619 = vmatpush1.msra.mxu0 %v586
    %620 = vmatprep.subr.mxu0 %v583
    %621 = vmatpush1.msra.mxu0 %v582
    %622 = vmatprep.subr.mxu0 %v579
    %623 = vmatpush1.msra.mxu0 %v578
    %624 = vmatprep.subr.mxu0 %v575
    %625 = vmatpush1.msra.mxu0 %v574
    %626 = vmatprep.subr.mxu0 %v571
    %627 = vmatpush1.msra.mxu0 %v570
    %628 = vmatprep.subr.mxu0 %v567
    %629 = vmatpush1.msra.mxu0 %v566
    %630 = vmatprep.subr.mxu0 %v563
    %631 = vmatpush1.msra.mxu0 %v562
    %632 = vmatprep.subr.mxu0 %v559
    %633 = vmatpush1.msra.mxu0 %v558
    %634 = vmatprep.subr.mxu0 %v555
    %635 = vmatpush1.msra.mxu0 %v554
    %636 = vmatprep.subr.mxu0 %v551
    %637 = vmatpush1.msra.mxu0 %v550
    %638 = vmatprep.subr.mxu0 %v547
    %639 = vmatpush1.msra.mxu0 %v546
    %640 = vmatprep.subr.mxu0 %v543
    %641 = vmatpush1.msra.mxu0 %v542
    %642 = vmatprep.subr.mxu0 %v539
    %643 = vmatpush1.msra.mxu0 %v538
    %644 = vmatprep.subr.mxu0 %v535
    %645 = vmatpush1.msra.mxu0 %v534
    %646 = vmatprep.subr.mxu0 %v531
    %647 = vmatpush1.msra.mxu0 %v530
    %648 = vmatprep.subr.mxu0 0.0
    %649 = vmatpush2.msra.mxu0 0.0
    %650 = vmatprep.subr.mxu0 0.0
    %651 = vmatpush2.msra.mxu0 0.0
    %652 = vmatprep.subr.mxu0 0.0
    %653 = vmatpush2.msra.mxu0 0.0
    %654 = vmatprep.subr.mxu0 0.0
    %655 = vmatpush2.msra.mxu0 0.0
    %656 = vmatprep.subr.mxu0 0.0
    %657 = vmatpush2.msra.mxu0 0.0
    %658 = vmatprep.subr.mxu0 0.0
    %659 = vmatpush2.msra.mxu0 0.0
    %660 = vmatprep.subr.mxu0 0.0
    %661 = vmatpush2.msra.mxu0 0.0
    %662 = vmatprep.subr.mxu0 0.0
    %663 = vmatpush2.msra.mxu0 0.0
    %664 = vmatprep.subr.mxu0 0.0
    %665 = vmatpush2.msra.mxu0 0.0
    %666 = vmatprep.subr.mxu0 0.0
    %667 = vmatpush2.msra.mxu0 0.0
    %668 = vmatprep.subr.mxu0 0.0
    %669 = vmatpush2.msra.mxu0 0.0
    %670 = vmatprep.subr.mxu0 0.0
    %671 = vmatpush2.msra.mxu0 0.0
    %672 = vmatprep.subr.mxu0 0.0
    %673 = vmatpush2.msra.mxu0 0.0
    %674 = vmatprep.subr.mxu0 0.0
    %675 = vmatpush2.msra.mxu0 0.0
    %676 = vmatprep.subr.mxu0 0.0
    %677 = vmatpush2.msra.mxu0 0.0
    %678 = vmatprep.subr.mxu0 0.0
    %679 = vmatpush2.msra.mxu0 0.0
    %680 = vmatprep.mubr.f32.mxu0 0.0
    %681 = vmatmul.mubr.f32.gmra.mxu0 %v522
    %v682 = vpop.f32.mrf.mxu0
    %v683 = vadd.f32 %v599, %v682
    %v684 = vpop.f32.mrf.mxu0
    %v685 = vadd.f32 %v603, %v684
    %686 = vmatprep.mubr.f32.mxu0 0.0
    %687 = vmatmul.mubr.f32.gmra.mxu0 %v523
    %v688 = vpop.f32.mrf.mxu0
    %v689 = vadd.f32 %v599, %v688
    %v690 = vpop.f32.mrf.mxu0
    %v691 = vadd.f32 %v603, %v690
    %692 = vmatprep.mubr.f32.mxu0 0.0
    %693 = vmatmul.mubr.f32.gmra.mxu0 %v524
    %v694 = vpop.f32.mrf.mxu0
    %v695 = vadd.f32 %v599, %v694
    %v696 = vpop.f32.mrf.mxu0
    %v697 = vadd.f32 %v603, %v696
    %698 = vmatprep.mubr.f32.mxu0 0.0
    %699 = vmatmul.mubr.f32.gmra.mxu0 %v525
    %v700 = vpop.f32.mrf.mxu0
    %v701 = vadd.f32 %v599, %v700
    %v702 = vpop.f32.mrf.mxu0
    %v703 = vadd.f32 %v603, %v702
    %704 = vmatprep.mubr.f32.mxu0 0.0
    %705 = vmatmul.mubr.f32.gmra.mxu0 %v526
    %v706 = vpop.f32.mrf.mxu0
    %v707 = vadd.f32 %v599, %v706
    %v708 = vpop.f32.mrf.mxu0
    %v709 = vadd.f32 %v603, %v708
    %710 = vmatprep.mubr.f32.mxu0 0.0
    %711 = vmatmul.mubr.f32.gmra.mxu0 %v527
    %v712 = vpop.f32.mrf.mxu0
    %v713 = vadd.f32 %v599, %v712
    %v714 = vpop.f32.mrf.mxu0
    %v715 = vadd.f32 %v603, %v714
    %716 = vmatprep.mubr.f32.mxu0 0.0
    %717 = vmatmul.mubr.f32.gmra.mxu0 %v528
    %v718 = vpop.f32.mrf.mxu0
    %v719 = vadd.f32 %v599, %v718
    %v720 = vpop.f32.mrf.mxu0
    %v721 = vadd.f32 %v603, %v720
    %722 = vmatprep.mubr.f32.mxu0 0.0
    %723 = vmatmul.mubr.f32.gmra.mxu0 %v529
    %v724 = vpop.f32.mrf.mxu0
    %v725 = vadd.f32 %v599, %v724
    %v726 = vpop.f32.mrf.mxu0
    %v727 = vadd.f32 %v603, %v726
    %728 = vdwg.mxu0
    %729 = vmatprep.subr.mxu0 %v593
    %730 = vmatpush1.msra.mxu0 %v592
    %731 = vmatprep.subr.mxu0 %v589
    %732 = vmatpush1.msra.mxu0 %v588
    %733 = vmatprep.subr.mxu0 %v585
    %734 = vmatpush1.msra.mxu0 %v584
    %735 = vmatprep.subr.mxu0 %v581
    %736 = vmatpush1.msra.mxu0 %v580
    %737 = vmatprep.subr.mxu0 %v577
    %738 = vmatpush1.msra.mxu0 %v576
    %739 = vmatprep.subr.mxu0 %v573
    %740 = vmatpush1.msra.mxu0 %v572
    %741 = vmatprep.subr.mxu0 %v569
    %742 = vmatpush1.msra.mxu0 %v568
    %743 = vmatprep.subr.mxu0 %v565
    %744 = vmatpush1.msra.mxu0 %v564
    %745 = vmatprep.subr.mxu0 %v561
    %746 = vmatpush1.msra.mxu0 %v560
    %747 = vmatprep.subr.mxu0 %v557
    %748 = vmatpush1.msra.mxu0 %v556
    %749 = vmatprep.subr.mxu0 %v553
    %750 = vmatpush1.msra.mxu0 %v552
    %751 = vmatprep.subr.mxu0 %v549
    %752 = vmatpush1.msra.mxu0 %v548
    %753 = vmatprep.subr.mxu0 %v545
    %754 = vmatpush1.msra.mxu0 %v544
    %755 = vmatprep.subr.mxu0 %v541
    %756 = vmatpush1.msra.mxu0 %v540
    %757 = vmatprep.subr.mxu0 %v537
    %758 = vmatpush1.msra.mxu0 %v536
    %759 = vmatprep.subr.mxu0 %v533
    %760 = vmatpush1.msra.mxu0 %v532
    %761 = vmatprep.subr.mxu0 0.0
    %762 = vmatpush2.msra.mxu0 0.0
    %763 = vmatprep.subr.mxu0 0.0
    %764 = vmatpush2.msra.mxu0 0.0
    %765 = vmatprep.subr.mxu0 0.0
    %766 = vmatpush2.msra.mxu0 0.0
    %767 = vmatprep.subr.mxu0 0.0
    %768 = vmatpush2.msra.mxu0 0.0
    %769 = vmatprep.subr.mxu0 0.0
    %770 = vmatpush2.msra.mxu0 0.0
    %771 = vmatprep.subr.mxu0 0.0
    %772 = vmatpush2.msra.mxu0 0.0
    %773 = vmatprep.subr.mxu0 0.0
    %774 = vmatpush2.msra.mxu0 0.0
    %775 = vmatprep.subr.mxu0 0.0
    %776 = vmatpush2.msra.mxu0 0.0
    %777 = vmatprep.subr.mxu0 0.0
    %778 = vmatpush2.msra.mxu0 0.0
    %779 = vmatprep.subr.mxu0 0.0
    %780 = vmatpush2.msra.mxu0 0.0
    %781 = vmatprep.subr.mxu0 0.0
    %782 = vmatpush2.msra.mxu0 0.0
    %783 = vmatprep.subr.mxu0 0.0
    %784 = vmatpush2.msra.mxu0 0.0
    %785 = vmatprep.subr.mxu0 0.0
    %786 = vmatpush2.msra.mxu0 0.0
    %787 = vmatprep.subr.mxu0 0.0
    %788 = vmatpush2.msra.mxu0 0.0
    %789 = vmatprep.subr.mxu0 0.0
    %790 = vmatpush2.msra.mxu0 0.0
    %791 = vmatprep.subr.mxu0 0.0
    %792 = vmatpush2.msra.mxu0 0.0
    %793 = vmatprep.mubr.f32.mxu0 0.0
    %794 = vmatmul.mubr.f32.gmra.mxu0 %v522
    %v795 = vpop.f32.mrf.mxu0
    %v796 = vadd.f32 %v607, %v795
    %v797 = vpop.f32.mrf.mxu0
    %v798 = vadd.f32 %v611, %v797
    %799 = vmatprep.mubr.f32.mxu0 0.0
    %800 = vmatmul.mubr.f32.gmra.mxu0 %v523
    %v801 = vpop.f32.mrf.mxu0
    %v802 = vadd.f32 %v607, %v801
    %v803 = vpop.f32.mrf.mxu0
    %v804 = vadd.f32 %v611, %v803
    %805 = vmatprep.mubr.f32.mxu0 0.0
    %806 = vmatmul.mubr.f32.gmra.mxu0 %v524
    %v807 = vpop.f32.mrf.mxu0
    %v808 = vadd.f32 %v607, %v807
    %v809 = vpop.f32.mrf.mxu0
    %v810 = vadd.f32 %v611, %v809
    %811 = vmatprep.mubr.f32.mxu0 0.0
    %812 = vmatmul.mubr.f32.gmra.mxu0 %v525
    %v813 = vpop.f32.mrf.mxu0
    %v814 = vadd.f32 %v607, %v813
    %v815 = vpop.f32.mrf.mxu0
    %v816 = vadd.f32 %v611, %v815
    %817 = vmatprep.mubr.f32.mxu0 0.0
    %818 = vmatmul.mubr.f32.gmra.mxu0 %v526
    %v819 = vpop.f32.mrf.mxu0
    %v820 = vadd.f32 %v607, %v819
    %v821 = vpop.f32.mrf.mxu0
    %v822 = vadd.f32 %v611, %v821
    %823 = vmatprep.mubr.f32.mxu0 0.0
    %824 = vmatmul.mubr.f32.gmra.mxu0 %v527
    %v825 = vpop.f32.mrf.mxu0
    %v826 = vadd.f32 %v607, %v825
    %v827 = vpop.f32.mrf.mxu0
    %v828 = vadd.f32 %v611, %v827
    %829 = vmatprep.mubr.f32.mxu0 0.0
    %830 = vmatmul.mubr.f32.gmra.mxu0 %v528
    %v831 = vpop.f32.mrf.mxu0
    %v832 = vadd.f32 %v607, %v831
    %v833 = vpop.f32.mrf.mxu0
    %v834 = vadd.f32 %v611, %v833
    %835 = vmatprep.mubr.f32.mxu0 0.0
    %836 = vmatmul.mubr.f32.gmra.mxu0 %v529
    %v837 = vpop.f32.mrf.mxu0
    %v838 = vadd.f32 %v607, %v837
    %v839 = vpop.f32.mrf.mxu0
    %v840 = vadd.f32 %v611, %v839
    %841 = vdwg.mxu0
    %v842 = vmax.f32 %v683, 0.0
    %v843 = vmax.f32 %v685, 0.0
    %v844 = vmax.f32 %v796, 0.0
    %v845 = vmax.f32 %v798, 0.0
    %v846 = vmax.f32 %v689, 0.0
    %v847 = vmax.f32 %v691, 0.0
    %v848 = vmax.f32 %v802, 0.0
    %v849 = vmax.f32 %v804, 0.0
    %v850 = vmax.f32 %v695, 0.0
    %v851 = vmax.f32 %v697, 0.0
    %v852 = vmax.f32 %v808, 0.0
    %v853 = vmax.f32 %v810, 0.0
    %v854 = vmax.f32 %v701, 0.0
    %v855 = vmax.f32 %v703, 0.0
    %v856 = vmax.f32 %v814, 0.0
    %v857 = vmax.f32 %v816, 0.0
    %v858 = vmax.f32 %v707, 0.0
    %v859 = vmax.f32 %v709, 0.0
    %v860 = vmax.f32 %v820, 0.0
    %v861 = vmax.f32 %v822, 0.0
    %v862 = vmax.f32 %v713, 0.0
    %v863 = vmax.f32 %v715, 0.0
    %v864 = vmax.f32 %v826, 0.0
    %v865 = vmax.f32 %v828, 0.0
    %v866 = vmax.f32 %v719, 0.0
    %v867 = vmax.f32 %v721, 0.0
    %v868 = vmax.f32 %v832, 0.0
    %v869 = vmax.f32 %v834, 0.0
    %v870 = vmax.f32 %v725, 0.0
    %v871 = vmax.f32 %v727, 0.0
    %v872 = vmax.f32 %v838, 0.0
    %v873 = vmax.f32 %v840, 0.0
    %v874 = vld [vmem:[#allocation7] sm:$0xff]
    %v875 = vld [vmem:[#allocation7 + $0x8] sm:$0xff]
    %v876 = vld [vmem:[#allocation7 + $0x10] sm:$0xff]
    %v877 = vld [vmem:[#allocation7 + $0x18] sm:$0xff]
    %v878 = vld [vmem:[#allocation7 + $0x20] sm:$0xff]
    %v879 = vld [vmem:[#allocation7 + $0x28] sm:$0xff]
    %v880 = vld [vmem:[#allocation7 + $0x30] sm:$0xff]
    %v881 = vld [vmem:[#allocation7 + $0x38] sm:$0xff]
    %v882 = vld [vmem:[#allocation7 + $0x40] sm:$0xff]
    %v883 = vld [vmem:[#allocation7 + $0x48] sm:$0xff]
    %v884 = vld [vmem:[#allocation7 + $0x50] sm:$0xff]
    %v885 = vld [vmem:[#allocation7 + $0x58] sm:$0xff]
    %v886 = vld [vmem:[#allocation7 + $0x60] sm:$0xff]
    %v887 = vld [vmem:[#allocation7 + $0x68] sm:$0xff]
    %v888 = vld [vmem:[#allocation7 + $0x70] sm:$0xff]
    %v889 = vld [vmem:[#allocation7 + $0x78] sm:$0xff]
    %v890 = vld [vmem:[#allocation7 + $0x80] sm:$0xff]
    %v891 = vld [vmem:[#allocation7 + $0x88] sm:$0xff]
    %v892 = vld [vmem:[#allocation7 + $0x90] sm:$0xff]
    %v893 = vld [vmem:[#allocation7 + $0x98] sm:$0xff]
    %v894 = vld [vmem:[#allocation7 + $0xa0] sm:$0xff]
    %v895 = vld [vmem:[#allocation7 + $0xa8] sm:$0xff]
    %v896 = vld [vmem:[#allocation7 + $0xb0] sm:$0xff]
    %v897 = vld [vmem:[#allocation7 + $0xb8] sm:$0xff]
    %v898 = vld [vmem:[#allocation7 + $0xc0] sm:$0xff]
    %v899 = vld [vmem:[#allocation7 + $0xc8] sm:$0xff]
    %v900 = vld [vmem:[#allocation7 + $0xd0] sm:$0xff]
    %v901 = vld [vmem:[#allocation7 + $0xd8] sm:$0xff]
    %v902 = vld [vmem:[#allocation7 + $0xe0] sm:$0xff]
    %v903 = vld [vmem:[#allocation7 + $0xe8] sm:$0xff]
    %v904 = vld [vmem:[#allocation7 + $0xf0] sm:$0xff]
    %v905 = vld [vmem:[#allocation7 + $0xf8] sm:$0xff]
    %v906 = vld [vmem:[#allocation7 + $0x100] sm:$0xff]
    %v907 = vld [vmem:[#allocation7 + $0x108] sm:$0xff]
    %v908 = vld [vmem:[#allocation7 + $0x110] sm:$0xff]
    %v909 = vld [vmem:[#allocation7 + $0x118] sm:$0xff]
    %v910 = vld [vmem:[#allocation7 + $0x120] sm:$0xff]
    %v911 = vld [vmem:[#allocation7 + $0x128] sm:$0xff]
    %v912 = vld [vmem:[#allocation7 + $0x130] sm:$0xff]
    %v913 = vld [vmem:[#allocation7 + $0x138] sm:$0xff]
    %v914 = vld [vmem:[#allocation7 + $0x140] sm:$0xff]
    %v915 = vld [vmem:[#allocation7 + $0x148] sm:$0xff]
    %v916 = vld [vmem:[#allocation7 + $0x150] sm:$0xff]
    %v917 = vld [vmem:[#allocation7 + $0x158] sm:$0xff]
    %v918 = vld [vmem:[#allocation7 + $0x160] sm:$0xff]
    %v919 = vld [vmem:[#allocation7 + $0x168] sm:$0xff]
    %v920 = vld [vmem:[#allocation7 + $0x170] sm:$0xff]
    %v921 = vld [vmem:[#allocation7 + $0x178] sm:$0xff]
    %v922 = vld [vmem:[#allocation7 + $0x180] sm:$0xff]
    %v923 = vld [vmem:[#allocation7 + $0x188] sm:$0xff]
    %v924 = vld [vmem:[#allocation7 + $0x190] sm:$0xff]
    %v925 = vld [vmem:[#allocation7 + $0x198] sm:$0xff]
    %v926 = vld [vmem:[#allocation7 + $0x1a0] sm:$0xff]
    %v927 = vld [vmem:[#allocation7 + $0x1a8] sm:$0xff]
    %v928 = vld [vmem:[#allocation7 + $0x1b0] sm:$0xff]
    %v929 = vld [vmem:[#allocation7 + $0x1b8] sm:$0xff]
    %v930 = vld [vmem:[#allocation7 + $0x1c0] sm:$0xff]
    %v931 = vld [vmem:[#allocation7 + $0x1c8] sm:$0xff]
    %v932 = vld [vmem:[#allocation7 + $0x1d0] sm:$0xff]
    %v933 = vld [vmem:[#allocation7 + $0x1d8] sm:$0xff]
    %v934 = vld [vmem:[#allocation7 + $0x1e0] sm:$0xff]
    %v935 = vld [vmem:[#allocation7 + $0x1e8] sm:$0xff]
    %v936 = vld [vmem:[#allocation7 + $0x1f0] sm:$0xff]
    %v937 = vld [vmem:[#allocation7 + $0x1f8] sm:$0xff]
    %v938 = vld [vmem:[%s10] sm:$0x1]
    %v940 = vlaneseq
    %v941 = vshrl.u32 %v940, 7
    %v942 = vsub.s32 0, %v941
    %v943 = vrot.slane %v938, %v942
    %945 = vmatprep.subr.mxu0 0.0
    %946 = vmatpush1.msra.mxu0 %v889
    %947 = vmatprep.subr.mxu0 0.0
    %948 = vmatpush1.msra.mxu0 %v888
    %949 = vmatprep.subr.mxu0 0.0
    %950 = vmatpush1.msra.mxu0 %v887
    %951 = vmatprep.subr.mxu0 0.0
    %952 = vmatpush1.msra.mxu0 %v886
    %953 = vmatprep.subr.mxu0 0.0
    %954 = vmatpush1.msra.mxu0 %v885
    %955 = vmatprep.subr.mxu0 0.0
    %956 = vmatpush1.msra.mxu0 %v884
    %957 = vmatprep.subr.mxu0 0.0
    %958 = vmatpush1.msra.mxu0 %v883
    %959 = vmatprep.subr.mxu0 0.0
    %960 = vmatpush1.msra.mxu0 %v882
    %961 = vmatprep.subr.mxu0 0.0
    %962 = vmatpush1.msra.mxu0 %v881
    %963 = vmatprep.subr.mxu0 0.0
    %964 = vmatpush1.msra.mxu0 %v880
    %965 = vmatprep.subr.mxu0 0.0
    %966 = vmatpush1.msra.mxu0 %v879
    %967 = vmatprep.subr.mxu0 0.0
    %968 = vmatpush1.msra.mxu0 %v878
    %969 = vmatprep.subr.mxu0 0.0
    %970 = vmatpush1.msra.mxu0 %v877
    %971 = vmatprep.subr.mxu0 0.0
    %972 = vmatpush1.msra.mxu0 %v876
    %973 = vmatprep.subr.mxu0 0.0
    %974 = vmatpush1.msra.mxu0 %v875
    %975 = vmatprep.subr.mxu0 0.0
    %976 = vmatpush1.msra.mxu0 %v874
    %977 = vmatprep.subr.mxu0 0.0
    %978 = vmatpush2.msra.mxu0 %v905
    %979 = vmatprep.subr.mxu0 0.0
    %980 = vmatpush2.msra.mxu0 %v904
    %981 = vmatprep.subr.mxu0 0.0
    %982 = vmatpush2.msra.mxu0 %v903
    %983 = vmatprep.subr.mxu0 0.0
    %984 = vmatpush2.msra.mxu0 %v902
    %985 = vmatprep.subr.mxu0 0.0
    %986 = vmatpush2.msra.mxu0 %v901
    %987 = vmatprep.subr.mxu0 0.0
    %988 = vmatpush2.msra.mxu0 %v900
    %989 = vmatprep.subr.mxu0 0.0
    %990 = vmatpush2.msra.mxu0 %v899
    %991 = vmatprep.subr.mxu0 0.0
    %992 = vmatpush2.msra.mxu0 %v898
    %993 = vmatprep.subr.mxu0 0.0
    %994 = vmatpush2.msra.mxu0 %v897
    %995 = vmatprep.subr.mxu0 0.0
    %996 = vmatpush2.msra.mxu0 %v896
    %997 = vmatprep.subr.mxu0 0.0
    %998 = vmatpush2.msra.mxu0 %v895
    %999 = vmatprep.subr.mxu0 0.0
    %1000 = vmatpush2.msra.mxu0 %v894
    %1001 = vmatprep.subr.mxu0 0.0
    %1002 = vmatpush2.msra.mxu0 %v893
    %1003 = vmatprep.subr.mxu0 0.0
    %1004 = vmatpush2.msra.mxu0 %v892
    %1005 = vmatprep.subr.mxu0 0.0
    %1006 = vmatpush2.msra.mxu0 %v891
    %1007 = vmatprep.subr.mxu0 0.0
    %1008 = vmatpush2.msra.mxu0 %v890
    %1009 = vmatprep.mubr.f32.mxu0 %v843
    %1010 = vmatmul.mubr.f32.gmra.mxu0 %v842
    %v1011 = vpop.f32.mrf.mxu0
    %v1012 = vadd.f32 %v943, %v1011
    %v1013 = vpop.f32.mrf.mxu0
    %1014 = vmatprep.mubr.f32.mxu0 %v847
    %1015 = vmatmul.mubr.f32.gmra.mxu0 %v846
    %v1016 = vpop.f32.mrf.mxu0
    %v1017 = vadd.f32 %v943, %v1016
    %v1018 = vpop.f32.mrf.mxu0
    %1019 = vmatprep.mubr.f32.mxu0 %v851
    %1020 = vmatmul.mubr.f32.gmra.mxu0 %v850
    %v1021 = vpop.f32.mrf.mxu0
    %v1022 = vadd.f32 %v943, %v1021
    %v1023 = vpop.f32.mrf.mxu0
    %1024 = vmatprep.mubr.f32.mxu0 %v855
    %1025 = vmatmul.mubr.f32.gmra.mxu0 %v854
    %v1026 = vpop.f32.mrf.mxu0
    %v1027 = vadd.f32 %v943, %v1026
    %v1028 = vpop.f32.mrf.mxu0
    %1029 = vmatprep.mubr.f32.mxu0 %v859
    %1030 = vmatmul.mubr.f32.gmra.mxu0 %v858
    %v1031 = vpop.f32.mrf.mxu0
    %v1032 = vadd.f32 %v943, %v1031
    %v1033 = vpop.f32.mrf.mxu0
    %1034 = vmatprep.mubr.f32.mxu0 %v863
    %1035 = vmatmul.mubr.f32.gmra.mxu0 %v862
    %v1036 = vpop.f32.mrf.mxu0
    %v1037 = vadd.f32 %v943, %v1036
    %v1038 = vpop.f32.mrf.mxu0
    %1039 = vmatprep.mubr.f32.mxu0 %v867
    %1040 = vmatmul.mubr.f32.gmra.mxu0 %v866
    %v1041 = vpop.f32.mrf.mxu0
    %v1042 = vadd.f32 %v943, %v1041
    %v1043 = vpop.f32.mrf.mxu0
    %1044 = vmatprep.mubr.f32.mxu0 %v871
    %1045 = vmatmul.mubr.f32.gmra.mxu0 %v870
    %v1046 = vpop.f32.mrf.mxu0
    %v1047 = vadd.f32 %v943, %v1046
    %v1048 = vpop.f32.mrf.mxu0
    %1049 = vdwg.mxu0
    %1050 = vmatprep.subr.mxu0 0.0
    %1051 = vmatpush1.msra.mxu0 %v921
    %1052 = vmatprep.subr.mxu0 0.0
    %1053 = vmatpush1.msra.mxu0 %v920
    %1054 = vmatprep.subr.mxu0 0.0
    %1055 = vmatpush1.msra.mxu0 %v919
    %1056 = vmatprep.subr.mxu0 0.0
    %1057 = vmatpush1.msra.mxu0 %v918
    %1058 = vmatprep.subr.mxu0 0.0
    %1059 = vmatpush1.msra.mxu0 %v917
    %1060 = vmatprep.subr.mxu0 0.0
    %1061 = vmatpush1.msra.mxu0 %v916
    %1062 = vmatprep.subr.mxu0 0.0
    %1063 = vmatpush1.msra.mxu0 %v915
    %1064 = vmatprep.subr.mxu0 0.0
    %1065 = vmatpush1.msra.mxu0 %v914
    %1066 = vmatprep.subr.mxu0 0.0
    %1067 = vmatpush1.msra.mxu0 %v913
    %1068 = vmatprep.subr.mxu0 0.0
    %1069 = vmatpush1.msra.mxu0 %v912
    %1070 = vmatprep.subr.mxu0 0.0
    %1071 = vmatpush1.msra.mxu0 %v911
    %1072 = vmatprep.subr.mxu0 0.0
    %1073 = vmatpush1.msra.mxu0 %v910
    %1074 = vmatprep.subr.mxu0 0.0
    %1075 = vmatpush1.msra.mxu0 %v909
    %1076 = vmatprep.subr.mxu0 0.0
    %1077 = vmatpush1.msra.mxu0 %v908
    %1078 = vmatprep.subr.mxu0 0.0
    %1079 = vmatpush1.msra.mxu0 %v907
    %1080 = vmatprep.subr.mxu0 0.0
    %1081 = vmatpush1.msra.mxu0 %v906
    %1082 = vmatprep.subr.mxu0 0.0
    %1083 = vmatpush2.msra.mxu0 %v937
    %1084 = vmatprep.subr.mxu0 0.0
    %1085 = vmatpush2.msra.mxu0 %v936
    %1086 = vmatprep.subr.mxu0 0.0
    %1087 = vmatpush2.msra.mxu0 %v935
    %1088 = vmatprep.subr.mxu0 0.0
    %1089 = vmatpush2.msra.mxu0 %v934
    %1090 = vmatprep.subr.mxu0 0.0
    %1091 = vmatpush2.msra.mxu0 %v933
    %1092 = vmatprep.subr.mxu0 0.0
    %1093 = vmatpush2.msra.mxu0 %v932
    %1094 = vmatprep.subr.mxu0 0.0
    %1095 = vmatpush2.msra.mxu0 %v931
    %1096 = vmatprep.subr.mxu0 0.0
    %1097 = vmatpush2.msra.mxu0 %v930
    %1098 = vmatprep.subr.mxu0 0.0
    %1099 = vmatpush2.msra.mxu0 %v929
    %1100 = vmatprep.subr.mxu0 0.0
    %1101 = vmatpush2.msra.mxu0 %v928
    %1102 = vmatprep.subr.mxu0 0.0
    %1103 = vmatpush2.msra.mxu0 %v927
    %1104 = vmatprep.subr.mxu0 0.0
    %1105 = vmatpush2.msra.mxu0 %v926
    %1106 = vmatprep.subr.mxu0 0.0
    %1107 = vmatpush2.msra.mxu0 %v925
    %1108 = vmatprep.subr.mxu0 0.0
    %1109 = vmatpush2.msra.mxu0 %v924
    %1110 = vmatprep.subr.mxu0 0.0
    %1111 = vmatpush2.msra.mxu0 %v923
    %1112 = vmatprep.subr.mxu0 0.0
    %1113 = vmatpush2.msra.mxu0 %v922
    %1114 = vmatprep.mubr.f32.mxu0 %v845
    %1115 = vmatmul.mubr.f32.gmra.mxu0 %v844
    %v1116 = vpop.f32.mrf.mxu0
    %v1117 = vadd.f32 %v1012, %v1116
    %v1118 = vpop.f32.mrf.mxu0
    %1119 = vmatprep.mubr.f32.mxu0 %v849
    %1120 = vmatmul.mubr.f32.gmra.mxu0 %v848
    %v1121 = vpop.f32.mrf.mxu0
    %v1122 = vadd.f32 %v1017, %v1121
    %v1123 = vpop.f32.mrf.mxu0
    %1124 = vmatprep.mubr.f32.mxu0 %v853
    %1125 = vmatmul.mubr.f32.gmra.mxu0 %v852
    %v1126 = vpop.f32.mrf.mxu0
    %v1127 = vadd.f32 %v1022, %v1126
    %v1128 = vpop.f32.mrf.mxu0
    %1129 = vmatprep.mubr.f32.mxu0 %v857
    %1130 = vmatmul.mubr.f32.gmra.mxu0 %v856
    %v1131 = vpop.f32.mrf.mxu0
    %v1132 = vadd.f32 %v1027, %v1131
    %v1133 = vpop.f32.mrf.mxu0
    %1134 = vmatprep.mubr.f32.mxu0 %v861
    %1135 = vmatmul.mubr.f32.gmra.mxu0 %v860
    %v1136 = vpop.f32.mrf.mxu0
    %v1137 = vadd.f32 %v1032, %v1136
    %v1138 = vpop.f32.mrf.mxu0
    %1139 = vmatprep.mubr.f32.mxu0 %v865
    %1140 = vmatmul.mubr.f32.gmra.mxu0 %v864
    %v1141 = vpop.f32.mrf.mxu0
    %v1142 = vadd.f32 %v1037, %v1141
    %v1143 = vpop.f32.mrf.mxu0
    %1144 = vmatprep.mubr.f32.mxu0 %v869
    %1145 = vmatmul.mubr.f32.gmra.mxu0 %v868
    %v1146 = vpop.f32.mrf.mxu0
    %v1147 = vadd.f32 %v1042, %v1146
    %v1148 = vpop.f32.mrf.mxu0
    %1149 = vmatprep.mubr.f32.mxu0 %v873
    %1150 = vmatmul.mubr.f32.gmra.mxu0 %v872
    %v1151 = vpop.f32.mrf.mxu0
    %v1152 = vadd.f32 %v1047, %v1151
    %v1153 = vpop.f32.mrf.mxu0
    %1154 = vdwg.mxu0
    %v1155 = vadd.f32 %v522, %v1117
    %v1156 = vadd.f32 %v523, %v1122
    %v1157 = vadd.f32 %v524, %v1127
    %v1158 = vadd.f32 %v525, %v1132
    %v1159 = vadd.f32 %v526, %v1137
    %v1160 = vadd.f32 %v527, %v1142
    %v1161 = vadd.f32 %v528, %v1147
    %v1162 = vadd.f32 %v529, %v1152
    %v1163 = vld [vmem:[%s11] sm:$0x1]
    %v1164 = vld [vmem:[%s12] sm:$0x1]
    %1165 = vadd.xlane.f32.xlu0 %v1155
    %v1166 = vpop.xlane.xlu0 %1165
    %1167 = vadd.xlane.f32.xlu0 %v1156
    %v1168 = vpop.xlane.xlu0 %1167
    %1169 = vadd.xlane.f32.xlu0 %v1157
    %v1170 = vpop.xlane.xlu0 %1169
    %1171 = vadd.xlane.f32.xlu0 %v1158
    %v1172 = vpop.xlane.xlu0 %1171
    %1173 = vadd.xlane.f32.xlu0 %v1159
    %v1174 = vpop.xlane.xlu0 %1173
    %1175 = vadd.xlane.f32.xlu0 %v1160
    %v1176 = vpop.xlane.xlu0 %1175
    %1177 = vadd.xlane.f32.xlu0 %v1161
    %v1178 = vpop.xlane.xlu0 %1177
    %1179 = vadd.xlane.f32.xlu0 %v1162
    %v1180 = vpop.xlane.xlu0 %1179
    %v1181 = vmul.f32 %v1166, %v429
    %v1182 = vmul.f32 %v1168, %v429
    %v1183 = vmul.f32 %v1170, %v429
    %v1184 = vmul.f32 %v1172, %v429
    %v1185 = vmul.f32 %v1174, %v429
    %v1186 = vmul.f32 %v1176, %v429
    %v1187 = vmul.f32 %v1178, %v429
    %v1188 = vmul.f32 %v1180, %v429
    %v1189 = vsub.f32 %v1155, %v1181
    %v1190 = vsub.f32 %v1156, %v1182
    %v1191 = vsub.f32 %v1157, %v1183
    %v1192 = vsub.f32 %v1158, %v1184
    %v1193 = vsub.f32 %v1159, %v1185
    %v1194 = vsub.f32 %v1160, %v1186
    %v1195 = vsub.f32 %v1161, %v1187
    %v1196 = vsub.f32 %v1162, %v1188
    %v1197 = vmul.f32 %v1189, %v1189
    %v1198 = vmul.f32 %v1190, %v1190
    %v1199 = vmul.f32 %v1191, %v1191
    %v1200 = vmul.f32 %v1192, %v1192
    %v1201 = vmul.f32 %v1193, %v1193
    %v1202 = vmul.f32 %v1194, %v1194
    %v1203 = vmul.f32 %v1195, %v1195
    %v1204 = vmul.f32 %v1196, %v1196
    %1205 = vadd.xlane.f32.xlu0 %v1197
    %v1206 = vpop.xlane.xlu0 %1205
    %1207 = vadd.xlane.f32.xlu0 %v1198
    %v1208 = vpop.xlane.xlu0 %1207
    %1209 = vadd.xlane.f32.xlu0 %v1199
    %v1210 = vpop.xlane.xlu0 %1209
    %1211 = vadd.xlane.f32.xlu0 %v1200
    %v1212 = vpop.xlane.xlu0 %1211
    %1213 = vadd.xlane.f32.xlu0 %v1201
    %v1214 = vpop.xlane.xlu0 %1213
    %1215 = vadd.xlane.f32.xlu0 %v1202
    %v1216 = vpop.xlane.xlu0 %1215
    %1217 = vadd.xlane.f32.xlu0 %v1203
    %v1218 = vpop.xlane.xlu0 %1217
    %1219 = vadd.xlane.f32.xlu0 %v1204
    %v1220 = vpop.xlane.xlu0 %1219
    %v1221 = vmul.f32 %v1206, %v429
    %v1222 = vmul.f32 %v1208, %v429
    %v1223 = vmul.f32 %v1210, %v429
    %v1224 = vmul.f32 %v1212, %v429
    %v1225 = vmul.f32 %v1214, %v429
    %v1226 = vmul.f32 %v1216, %v429
    %v1227 = vmul.f32 %v1218, %v429
    %v1228 = vmul.f32 %v1220, %v429
    %v1229 = vadd.f32 %v1221, 1e-05
    %v1230 = vadd.f32 %v1222, 1e-05
    %v1231 = vadd.f32 %v1223, 1e-05
    %v1232 = vadd.f32 %v1224, 1e-05
    %v1233 = vadd.f32 %v1225, 1e-05
    %v1234 = vadd.f32 %v1226, 1e-05
    %v1235 = vadd.f32 %v1227, 1e-05
    %v1236 = vadd.f32 %v1228, 1e-05
    %v1237 = vrsqrt.pop %v1229
    %v1238 = vrsqrt.pop %v1230
    %v1239 = vrsqrt.pop %v1231
    %v1240 = vrsqrt.pop %v1232
    %v1241 = vrsqrt.pop %v1233
    %v1242 = vrsqrt.pop %v1234
    %v1243 = vrsqrt.pop %v1235
    %v1244 = vrsqrt.pop %v1236
    %v1245 = vmul.f32 %v1189, %v1237
    %v1246 = vmul.f32 %v1190, %v1238
    %v1247 = vmul.f32 %v1191, %v1239
    %v1248 = vmul.f32 %v1192, %v1240
    %v1249 = vmul.f32 %v1193, %v1241
    %v1250 = vmul.f32 %v1194, %v1242
    %v1251 = vmul.f32 %v1195, %v1243
    %v1252 = vmul.f32 %v1196, %v1244
    %v1254 = vlaneseq
    %v1255 = vshrl.u32 %v1254, 7
    %v1256 = vsub.s32 0, %v1255
    %v1257 = vrot.slane %v1163, %v1256
    %v1259 = vmul.f32 %v1245, %v1257
    %v1260 = vmul.f32 %v1246, %v1257
    %v1261 = vmul.f32 %v1247, %v1257
    %v1262 = vmul.f32 %v1248, %v1257
    %v1263 = vmul.f32 %v1249, %v1257
    %v1264 = vmul.f32 %v1250, %v1257
    %v1265 = vmul.f32 %v1251, %v1257
    %v1266 = vmul.f32 %v1252, %v1257
    %v1268 = vlaneseq
    %v1269 = vshrl.u32 %v1268, 7
    %v1270 = vsub.s32 0, %v1269
    %v1271 = vrot.slane %v1164, %v1270
    %v1273 = vadd.f32 %v1259, %v1271
    %v1274 = vadd.f32 %v1260, %v1271
    %v1275 = vadd.f32 %v1261, %v1271
    %v1276 = vadd.f32 %v1262, %v1271
    %v1277 = vadd.f32 %v1263, %v1271
    %v1278 = vadd.f32 %v1264, %v1271
    %v1279 = vadd.f32 %v1265, %v1271
    %v1280 = vadd.f32 %v1266, %v1271
    %s1281 = scalar_lea.vmem [#allocation2], 128
    %v1282 = vld [vmem:[%s1281] sm:$0xff]
    %v1283 = vld [vmem:[%s1281 + $0x8] sm:$0xff]
    %v1284 = vld [vmem:[%s1281 + $0x10] sm:$0xff]
    %v1285 = vld [vmem:[%s1281 + $0x18] sm:$0xff]
    %v1286 = vld [vmem:[%s1281 + $0x20] sm:$0xff]
    %v1287 = vld [vmem:[%s1281 + $0x28] sm:$0xff]
    %v1288 = vld [vmem:[%s1281 + $0x30] sm:$0xff]
    %v1289 = vld [vmem:[%s1281 + $0x38] sm:$0xff]
    %v1290 = vld [vmem:[%s1281 + $0x40] sm:$0xff]
    %v1291 = vld [vmem:[%s1281 + $0x48] sm:$0xff]
    %v1292 = vld [vmem:[%s1281 + $0x50] sm:$0xff]
    %v1293 = vld [vmem:[%s1281 + $0x58] sm:$0xff]
    %v1294 = vld [vmem:[%s1281 + $0x60] sm:$0xff]
    %v1295 = vld [vmem:[%s1281 + $0x68] sm:$0xff]
    %v1296 = vld [vmem:[%s1281 + $0x70] sm:$0xff]
    %v1297 = vld [vmem:[%s1281 + $0x78] sm:$0xff]
    %s1298 = scalar_lea.vmem %s4, 1
    %v1299 = vld [vmem:[%s1298] sm:$0x1]
    %v1301 = vlaneseq
    %v1302 = vshrl.u32 %v1301, 7
    %v1303 = vsub.s32 0, %v1302
    %v1304 = vrot.slane %v1299, %v1303
    %1306 = vmatprep.subr.mxu0 0.0
    %1307 = vmatpush1.msra.mxu0 %v1297
    %1308 = vmatprep.subr.mxu0 0.0
    %1309 = vmatpush1.msra.mxu0 %v1296
    %1310 = vmatprep.subr.mxu0 0.0
    %1311 = vmatpush1.msra.mxu0 %v1295
    %1312 = vmatprep.subr.mxu0 0.0
    %1313 = vmatpush1.msra.mxu0 %v1294
    %1314 = vmatprep.subr.mxu0 0.0
    %1315 = vmatpush1.msra.mxu0 %v1293
    %1316 = vmatprep.subr.mxu0 0.0
    %1317 = vmatpush1.msra.mxu0 %v1292
    %1318 = vmatprep.subr.mxu0 0.0
    %1319 = vmatpush1.msra.mxu0 %v1291
    %1320 = vmatprep.subr.mxu0 0.0
    %1321 = vmatpush1.msra.mxu0 %v1290
    %1322 = vmatprep.subr.mxu0 0.0
    %1323 = vmatpush1.msra.mxu0 %v1289
    %1324 = vmatprep.subr.mxu0 0.0
    %1325 = vmatpush1.msra.mxu0 %v1288
    %1326 = vmatprep.subr.mxu0 0.0
    %1327 = vmatpush1.msra.mxu0 %v1287
    %1328 = vmatprep.subr.mxu0 0.0
    %1329 = vmatpush1.msra.mxu0 %v1286
    %1330 = vmatprep.subr.mxu0 0.0
    %1331 = vmatpush1.msra.mxu0 %v1285
    %1332 = vmatprep.subr.mxu0 0.0
    %1333 = vmatpush1.msra.mxu0 %v1284
    %1334 = vmatprep.subr.mxu0 0.0
    %1335 = vmatpush1.msra.mxu0 %v1283
    %1336 = vmatprep.subr.mxu0 0.0
    %1337 = vmatpush1.msra.mxu0 %v1282
    %1338 = vmatprep.subr.mxu0 0.0
    %1339 = vmatpush2.msra.mxu0 0.0
    %1340 = vmatprep.subr.mxu0 0.0
    %1341 = vmatpush2.msra.mxu0 0.0
    %1342 = vmatprep.subr.mxu0 0.0
    %1343 = vmatpush2.msra.mxu0 0.0
    %1344 = vmatprep.subr.mxu0 0.0
    %1345 = vmatpush2.msra.mxu0 0.0
    %1346 = vmatprep.subr.mxu0 0.0
    %1347 = vmatpush2.msra.mxu0 0.0
    %1348 = vmatprep.subr.mxu0 0.0
    %1349 = vmatpush2.msra.mxu0 0.0
    %1350 = vmatprep.subr.mxu0 0.0
    %1351 = vmatpush2.msra.mxu0 0.0
    %1352 = vmatprep.subr.mxu0 0.0
    %1353 = vmatpush2.msra.mxu0 0.0
    %1354 = vmatprep.subr.mxu0 0.0
    %1355 = vmatpush2.msra.mxu0 0.0
    %1356 = vmatprep.subr.mxu0 0.0
    %1357 = vmatpush2.msra.mxu0 0.0
    %1358 = vmatprep.subr.mxu0 0.0
    %1359 = vmatpush2.msra.mxu0 0.0
    %1360 = vmatprep.subr.mxu0 0.0
    %1361 = vmatpush2.msra.mxu0 0.0
    %1362 = vmatprep.subr.mxu0 0.0
    %1363 = vmatpush2.msra.mxu0 0.0
    %1364 = vmatprep.subr.mxu0 0.0
    %1365 = vmatpush2.msra.mxu0 0.0
    %1366 = vmatprep.subr.mxu0 0.0
    %1367 = vmatpush2.msra.mxu0 0.0
    %1368 = vmatprep.subr.mxu0 0.0
    %1369 = vmatpush2.msra.mxu0 0.0
    %1370 = vmatprep.mubr.f32.mxu0 0.0
    %1371 = vmatmul.mubr.f32.gmra.mxu0 %v1273
    %v1372 = vpop.f32.mrf.mxu0
    %v1373 = vadd.f32 %v1304, %v1372
    %v1374 = vpop.f32.mrf.mxu0
    %1375 = vmatprep.mubr.f32.mxu0 0.0
    %1376 = vmatmul.mubr.f32.gmra.mxu0 %v1274
    %v1377 = vpop.f32.mrf.mxu0
    %v1378 = vadd.f32 %v1304, %v1377
    %v1379 = vpop.f32.mrf.mxu0
    %1380 = vmatprep.mubr.f32.mxu0 0.0
    %1381 = vmatmul.mubr.f32.gmra.mxu0 %v1275
    %v1382 = vpop.f32.mrf.mxu0
    %v1383 = vadd.f32 %v1304, %v1382
    %v1384 = vpop.f32.mrf.mxu0
    %1385 = vmatprep.mubr.f32.mxu0 0.0
    %1386 = vmatmul.mubr.f32.gmra.mxu0 %v1276
    %v1387 = vpop.f32.mrf.mxu0
    %v1388 = vadd.f32 %v1304, %v1387
    %v1389 = vpop.f32.mrf.mxu0
    %1390 = vmatprep.mubr.f32.mxu0 0.0
    %1391 = vmatmul.mubr.f32.gmra.mxu0 %v1277
    %v1392 = vpop.f32.mrf.mxu0
    %v1393 = vadd.f32 %v1304, %v1392
    %v1394 = vpop.f32.mrf.mxu0
    %1395 = vmatprep.mubr.f32.mxu0 0.0
    %1396 = vmatmul.mubr.f32.gmra.mxu0 %v1278
    %v1397 = vpop.f32.mrf.mxu0
    %v1398 = vadd.f32 %v1304, %v1397
    %v1399 = vpop.f32.mrf.mxu0
    %1400 = vmatprep.mubr.f32.mxu0 0.0
    %1401 = vmatmul.mubr.f32.gmra.mxu0 %v1279
    %v1402 = vpop.f32.mrf.mxu0
    %v1403 = vadd.f32 %v1304, %v1402
    %v1404 = vpop.f32.mrf.mxu0
    %1405 = vmatprep.mubr.f32.mxu0 0.0
    %1406 = vmatmul.mubr.f32.gmra.mxu0 %v1280
    %v1407 = vpop.f32.mrf.mxu0
    %v1408 = vadd.f32 %v1304, %v1407
    %v1409 = vpop.f32.mrf.mxu0
    %1410 = vdwg.mxu0
    %v1411 = vadd.f32 %v1273, %v1373
    %v1412 = vadd.f32 %v1274, %v1378
    %v1413 = vadd.f32 %v1275, %v1383
    %v1414 = vadd.f32 %v1276, %v1388
    %v1415 = vadd.f32 %v1277, %v1393
    %v1416 = vadd.f32 %v1278, %v1398
    %v1417 = vadd.f32 %v1279, %v1403
    %v1418 = vadd.f32 %v1280, %v1408
    %s1419 = scalar_lea.vmem %s5, 1
    %v1420 = vld [vmem:[%s1419] sm:$0x1]
    %s1421 = scalar_lea.vmem %s6, 1
    %v1422 = vld [vmem:[%s1421] sm:$0x1]
    %1423 = vadd.xlane.f32.xlu0 %v1411
    %v1424 = vpop.xlane.xlu0 %1423
    %1425 = vadd.xlane.f32.xlu0 %v1412
    %v1426 = vpop.xlane.xlu0 %1425
    %1427 = vadd.xlane.f32.xlu0 %v1413
    %v1428 = vpop.xlane.xlu0 %1427
    %1429 = vadd.xlane.f32.xlu0 %v1414
    %v1430 = vpop.xlane.xlu0 %1429
    %1431 = vadd.xlane.f32.xlu0 %v1415
    %v1432 = vpop.xlane.xlu0 %1431
    %1433 = vadd.xlane.f32.xlu0 %v1416
    %v1434 = vpop.xlane.xlu0 %1433
    %1435 = vadd.xlane.f32.xlu0 %v1417
    %v1436 = vpop.xlane.xlu0 %1435
    %1437 = vadd.xlane.f32.xlu0 %v1418
    %v1438 = vpop.xlane.xlu0 %1437
    %v1439 = vmul.f32 %v1424, %v429
    %v1440 = vmul.f32 %v1426, %v429
    %v1441 = vmul.f32 %v1428, %v429
    %v1442 = vmul.f32 %v1430, %v429
    %v1443 = vmul.f32 %v1432, %v429
    %v1444 = vmul.f32 %v1434, %v429
    %v1445 = vmul.f32 %v1436, %v429
    %v1446 = vmul.f32 %v1438, %v429
    %v1447 = vsub.f32 %v1411, %v1439
    %v1448 = vsub.f32 %v1412, %v1440
    %v1449 = vsub.f32 %v1413, %v1441
    %v1450 = vsub.f32 %v1414, %v1442
    %v1451 = vsub.f32 %v1415, %v1443
    %v1452 = vsub.f32 %v1416, %v1444
    %v1453 = vsub.f32 %v1417, %v1445
    %v1454 = vsub.f32 %v1418, %v1446
    %v1455 = vmul.f32 %v1447, %v1447
    %v1456 = vmul.f32 %v1448, %v1448
    %v1457 = vmul.f32 %v1449, %v1449
    %v1458 = vmul.f32 %v1450, %v1450
    %v1459 = vmul.f32 %v1451, %v1451
    %v1460 = vmul.f32 %v1452, %v1452
    %v1461 = vmul.f32 %v1453, %v1453
    %v1462 = vmul.f32 %v1454, %v1454
    %1463 = vadd.xlane.f32.xlu0 %v1455
    %v1464 = vpop.xlane.xlu0 %1463
    %1465 = vadd.xlane.f32.xlu0 %v1456
    %v1466 = vpop.xlane.xlu0 %1465
    %1467 = vadd.xlane.f32.xlu0 %v1457
    %v1468 = vpop.xlane.xlu0 %1467
    %1469 = vadd.xlane.f32.xlu0 %v1458
    %v1470 = vpop.xlane.xlu0 %1469
    %1471 = vadd.xlane.f32.xlu0 %v1459
    %v1472 = vpop.xlane.xlu0 %1471
    %1473 = vadd.xlane.f32.xlu0 %v1460
    %v1474 = vpop.xlane.xlu0 %1473
    %1475 = vadd.xlane.f32.xlu0 %v1461
    %v1476 = vpop.xlane.xlu0 %1475
    %1477 = vadd.xlane.f32.xlu0 %v1462
    %v1478 = vpop.xlane.xlu0 %1477
    %v1479 = vmul.f32 %v1464, %v429
    %v1480 = vmul.f32 %v1466, %v429
    %v1481 = vmul.f32 %v1468, %v429
    %v1482 = vmul.f32 %v1470, %v429
    %v1483 = vmul.f32 %v1472, %v429
    %v1484 = vmul.f32 %v1474, %v429
    %v1485 = vmul.f32 %v1476, %v429
    %v1486 = vmul.f32 %v1478, %v429
    %v1487 = vadd.f32 %v1479, 1e-05
    %v1488 = vadd.f32 %v1480, 1e-05
    %v1489 = vadd.f32 %v1481, 1e-05
    %v1490 = vadd.f32 %v1482, 1e-05
    %v1491 = vadd.f32 %v1483, 1e-05
    %v1492 = vadd.f32 %v1484, 1e-05
    %v1493 = vadd.f32 %v1485, 1e-05
    %v1494 = vadd.f32 %v1486, 1e-05
    %v1495 = vrsqrt.pop %v1487
    %v1496 = vrsqrt.pop %v1488
    %v1497 = vrsqrt.pop %v1489
    %v1498 = vrsqrt.pop %v1490
    %v1499 = vrsqrt.pop %v1491
    %v1500 = vrsqrt.pop %v1492
    %v1501 = vrsqrt.pop %v1493
    %v1502 = vrsqrt.pop %v1494
    %v1503 = vmul.f32 %v1447, %v1495
    %v1504 = vmul.f32 %v1448, %v1496
    %v1505 = vmul.f32 %v1449, %v1497
    %v1506 = vmul.f32 %v1450, %v1498
    %v1507 = vmul.f32 %v1451, %v1499
    %v1508 = vmul.f32 %v1452, %v1500
    %v1509 = vmul.f32 %v1453, %v1501
    %v1510 = vmul.f32 %v1454, %v1502
    %v1512 = vlaneseq
    %v1513 = vshrl.u32 %v1512, 7
    %v1514 = vsub.s32 0, %v1513
    %v1515 = vrot.slane %v1420, %v1514
    %v1517 = vmul.f32 %v1503, %v1515
    %v1518 = vmul.f32 %v1504, %v1515
    %v1519 = vmul.f32 %v1505, %v1515
    %v1520 = vmul.f32 %v1506, %v1515
    %v1521 = vmul.f32 %v1507, %v1515
    %v1522 = vmul.f32 %v1508, %v1515
    %v1523 = vmul.f32 %v1509, %v1515
    %v1524 = vmul.f32 %v1510, %v1515
    %v1526 = vlaneseq
    %v1527 = vshrl.u32 %v1526, 7
    %v1528 = vsub.s32 0, %v1527
    %v1529 = vrot.slane %v1422, %v1528
    %v1531 = vadd.f32 %v1517, %v1529
    %v1532 = vadd.f32 %v1518, %v1529
    %v1533 = vadd.f32 %v1519, %v1529
    %v1534 = vadd.f32 %v1520, %v1529
    %v1535 = vadd.f32 %v1521, %v1529
    %v1536 = vadd.f32 %v1522, %v1529
    %v1537 = vadd.f32 %v1523, %v1529
    %v1538 = vadd.f32 %v1524, %v1529
    %s1539 = scalar_lea.vmem [#allocation5], 512
    %v1540 = vld [vmem:[%s1539] sm:$0xff]
    %v1541 = vld [vmem:[%s1539 + $0x8] sm:$0xff]
    %v1542 = vld [vmem:[%s1539 + $0x10] sm:$0xff]
    %v1543 = vld [vmem:[%s1539 + $0x18] sm:$0xff]
    %v1544 = vld [vmem:[%s1539 + $0x20] sm:$0xff]
    %v1545 = vld [vmem:[%s1539 + $0x28] sm:$0xff]
    %v1546 = vld [vmem:[%s1539 + $0x30] sm:$0xff]
    %v1547 = vld [vmem:[%s1539 + $0x38] sm:$0xff]
    %v1548 = vld [vmem:[%s1539 + $0x40] sm:$0xff]
    %v1549 = vld [vmem:[%s1539 + $0x48] sm:$0xff]
    %v1550 = vld [vmem:[%s1539 + $0x50] sm:$0xff]
    %v1551 = vld [vmem:[%s1539 + $0x58] sm:$0xff]
    %v1552 = vld [vmem:[%s1539 + $0x60] sm:$0xff]
    %v1553 = vld [vmem:[%s1539 + $0x68] sm:$0xff]
    %v1554 = vld [vmem:[%s1539 + $0x70] sm:$0xff]
    %v1555 = vld [vmem:[%s1539 + $0x78] sm:$0xff]
    %v1556 = vld [vmem:[%s1539 + $0x80] sm:$0xff]
    %v1557 = vld [vmem:[%s1539 + $0x88] sm:$0xff]
    %v1558 = vld [vmem:[%s1539 + $0x90] sm:$0xff]
    %v1559 = vld [vmem:[%s1539 + $0x98] sm:$0xff]
    %v1560 = vld [vmem:[%s1539 + $0xa0] sm:$0xff]
    %v1561 = vld [vmem:[%s1539 + $0xa8] sm:$0xff]
    %v1562 = vld [vmem:[%s1539 + $0xb0] sm:$0xff]
    %v1563 = vld [vmem:[%s1539 + $0xb8] sm:$0xff]
    %v1564 = vld [vmem:[%s1539 + $0xc0] sm:$0xff]
    %v1565 = vld [vmem:[%s1539 + $0xc8] sm:$0xff]
    %v1566 = vld [vmem:[%s1539 + $0xd0] sm:$0xff]
    %v1567 = vld [vmem:[%s1539 + $0xd8] sm:$0xff]
    %v1568 = vld [vmem:[%s1539 + $0xe0] sm:$0xff]
    %v1569 = vld [vmem:[%s1539 + $0xe8] sm:$0xff]
    %v1570 = vld [vmem:[%s1539 + $0xf0] sm:$0xff]
    %v1571 = vld [vmem:[%s1539 + $0xf8] sm:$0xff]
    %v1572 = vld [vmem:[%s1539 + $0x100] sm:$0xff]
    %v1573 = vld [vmem:[%s1539 + $0x108] sm:$0xff]
    %v1574 = vld [vmem:[%s1539 + $0x110] sm:$0xff]
    %v1575 = vld [vmem:[%s1539 + $0x118] sm:$0xff]
    %v1576 = vld [vmem:[%s1539 + $0x120] sm:$0xff]
    %v1577 = vld [vmem:[%s1539 + $0x128] sm:$0xff]
    %v1578 = vld [vmem:[%s1539 + $0x130] sm:$0xff]
    %v1579 = vld [vmem:[%s1539 + $0x138] sm:$0xff]
    %v1580 = vld [vmem:[%s1539 + $0x140] sm:$0xff]
    %v1581 = vld [vmem:[%s1539 + $0x148] sm:$0xff]
    %v1582 = vld [vmem:[%s1539 + $0x150] sm:$0xff]
    %v1583 = vld [vmem:[%s1539 + $0x158] sm:$0xff]
    %v1584 = vld [vmem:[%s1539 + $0x160] sm:$0xff]
    %v1585 = vld [vmem:[%s1539 + $0x168] sm:$0xff]
    %v1586 = vld [vmem:[%s1539 + $0x170] sm:$0xff]
    %v1587 = vld [vmem:[%s1539 + $0x178] sm:$0xff]
    %v1588 = vld [vmem:[%s1539 + $0x180] sm:$0xff]
    %v1589 = vld [vmem:[%s1539 + $0x188] sm:$0xff]
    %v1590 = vld [vmem:[%s1539 + $0x190] sm:$0xff]
    %v1591 = vld [vmem:[%s1539 + $0x198] sm:$0xff]
    %v1592 = vld [vmem:[%s1539 + $0x1a0] sm:$0xff]
    %v1593 = vld [vmem:[%s1539 + $0x1a8] sm:$0xff]
    %v1594 = vld [vmem:[%s1539 + $0x1b0] sm:$0xff]
    %v1595 = vld [vmem:[%s1539 + $0x1b8] sm:$0xff]
    %v1596 = vld [vmem:[%s1539 + $0x1c0] sm:$0xff]
    %v1597 = vld [vmem:[%s1539 + $0x1c8] sm:$0xff]
    %v1598 = vld [vmem:[%s1539 + $0x1d0] sm:$0xff]
    %v1599 = vld [vmem:[%s1539 + $0x1d8] sm:$0xff]
    %v1600 = vld [vmem:[%s1539 + $0x1e0] sm:$0xff]
    %v1601 = vld [vmem:[%s1539 + $0x1e8] sm:$0xff]
    %v1602 = vld [vmem:[%s1539 + $0x1f0] sm:$0xff]
    %v1603 = vld [vmem:[%s1539 + $0x1f8] sm:$0xff]
    %s1604 = scalar_lea.vmem %s8, 4
    %v1605 = vld [vmem:[%s1604] sm:$0xf]
    %v1607 = vlaneseq
    %v1608 = vshrl.u32 %v1607, 7
    %v1609 = vsub.s32 0, %v1608
    %v1610 = vrot.slane %v1605, %v1609
    %v1611 = vlaneseq
    %v1612 = vshrl.u32 %v1611, 7
    %v1613 = vsub.s32 1, %v1612
    %v1614 = vrot.slane %v1605, %v1613
    %v1615 = vlaneseq
    %v1616 = vshrl.u32 %v1615, 7
    %v1617 = vsub.s32 2, %v1616
    %v1618 = vrot.slane %v1605, %v1617
    %v1619 = vlaneseq
    %v1620 = vshrl.u32 %v1619, 7
    %v1621 = vsub.s32 3, %v1620
    %v1622 = vrot.slane %v1605, %v1621
    %1627 = vmatprep.subr.mxu0 %v1601
    %1628 = vmatpush1.msra.mxu0 %v1600
    %1629 = vmatprep.subr.mxu0 %v1597
    %1630 = vmatpush1.msra.mxu0 %v1596
    %1631 = vmatprep.subr.mxu0 %v1593
    %1632 = vmatpush1.msra.mxu0 %v1592
    %1633 = vmatprep.subr.mxu0 %v1589
    %1634 = vmatpush1.msra.mxu0 %v1588
    %1635 = vmatprep.subr.mxu0 %v1585
    %1636 = vmatpush1.msra.mxu0 %v1584
    %1637 = vmatprep.subr.mxu0 %v1581
    %1638 = vmatpush1.msra.mxu0 %v1580
    %1639 = vmatprep.subr.mxu0 %v1577
    %1640 = vmatpush1.msra.mxu0 %v1576
    %1641 = vmatprep.subr.mxu0 %v1573
    %1642 = vmatpush1.msra.mxu0 %v1572
    %1643 = vmatprep.subr.mxu0 %v1569
    %1644 = vmatpush1.msra.mxu0 %v1568
    %1645 = vmatprep.subr.mxu0 %v1565
    %1646 = vmatpush1.msra.mxu0 %v1564
    %1647 = vmatprep.subr.mxu0 %v1561
    %1648 = vmatpush1.msra.mxu0 %v1560
    %1649 = vmatprep.subr.mxu0 %v1557
    %1650 = vmatpush1.msra.mxu0 %v1556
    %1651 = vmatprep.subr.mxu0 %v1553
    %1652 = vmatpush1.msra.mxu0 %v1552
    %1653 = vmatprep.subr.mxu0 %v1549
    %1654 = vmatpush1.msra.mxu0 %v1548
    %1655 = vmatprep.subr.mxu0 %v1545
    %1656 = vmatpush1.msra.mxu0 %v1544
    %1657 = vmatprep.subr.mxu0 %v1541
    %1658 = vmatpush1.msra.mxu0 %v1540
    %1659 = vmatprep.subr.mxu0 0.0
    %1660 = vmatpush2.msra.mxu0 0.0
    %1661 = vmatprep.subr.mxu0 0.0
    %1662 = vmatpush2.msra.mxu0 0.0
    %1663 = vmatprep.subr.mxu0 0.0
    %1664 = vmatpush2.msra.mxu0 0.0
    %1665 = vmatprep.subr.mxu0 0.0
    %1666 = vmatpush2.msra.mxu0 0.0
    %1667 = vmatprep.subr.mxu0 0.0
    %1668 = vmatpush2.msra.mxu0 0.0
    %1669 = vmatprep.subr.mxu0 0.0
    %1670 = vmatpush2.msra.mxu0 0.0
    %1671 = vmatprep.subr.mxu0 0.0
    %1672 = vmatpush2.msra.mxu0 0.0
    %1673 = vmatprep.subr.mxu0 0.0
    %1674 = vmatpush2.msra.mxu0 0.0
    %1675 = vmatprep.subr.mxu0 0.0
    %1676 = vmatpush2.msra.mxu0 0.0
    %1677 = vmatprep.subr.mxu0 0.0
    %1678 = vmatpush2.msra.mxu0 0.0
    %1679 = vmatprep.subr.mxu0 0.0
    %1680 = vmatpush2.msra.mxu0 0.0
    %1681 = vmatprep.subr.mxu0 0.0
    %1682 = vmatpush2.msra.mxu0 0.0
    %1683 = vmatprep.subr.mxu0 0.0
    %1684 = vmatpush2.msra.mxu0 0.0
    %1685 = vmatprep.subr.mxu0 0.0
    %1686 = vmatpush2.msra.mxu0 0.0
    %1687 = vmatprep.subr.mxu0 0.0
    %1688 = vmatpush2.msra.mxu0 0.0
    %1689 = vmatprep.subr.mxu0 0.0
    %1690 = vmatpush2.msra.mxu0 0.0
    %1691 = vmatprep.mubr.f32.mxu0 0.0
    %1692 = vmatmul.mubr.f32.gmra.mxu0 %v1531
    %v1693 = vpop.f32.mrf.mxu0
    %v1694 = vadd.f32 %v1610, %v1693
    %v1695 = vpop.f32.mrf.mxu0
    %v1696 = vadd.f32 %v1614, %v1695
    %1697 = vmatprep.mubr.f32.mxu0 0.0
    %1698 = vmatmul.mubr.f32.gmra.mxu0 %v1532
    %v1699 = vpop.f32.mrf.mxu0
    %v1700 = vadd.f32 %v1610, %v1699
    %v1701 = vpop.f32.mrf.mxu0
    %v1702 = vadd.f32 %v1614, %v1701
    %1703 = vmatprep.mubr.f32.mxu0 0.0
    %1704 = vmatmul.mubr.f32.gmra.mxu0 %v1533
    %v1705 = vpop.f32.mrf.mxu0
    %v1706 = vadd.f32 %v1610, %v1705
    %v1707 = vpop.f32.mrf.mxu0
    %v1708 = vadd.f32 %v1614, %v1707
    %1709 = vmatprep.mubr.f32.mxu0 0.0
    %1710 = vmatmul.mubr.f32.gmra.mxu0 %v1534
    %v1711 = vpop.f32.mrf.mxu0
    %v1712 = vadd.f32 %v1610, %v1711
    %v1713 = vpop.f32.mrf.mxu0
    %v1714 = vadd.f32 %v1614, %v1713
    %1715 = vmatprep.mubr.f32.mxu0 0.0
    %1716 = vmatmul.mubr.f32.gmra.mxu0 %v1535
    %v1717 = vpop.f32.mrf.mxu0
    %v1718 = vadd.f32 %v1610, %v1717
    %v1719 = vpop.f32.mrf.mxu0
    %v1720 = vadd.f32 %v1614, %v1719
    %1721 = vmatprep.mubr.f32.mxu0 0.0
    %1722 = vmatmul.mubr.f32.gmra.mxu0 %v1536
    %v1723 = vpop.f32.mrf.mxu0
    %v1724 = vadd.f32 %v1610, %v1723
    %v1725 = vpop.f32.mrf.mxu0
    %v1726 = vadd.f32 %v1614, %v1725
    %1727 = vmatprep.mubr.f32.mxu0 0.0
    %1728 = vmatmul.mubr.f32.gmra.mxu0 %v1537
    %v1729 = vpop.f32.mrf.mxu0
    %v1730 = vadd.f32 %v1610, %v1729
    %v1731 = vpop.f32.mrf.mxu0
    %v1732 = vadd.f32 %v1614, %v1731
    %1733 = vmatprep.mubr.f32.mxu0 0.0
    %1734 = vmatmul.mubr.f32.gmra.mxu0 %v1538
    %v1735 = vpop.f32.mrf.mxu0
    %v1736 = vadd.f32 %v1610, %v1735
    %v1737 = vpop.f32.mrf.mxu0
    %v1738 = vadd.f32 %v1614, %v1737
    %1739 = vdwg.mxu0
    %1740 = vmatprep.subr.mxu0 %v1603
    %1741 = vmatpush1.msra.mxu0 %v1602
    %1742 = vmatprep.subr.mxu0 %v1599
    %1743 = vmatpush1.msra.mxu0 %v1598
    %1744 = vmatprep.subr.mxu0 %v1595
    %1745 = vmatpush1.msra.mxu0 %v1594
    %1746 = vmatprep.subr.mxu0 %v1591
    %1747 = vmatpush1.msra.mxu0 %v1590
    %1748 = vmatprep.subr.mxu0 %v1587
    %1749 = vmatpush1.msra.mxu0 %v1586
    %1750 = vmatprep.subr.mxu0 %v1583
    %1751 = vmatpush1.msra.mxu0 %v1582
    %1752 = vmatprep.subr.mxu0 %v1579
    %1753 = vmatpush1.msra.mxu0 %v1578
    %1754 = vmatprep.subr.mxu0 %v1575
    %1755 = vmatpush1.msra.mxu0 %v1574
    %1756 = vmatprep.subr.mxu0 %v1571
    %1757 = vmatpush1.msra.mxu0 %v1570
    %1758 = vmatprep.subr.mxu0 %v1567
    %1759 = vmatpush1.msra.mxu0 %v1566
    %1760 = vmatprep.subr.mxu0 %v1563
    %1761 = vmatpush1.msra.mxu0 %v1562
    %1762 = vmatprep.subr.mxu0 %v1559
    %1763 = vmatpush1.msra.mxu0 %v1558
    %1764 = vmatprep.subr.mxu0 %v1555
    %1765 = vmatpush1.msra.mxu0 %v1554
    %1766 = vmatprep.subr.mxu0 %v1551
    %1767 = vmatpush1.msra.mxu0 %v1550
    %1768 = vmatprep.subr.mxu0 %v1547
    %1769 = vmatpush1.msra.mxu0 %v1546
    %1770 = vmatprep.subr.mxu0 %v1543
    %1771 = vmatpush1.msra.mxu0 %v1542
    %1772 = vmatprep.subr.mxu0 0.0
    %1773 = vmatpush2.msra.mxu0 0.0
    %1774 = vmatprep.subr.mxu0 0.0
    %1775 = vmatpush2.msra.mxu0 0.0
    %1776 = vmatprep.subr.mxu0 0.0
    %1777 = vmatpush2.msra.mxu0 0.0
    %1778 = vmatprep.subr.mxu0 0.0
    %1779 = vmatpush2.msra.mxu0 0.0
    %1780 = vmatprep.subr.mxu0 0.0
    %1781 = vmatpush2.msra.mxu0 0.0
    %1782 = vmatprep.subr.mxu0 0.0
    %1783 = vmatpush2.msra.mxu0 0.0
    %1784 = vmatprep.subr.mxu0 0.0
    %1785 = vmatpush2.msra.mxu0 0.0
    %1786 = vmatprep.subr.mxu0 0.0
    %1787 = vmatpush2.msra.mxu0 0.0
    %1788 = vmatprep.subr.mxu0 0.0
    %1789 = vmatpush2.msra.mxu0 0.0
    %1790 = vmatprep.subr.mxu0 0.0
    %1791 = vmatpush2.msra.mxu0 0.0
    %1792 = vmatprep.subr.mxu0 0.0
    %1793 = vmatpush2.msra.mxu0 0.0
    %1794 = vmatprep.subr.mxu0 0.0
    %1795 = vmatpush2.msra.mxu0 0.0
    %1796 = vmatprep.subr.mxu0 0.0
    %1797 = vmatpush2.msra.mxu0 0.0
    %1798 = vmatprep.subr.mxu0 0.0
    %1799 = vmatpush2.msra.mxu0 0.0
    %1800 = vmatprep.subr.mxu0 0.0
    %1801 = vmatpush2.msra.mxu0 0.0
    %1802 = vmatprep.subr.mxu0 0.0
    %1803 = vmatpush2.msra.mxu0 0.0
    %1804 = vmatprep.mubr.f32.mxu0 0.0
    %1805 = vmatmul.mubr.f32.gmra.mxu0 %v1531
    %v1806 = vpop.f32.mrf.mxu0
    %v1807 = vadd.f32 %v1618, %v1806
    %v1808 = vpop.f32.mrf.mxu0
    %v1809 = vadd.f32 %v1622, %v1808
    %1810 = vmatprep.mubr.f32.mxu0 0.0
    %1811 = vmatmul.mubr.f32.gmra.mxu0 %v1532
    %v1812 = vpop.f32.mrf.mxu0
    %v1813 = vadd.f32 %v1618, %v1812
    %v1814 = vpop.f32.mrf.mxu0
    %v1815 = vadd.f32 %v1622, %v1814
    %1816 = vmatprep.mubr.f32.mxu0 0.0
    %1817 = vmatmul.mubr.f32.gmra.mxu0 %v1533
    %v1818 = vpop.f32.mrf.mxu0
    %v1819 = vadd.f32 %v1618, %v1818
    %v1820 = vpop.f32.mrf.mxu0
    %v1821 = vadd.f32 %v1622, %v1820
    %1822 = vmatprep.mubr.f32.mxu0 0.0
    %1823 = vmatmul.mubr.f32.gmra.mxu0 %v1534
    %v1824 = vpop.f32.mrf.mxu0
    %v1825 = vadd.f32 %v1618, %v1824
    %v1826 = vpop.f32.mrf.mxu0
    %v1827 = vadd.f32 %v1622, %v1826
    %1828 = vmatprep.mubr.f32.mxu0 0.0
    %1829 = vmatmul.mubr.f32.gmra.mxu0 %v1535
    %v1830 = vpop.f32.mrf.mxu0
    %v1831 = vadd.f32 %v1618, %v1830
    %v1832 = vpop.f32.mrf.mxu0
    %v1833 = vadd.f32 %v1622, %v1832
    %1834 = vmatprep.mubr.f32.mxu0 0.0
    %1835 = vmatmul.mubr.f32.gmra.mxu0 %v1536
    %v1836 = vpop.f32.mrf.mxu0
    %v1837 = vadd.f32 %v1618, %v1836
    %v1838 = vpop.f32.mrf.mxu0
    %v1839 = vadd.f32 %v1622, %v1838
    %1840 = vmatprep.mubr.f32.mxu0 0.0
    %1841 = vmatmul.mubr.f32.gmra.mxu0 %v1537
    %v1842 = vpop.f32.mrf.mxu0
    %v1843 = vadd.f32 %v1618, %v1842
    %v1844 = vpop.f32.mrf.mxu0
    %v1845 = vadd.f32 %v1622, %v1844
    %1846 = vmatprep.mubr.f32.mxu0 0.0
    %1847 = vmatmul.mubr.f32.gmra.mxu0 %v1538
    %v1848 = vpop.f32.mrf.mxu0
    %v1849 = vadd.f32 %v1618, %v1848
    %v1850 = vpop.f32.mrf.mxu0
    %v1851 = vadd.f32 %v1622, %v1850
    %1852 = vdwg.mxu0
    %v1853 = vmax.f32 %v1694, 0.0
    %v1854 = vmax.f32 %v1696, 0.0
    %v1855 = vmax.f32 %v1807, 0.0
    %v1856 = vmax.f32 %v1809, 0.0
    %v1857 = vmax.f32 %v1700, 0.0
    %v1858 = vmax.f32 %v1702, 0.0
    %v1859 = vmax.f32 %v1813, 0.0
    %v1860 = vmax.f32 %v1815, 0.0
    %v1861 = vmax.f32 %v1706, 0.0
    %v1862 = vmax.f32 %v1708, 0.0
    %v1863 = vmax.f32 %v1819, 0.0
    %v1864 = vmax.f32 %v1821, 0.0
    %v1865 = vmax.f32 %v1712, 0.0
    %v1866 = vmax.f32 %v1714, 0.0
    %v1867 = vmax.f32 %v1825, 0.0
    %v1868 = vmax.f32 %v1827, 0.0
    %v1869 = vmax.f32 %v1718, 0.0
    %v1870 = vmax.f32 %v1720, 0.0
    %v1871 = vmax.f32 %v1831, 0.0
    %v1872 = vmax.f32 %v1833, 0.0
    %v1873 = vmax.f32 %v1724, 0.0
    %v1874 = vmax.f32 %v1726, 0.0
    %v1875 = vmax.f32 %v1837, 0.0
    %v1876 = vmax.f32 %v1839, 0.0
    %v1877 = vmax.f32 %v1730, 0.0
    %v1878 = vmax.f32 %v1732, 0.0
    %v1879 = vmax.f32 %v1843, 0.0
    %v1880 = vmax.f32 %v1845, 0.0
    %v1881 = vmax.f32 %v1736, 0.0
    %v1882 = vmax.f32 %v1738, 0.0
    %v1883 = vmax.f32 %v1849, 0.0
    %v1884 = vmax.f32 %v1851, 0.0
    %s1885 = scalar_lea.vmem [#allocation7], 512
    %v1886 = vld [vmem:[%s1885] sm:$0xff]
    %v1887 = vld [vmem:[%s1885 + $0x8] sm:$0xff]
    %v1888 = vld [vmem:[%s1885 + $0x10] sm:$0xff]
    %v1889 = vld [vmem:[%s1885 + $0x18] sm:$0xff]
    %v1890 = vld [vmem:[%s1885 + $0x20] sm:$0xff]
    %v1891 = vld [vmem:[%s1885 + $0x28] sm:$0xff]
    %v1892 = vld [vmem:[%s1885 + $0x30] sm:$0xff]
    %v1893 = vld [vmem:[%s1885 + $0x38] sm:$0xff]
    %v1894 = vld [vmem:[%s1885 + $0x40] sm:$0xff]
    %v1895 = vld [vmem:[%s1885 + $0x48] sm:$0xff]
    %v1896 = vld [vmem:[%s1885 + $0x50] sm:$0xff]
    %v1897 = vld [vmem:[%s1885 + $0x58] sm:$0xff]
    %v1898 = vld [vmem:[%s1885 + $0x60] sm:$0xff]
    %v1899 = vld [vmem:[%s1885 + $0x68] sm:$0xff]
    %v1900 = vld [vmem:[%s1885 + $0x70] sm:$0xff]
    %v1901 = vld [vmem:[%s1885 + $0x78] sm:$0xff]
    %v1902 = vld [vmem:[%s1885 + $0x80] sm:$0xff]
    %v1903 = vld [vmem:[%s1885 + $0x88] sm:$0xff]
    %v1904 = vld [vmem:[%s1885 + $0x90] sm:$0xff]
    %v1905 = vld [vmem:[%s1885 + $0x98] sm:$0xff]
    %v1906 = vld [vmem:[%s1885 + $0xa0] sm:$0xff]
    %v1907 = vld [vmem:[%s1885 + $0xa8] sm:$0xff]
    %v1908 = vld [vmem:[%s1885 + $0xb0] sm:$0xff]
    %v1909 = vld [vmem:[%s1885 + $0xb8] sm:$0xff]
    %v1910 = vld [vmem:[%s1885 + $0xc0] sm:$0xff]
    %v1911 = vld [vmem:[%s1885 + $0xc8] sm:$0xff]
    %v1912 = vld [vmem:[%s1885 + $0xd0] sm:$0xff]
    %v1913 = vld [vmem:[%s1885 + $0xd8] sm:$0xff]
    %v1914 = vld [vmem:[%s1885 + $0xe0] sm:$0xff]
    %v1915 = vld [vmem:[%s1885 + $0xe8] sm:$0xff]
    %v1916 = vld [vmem:[%s1885 + $0xf0] sm:$0xff]
    %v1917 = vld [vmem:[%s1885 + $0xf8] sm:$0xff]
    %v1918 = vld [vmem:[%s1885 + $0x100] sm:$0xff]
    %v1919 = vld [vmem:[%s1885 + $0x108] sm:$0xff]
    %v1920 = vld [vmem:[%s1885 + $0x110] sm:$0xff]
    %v1921 = vld [vmem:[%s1885 + $0x118] sm:$0xff]
    %v1922 = vld [vmem:[%s1885 + $0x120] sm:$0xff]
    %v1923 = vld [vmem:[%s1885 + $0x128] sm:$0xff]
    %v1924 = vld [vmem:[%s1885 + $0x130] sm:$0xff]
    %v1925 = vld [vmem:[%s1885 + $0x138] sm:$0xff]
    %v1926 = vld [vmem:[%s1885 + $0x140] sm:$0xff]
    %v1927 = vld [vmem:[%s1885 + $0x148] sm:$0xff]
    %v1928 = vld [vmem:[%s1885 + $0x150] sm:$0xff]
    %v1929 = vld [vmem:[%s1885 + $0x158] sm:$0xff]
    %v1930 = vld [vmem:[%s1885 + $0x160] sm:$0xff]
    %v1931 = vld [vmem:[%s1885 + $0x168] sm:$0xff]
    %v1932 = vld [vmem:[%s1885 + $0x170] sm:$0xff]
    %v1933 = vld [vmem:[%s1885 + $0x178] sm:$0xff]
    %v1934 = vld [vmem:[%s1885 + $0x180] sm:$0xff]
    %v1935 = vld [vmem:[%s1885 + $0x188] sm:$0xff]
    %v1936 = vld [vmem:[%s1885 + $0x190] sm:$0xff]
    %v1937 = vld [vmem:[%s1885 + $0x198] sm:$0xff]
    %v1938 = vld [vmem:[%s1885 + $0x1a0] sm:$0xff]
    %v1939 = vld [vmem:[%s1885 + $0x1a8] sm:$0xff]
    %v1940 = vld [vmem:[%s1885 + $0x1b0] sm:$0xff]
    %v1941 = vld [vmem:[%s1885 + $0x1b8] sm:$0xff]
    %v1942 = vld [vmem:[%s1885 + $0x1c0] sm:$0xff]
    %v1943 = vld [vmem:[%s1885 + $0x1c8] sm:$0xff]
    %v1944 = vld [vmem:[%s1885 + $0x1d0] sm:$0xff]
    %v1945 = vld [vmem:[%s1885 + $0x1d8] sm:$0xff]
    %v1946 = vld [vmem:[%s1885 + $0x1e0] sm:$0xff]
    %v1947 = vld [vmem:[%s1885 + $0x1e8] sm:$0xff]
    %v1948 = vld [vmem:[%s1885 + $0x1f0] sm:$0xff]
    %v1949 = vld [vmem:[%s1885 + $0x1f8] sm:$0xff]
    %s1950 = scalar_lea.vmem %s10, 1
    %v1951 = vld [vmem:[%s1950] sm:$0x1]
    %v1953 = vlaneseq
    %v1954 = vshrl.u32 %v1953, 7
    %v1955 = vsub.s32 0, %v1954
    %v1956 = vrot.slane %v1951, %v1955
    %1958 = vmatprep.subr.mxu0 0.0
    %1959 = vmatpush1.msra.mxu0 %v1901
    %1960 = vmatprep.subr.mxu0 0.0
    %1961 = vmatpush1.msra.mxu0 %v1900
    %1962 = vmatprep.subr.mxu0 0.0
    %1963 = vmatpush1.msra.mxu0 %v1899
    %1964 = vmatprep.subr.mxu0 0.0
    %1965 = vmatpush1.msra.mxu0 %v1898
    %1966 = vmatprep.subr.mxu0 0.0
    %1967 = vmatpush1.msra.mxu0 %v1897
    %1968 = vmatprep.subr.mxu0 0.0
    %1969 = vmatpush1.msra.mxu0 %v1896
    %1970 = vmatprep.subr.mxu0 0.0
    %1971 = vmatpush1.msra.mxu0 %v1895
    %1972 = vmatprep.subr.mxu0 0.0
    %1973 = vmatpush1.msra.mxu0 %v1894
    %1974 = vmatprep.subr.mxu0 0.0
    %1975 = vmatpush1.msra.mxu0 %v1893
    %1976 = vmatprep.subr.mxu0 0.0
    %1977 = vmatpush1.msra.mxu0 %v1892
    %1978 = vmatprep.subr.mxu0 0.0
    %1979 = vmatpush1.msra.mxu0 %v1891
    %1980 = vmatprep.subr.mxu0 0.0
    %1981 = vmatpush1.msra.mxu0 %v1890
    %1982 = vmatprep.subr.mxu0 0.0
    %1983 = vmatpush1.msra.mxu0 %v1889
    %1984 = vmatprep.subr.mxu0 0.0
    %1985 = vmatpush1.msra.mxu0 %v1888
    %1986 = vmatprep.subr.mxu0 0.0
    %1987 = vmatpush1.msra.mxu0 %v1887
    %1988 = vmatprep.subr.mxu0 0.0
    %1989 = vmatpush1.msra.mxu0 %v1886
    %1990 = vmatprep.subr.mxu0 0.0
    %1991 = vmatpush2.msra.mxu0 %v1917
    %1992 = vmatprep.subr.mxu0 0.0
    %1993 = vmatpush2.msra.mxu0 %v1916
    %1994 = vmatprep.subr.mxu0 0.0
    %1995 = vmatpush2.msra.mxu0 %v1915
    %1996 = vmatprep.subr.mxu0 0.0
    %1997 = vmatpush2.msra.mxu0 %v1914
    %1998 = vmatprep.subr.mxu0 0.0
    %1999 = vmatpush2.msra.mxu0 %v1913
    %2000 = vmatprep.subr.mxu0 0.0
    %2001 = vmatpush2.msra.mxu0 %v1912
    %2002 = vmatprep.subr.mxu0 0.0
    %2003 = vmatpush2.msra.mxu0 %v1911
    %2004 = vmatprep.subr.mxu0 0.0
    %2005 = vmatpush2.msra.mxu0 %v1910
    %2006 = vmatprep.subr.mxu0 0.0
    %2007 = vmatpush2.msra.mxu0 %v1909
    %2008 = vmatprep.subr.mxu0 0.0
    %2009 = vmatpush2.msra.mxu0 %v1908
    %2010 = vmatprep.subr.mxu0 0.0
    %2011 = vmatpush2.msra.mxu0 %v1907
    %2012 = vmatprep.subr.mxu0 0.0
    %2013 = vmatpush2.msra.mxu0 %v1906
    %2014 = vmatprep.subr.mxu0 0.0
    %2015 = vmatpush2.msra.mxu0 %v1905
    %2016 = vmatprep.subr.mxu0 0.0
    %2017 = vmatpush2.msra.mxu0 %v1904
    %2018 = vmatprep.subr.mxu0 0.0
    %2019 = vmatpush2.msra.mxu0 %v1903
    %2020 = vmatprep.subr.mxu0 0.0
    %2021 = vmatpush2.msra.mxu0 %v1902
    %2022 = vmatprep.mubr.f32.mxu0 %v1854
    %2023 = vmatmul.mubr.f32.gmra.mxu0 %v1853
    %v2024 = vpop.f32.mrf.mxu0
    %v2025 = vadd.f32 %v1956, %v2024
    %v2026 = vpop.f32.mrf.mxu0
    %2027 = vmatprep.mubr.f32.mxu0 %v1858
    %2028 = vmatmul.mubr.f32.gmra.mxu0 %v1857
    %v2029 = vpop.f32.mrf.mxu0
    %v2030 = vadd.f32 %v1956, %v2029
    %v2031 = vpop.f32.mrf.mxu0
    %2032 = vmatprep.mubr.f32.mxu0 %v1862
    %2033 = vmatmul.mubr.f32.gmra.mxu0 %v1861
    %v2034 = vpop.f32.mrf.mxu0
    %v2035 = vadd.f32 %v1956, %v2034
    %v2036 = vpop.f32.mrf.mxu0
    %2037 = vmatprep.mubr.f32.mxu0 %v1866
    %2038 = vmatmul.mubr.f32.gmra.mxu0 %v1865
    %v2039 = vpop.f32.mrf.mxu0
    %v2040 = vadd.f32 %v1956, %v2039
    %v2041 = vpop.f32.mrf.mxu0
    %2042 = vmatprep.mubr.f32.mxu0 %v1870
    %2043 = vmatmul.mubr.f32.gmra.mxu0 %v1869
    %v2044 = vpop.f32.mrf.mxu0
    %v2045 = vadd.f32 %v1956, %v2044
    %v2046 = vpop.f32.mrf.mxu0
    %2047 = vmatprep.mubr.f32.mxu0 %v1874
    %2048 = vmatmul.mubr.f32.gmra.mxu0 %v1873
    %v2049 = vpop.f32.mrf.mxu0
    %v2050 = vadd.f32 %v1956, %v2049
    %v2051 = vpop.f32.mrf.mxu0
    %2052 = vmatprep.mubr.f32.mxu0 %v1878
    %2053 = vmatmul.mubr.f32.gmra.mxu0 %v1877
    %v2054 = vpop.f32.mrf.mxu0
    %v2055 = vadd.f32 %v1956, %v2054
    %v2056 = vpop.f32.mrf.mxu0
    %2057 = vmatprep.mubr.f32.mxu0 %v1882
    %2058 = vmatmul.mubr.f32.gmra.mxu0 %v1881
    %v2059 = vpop.f32.mrf.mxu0
    %v2060 = vadd.f32 %v1956, %v2059
    %v2061 = vpop.f32.mrf.mxu0
    %2062 = vdwg.mxu0
    %2063 = vmatprep.subr.mxu0 0.0
    %2064 = vmatpush1.msra.mxu0 %v1933
    %2065 = vmatprep.subr.mxu0 0.0
    %2066 = vmatpush1.msra.mxu0 %v1932
    %2067 = vmatprep.subr.mxu0 0.0
    %2068 = vmatpush1.msra.mxu0 %v1931
    %2069 = vmatprep.subr.mxu0 0.0
    %2070 = vmatpush1.msra.mxu0 %v1930
    %2071 = vmatprep.subr.mxu0 0.0
    %2072 = vmatpush1.msra.mxu0 %v1929
    %2073 = vmatprep.subr.mxu0 0.0
    %2074 = vmatpush1.msra.mxu0 %v1928
    %2075 = vmatprep.subr.mxu0 0.0
    %2076 = vmatpush1.msra.mxu0 %v1927
    %2077 = vmatprep.subr.mxu0 0.0
    %2078 = vmatpush1.msra.mxu0 %v1926
    %2079 = vmatprep.subr.mxu0 0.0
    %2080 = vmatpush1.msra.mxu0 %v1925
    %2081 = vmatprep.subr.mxu0 0.0
    %2082 = vmatpush1.msra.mxu0 %v1924
    %2083 = vmatprep.subr.mxu0 0.0
    %2084 = vmatpush1.msra.mxu0 %v1923
    %2085 = vmatprep.subr.mxu0 0.0
    %2086 = vmatpush1.msra.mxu0 %v1922
    %2087 = vmatprep.subr.mxu0 0.0
    %2088 = vmatpush1.msra.mxu0 %v1921
    %2089 = vmatprep.subr.mxu0 0.0
    %2090 = vmatpush1.msra.mxu0 %v1920
    %2091 = vmatprep.subr.mxu0 0.0
    %2092 = vmatpush1.msra.mxu0 %v1919
    %2093 = vmatprep.subr.mxu0 0.0
    %2094 = vmatpush1.msra.mxu0 %v1918
    %2095 = vmatprep.subr.mxu0 0.0
    %2096 = vmatpush2.msra.mxu0 %v1949
    %2097 = vmatprep.subr.mxu0 0.0
    %2098 = vmatpush2.msra.mxu0 %v1948
    %2099 = vmatprep.subr.mxu0 0.0
    %2100 = vmatpush2.msra.mxu0 %v1947
    %2101 = vmatprep.subr.mxu0 0.0
    %2102 = vmatpush2.msra.mxu0 %v1946
    %2103 = vmatprep.subr.mxu0 0.0
    %2104 = vmatpush2.msra.mxu0 %v1945
    %2105 = vmatprep.subr.mxu0 0.0
    %2106 = vmatpush2.msra.mxu0 %v1944
    %2107 = vmatprep.subr.mxu0 0.0
    %2108 = vmatpush2.msra.mxu0 %v1943
    %2109 = vmatprep.subr.mxu0 0.0
    %2110 = vmatpush2.msra.mxu0 %v1942
    %2111 = vmatprep.subr.mxu0 0.0
    %2112 = vmatpush2.msra.mxu0 %v1941
    %2113 = vmatprep.subr.mxu0 0.0
    %2114 = vmatpush2.msra.mxu0 %v1940
    %2115 = vmatprep.subr.mxu0 0.0
    %2116 = vmatpush2.msra.mxu0 %v1939
    %2117 = vmatprep.subr.mxu0 0.0
    %2118 = vmatpush2.msra.mxu0 %v1938
    %2119 = vmatprep.subr.mxu0 0.0
    %2120 = vmatpush2.msra.mxu0 %v1937
    %2121 = vmatprep.subr.mxu0 0.0
    %2122 = vmatpush2.msra.mxu0 %v1936
    %2123 = vmatprep.subr.mxu0 0.0
    %2124 = vmatpush2.msra.mxu0 %v1935
    %2125 = vmatprep.subr.mxu0 0.0
    %2126 = vmatpush2.msra.mxu0 %v1934
    %2127 = vmatprep.mubr.f32.mxu0 %v1856
    %2128 = vmatmul.mubr.f32.gmra.mxu0 %v1855
    %v2129 = vpop.f32.mrf.mxu0
    %v2130 = vadd.f32 %v2025, %v2129
    %v2131 = vpop.f32.mrf.mxu0
    %2132 = vmatprep.mubr.f32.mxu0 %v1860
    %2133 = vmatmul.mubr.f32.gmra.mxu0 %v1859
    %v2134 = vpop.f32.mrf.mxu0
    %v2135 = vadd.f32 %v2030, %v2134
    %v2136 = vpop.f32.mrf.mxu0
    %2137 = vmatprep.mubr.f32.mxu0 %v1864
    %2138 = vmatmul.mubr.f32.gmra.mxu0 %v1863
    %v2139 = vpop.f32.mrf.mxu0
    %v2140 = vadd.f32 %v2035, %v2139
    %v2141 = vpop.f32.mrf.mxu0
    %2142 = vmatprep.mubr.f32.mxu0 %v1868
    %2143 = vmatmul.mubr.f32.gmra.mxu0 %v1867
    %v2144 = vpop.f32.mrf.mxu0
    %v2145 = vadd.f32 %v2040, %v2144
    %v2146 = vpop.f32.mrf.mxu0
    %2147 = vmatprep.mubr.f32.mxu0 %v1872
    %2148 = vmatmul.mubr.f32.gmra.mxu0 %v1871
    %v2149 = vpop.f32.mrf.mxu0
    %v2150 = vadd.f32 %v2045, %v2149
    %v2151 = vpop.f32.mrf.mxu0
    %2152 = vmatprep.mubr.f32.mxu0 %v1876
    %2153 = vmatmul.mubr.f32.gmra.mxu0 %v1875
    %v2154 = vpop.f32.mrf.mxu0
    %v2155 = vadd.f32 %v2050, %v2154
    %v2156 = vpop.f32.mrf.mxu0
    %2157 = vmatprep.mubr.f32.mxu0 %v1880
    %2158 = vmatmul.mubr.f32.gmra.mxu0 %v1879
    %v2159 = vpop.f32.mrf.mxu0
    %v2160 = vadd.f32 %v2055, %v2159
    %v2161 = vpop.f32.mrf.mxu0
    %2162 = vmatprep.mubr.f32.mxu0 %v1884
    %2163 = vmatmul.mubr.f32.gmra.mxu0 %v1883
    %v2164 = vpop.f32.mrf.mxu0
    %v2165 = vadd.f32 %v2060, %v2164
    %v2166 = vpop.f32.mrf.mxu0
    %2167 = vdwg.mxu0
    %v2168 = vadd.f32 %v1531, %v2130
    %v2169 = vadd.f32 %v1532, %v2135
    %v2170 = vadd.f32 %v1533, %v2140
    %v2171 = vadd.f32 %v1534, %v2145
    %v2172 = vadd.f32 %v1535, %v2150
    %v2173 = vadd.f32 %v1536, %v2155
    %v2174 = vadd.f32 %v1537, %v2160
    %v2175 = vadd.f32 %v1538, %v2165
    %s2176 = scalar_lea.vmem %s11, 1
    %v2177 = vld [vmem:[%s2176] sm:$0x1]
    %s2178 = scalar_lea.vmem %s12, 1
    %v2179 = vld [vmem:[%s2178] sm:$0x1]
    %2180 = vadd.xlane.f32.xlu0 %v2168
    %v2181 = vpop.xlane.xlu0 %2180
    %2182 = vadd.xlane.f32.xlu0 %v2169
    %v2183 = vpop.xlane.xlu0 %2182
    %2184 = vadd.xlane.f32.xlu0 %v2170
    %v2185 = vpop.xlane.xlu0 %2184
    %2186 = vadd.xlane.f32.xlu0 %v2171
    %v2187 = vpop.xlane.xlu0 %2186
    %2188 = vadd.xlane.f32.xlu0 %v2172
    %v2189 = vpop.xlane.xlu0 %2188
    %2190 = vadd.xlane.f32.xlu0 %v2173
    %v2191 = vpop.xlane.xlu0 %2190
    %2192 = vadd.xlane.f32.xlu0 %v2174
    %v2193 = vpop.xlane.xlu0 %2192
    %2194 = vadd.xlane.f32.xlu0 %v2175
    %v2195 = vpop.xlane.xlu0 %2194
    %v2196 = vmul.f32 %v2181, %v429
    %v2197 = vmul.f32 %v2183, %v429
    %v2198 = vmul.f32 %v2185, %v429
    %v2199 = vmul.f32 %v2187, %v429
    %v2200 = vmul.f32 %v2189, %v429
    %v2201 = vmul.f32 %v2191, %v429
    %v2202 = vmul.f32 %v2193, %v429
    %v2203 = vmul.f32 %v2195, %v429
    %v2204 = vsub.f32 %v2168, %v2196
    %v2205 = vsub.f32 %v2169, %v2197
    %v2206 = vsub.f32 %v2170, %v2198
    %v2207 = vsub.f32 %v2171, %v2199
    %v2208 = vsub.f32 %v2172, %v2200
    %v2209 = vsub.f32 %v2173, %v2201
    %v2210 = vsub.f32 %v2174, %v2202
    %v2211 = vsub.f32 %v2175, %v2203
    %v2212 = vmul.f32 %v2204, %v2204
    %v2213 = vmul.f32 %v2205, %v2205
    %v2214 = vmul.f32 %v2206, %v2206
    %v2215 = vmul.f32 %v2207, %v2207
    %v2216 = vmul.f32 %v2208, %v2208
    %v2217 = vmul.f32 %v2209, %v2209
    %v2218 = vmul.f32 %v2210, %v2210
    %v2219 = vmul.f32 %v2211, %v2211
    %2220 = vadd.xlane.f32.xlu0 %v2212
    %v2221 = vpop.xlane.xlu0 %2220
    %2222 = vadd.xlane.f32.xlu0 %v2213
    %v2223 = vpop.xlane.xlu0 %2222
    %2224 = vadd.xlane.f32.xlu0 %v2214
    %v2225 = vpop.xlane.xlu0 %2224
    %2226 = vadd.xlane.f32.xlu0 %v2215
    %v2227 = vpop.xlane.xlu0 %2226
    %2228 = vadd.xlane.f32.xlu0 %v2216
    %v2229 = vpop.xlane.xlu0 %2228
    %2230 = vadd.xlane.f32.xlu0 %v2217
    %v2231 = vpop.xlane.xlu0 %2230
    %2232 = vadd.xlane.f32.xlu0 %v2218
    %v2233 = vpop.xlane.xlu0 %2232
    %2234 = vadd.xlane.f32.xlu0 %v2219
    %v2235 = vpop.xlane.xlu0 %2234
    %v2236 = vmul.f32 %v2221, %v429
    %v2237 = vmul.f32 %v2223, %v429
    %v2238 = vmul.f32 %v2225, %v429
    %v2239 = vmul.f32 %v2227, %v429
    %v2240 = vmul.f32 %v2229, %v429
    %v2241 = vmul.f32 %v2231, %v429
    %v2242 = vmul.f32 %v2233, %v429
    %v2243 = vmul.f32 %v2235, %v429
    %v2244 = vadd.f32 %v2236, 1e-05
    %v2245 = vadd.f32 %v2237, 1e-05
    %v2246 = vadd.f32 %v2238, 1e-05
    %v2247 = vadd.f32 %v2239, 1e-05
    %v2248 = vadd.f32 %v2240, 1e-05
    %v2249 = vadd.f32 %v2241, 1e-05
    %v2250 = vadd.f32 %v2242, 1e-05
    %v2251 = vadd.f32 %v2243, 1e-05
    %v2252 = vrsqrt.pop %v2244
    %v2253 = vrsqrt.pop %v2245
    %v2254 = vrsqrt.pop %v2246
    %v2255 = vrsqrt.pop %v2247
    %v2256 = vrsqrt.pop %v2248
    %v2257 = vrsqrt.pop %v2249
    %v2258 = vrsqrt.pop %v2250
    %v2259 = vrsqrt.pop %v2251
    %v2260 = vmul.f32 %v2204, %v2252
    %v2261 = vmul.f32 %v2205, %v2253
    %v2262 = vmul.f32 %v2206, %v2254
    %v2263 = vmul.f32 %v2207, %v2255
    %v2264 = vmul.f32 %v2208, %v2256
    %v2265 = vmul.f32 %v2209, %v2257
    %v2266 = vmul.f32 %v2210, %v2258
    %v2267 = vmul.f32 %v2211, %v2259
    %v2269 = vlaneseq
    %v2270 = vshrl.u32 %v2269, 7
    %v2271 = vsub.s32 0, %v2270
    %v2272 = vrot.slane %v2177, %v2271
    %v2274 = vmul.f32 %v2260, %v2272
    %v2275 = vmul.f32 %v2261, %v2272
    %v2276 = vmul.f32 %v2262, %v2272
    %v2277 = vmul.f32 %v2263, %v2272
    %v2278 = vmul.f32 %v2264, %v2272
    %v2279 = vmul.f32 %v2265, %v2272
    %v2280 = vmul.f32 %v2266, %v2272
    %v2281 = vmul.f32 %v2267, %v2272
    %v2283 = vlaneseq
    %v2284 = vshrl.u32 %v2283, 7
    %v2285 = vsub.s32 0, %v2284
    %v2286 = vrot.slane %v2179, %v2285
    %v2288 = vadd.f32 %v2274, %v2286
    %v2289 = vadd.f32 %v2275, %v2286
    %v2290 = vadd.f32 %v2276, %v2286
    %v2291 = vadd.f32 %v2277, %v2286
    %v2292 = vadd.f32 %v2278, %v2286
    %v2293 = vadd.f32 %v2279, %v2286
    %v2294 = vadd.f32 %v2280, %v2286
    %v2295 = vadd.f32 %v2281, %v2286
    %s2296 = scalar_lea.vmem [#allocation2], 256
    %v2297 = vld [vmem:[%s2296] sm:$0xff]
    %v2298 = vld [vmem:[%s2296 + $0x8] sm:$0xff]
    %v2299 = vld [vmem:[%s2296 + $0x10] sm:$0xff]
    %v2300 = vld [vmem:[%s2296 + $0x18] sm:$0xff]
    %v2301 = vld [vmem:[%s2296 + $0x20] sm:$0xff]
    %v2302 = vld [vmem:[%s2296 + $0x28] sm:$0xff]
    %v2303 = vld [vmem:[%s2296 + $0x30] sm:$0xff]
    %v2304 = vld [vmem:[%s2296 + $0x38] sm:$0xff]
    %v2305 = vld [vmem:[%s2296 + $0x40] sm:$0xff]
    %v2306 = vld [vmem:[%s2296 + $0x48] sm:$0xff]
    %v2307 = vld [vmem:[%s2296 + $0x50] sm:$0xff]
    %v2308 = vld [vmem:[%s2296 + $0x58] sm:$0xff]
    %v2309 = vld [vmem:[%s2296 + $0x60] sm:$0xff]
    %v2310 = vld [vmem:[%s2296 + $0x68] sm:$0xff]
    %v2311 = vld [vmem:[%s2296 + $0x70] sm:$0xff]
    %v2312 = vld [vmem:[%s2296 + $0x78] sm:$0xff]
    %s2313 = scalar_lea.vmem %s4, 2
    %v2314 = vld [vmem:[%s2313] sm:$0x1]
    %v2316 = vlaneseq
    %v2317 = vshrl.u32 %v2316, 7
    %v2318 = vsub.s32 0, %v2317
    %v2319 = vrot.slane %v2314, %v2318
    %2321 = vmatprep.subr.mxu0 0.0
    %2322 = vmatpush1.msra.mxu0 %v2312
    %2323 = vmatprep.subr.mxu0 0.0
    %2324 = vmatpush1.msra.mxu0 %v2311
    %2325 = vmatprep.subr.mxu0 0.0
    %2326 = vmatpush1.msra.mxu0 %v2310
    %2327 = vmatprep.subr.mxu0 0.0
    %2328 = vmatpush1.msra.mxu0 %v2309
    %2329 = vmatprep.subr.mxu0 0.0
    %2330 = vmatpush1.msra.mxu0 %v2308
    %2331 = vmatprep.subr.mxu0 0.0
    %2332 = vmatpush1.msra.mxu0 %v2307
    %2333 = vmatprep.subr.mxu0 0.0
    %2334 = vmatpush1.msra.mxu0 %v2306
    %2335 = vmatprep.subr.mxu0 0.0
    %2336 = vmatpush1.msra.mxu0 %v2305
    %2337 = vmatprep.subr.mxu0 0.0
    %2338 = vmatpush1.msra.mxu0 %v2304
    %2339 = vmatprep.subr.mxu0 0.0
    %2340 = vmatpush1.msra.mxu0 %v2303
    %2341 = vmatprep.subr.mxu0 0.0
    %2342 = vmatpush1.msra.mxu0 %v2302
    %2343 = vmatprep.subr.mxu0 0.0
    %2344 = vmatpush1.msra.mxu0 %v2301
    %2345 = vmatprep.subr.mxu0 0.0
    %2346 = vmatpush1.msra.mxu0 %v2300
    %2347 = vmatprep.subr.mxu0 0.0
    %2348 = vmatpush1.msra.mxu0 %v2299
    %2349 = vmatprep.subr.mxu0 0.0
    %2350 = vmatpush1.msra.mxu0 %v2298
    %2351 = vmatprep.subr.mxu0 0.0
    %2352 = vmatpush1.msra.mxu0 %v2297
    %2353 = vmatprep.subr.mxu0 0.0
    %2354 = vmatpush2.msra.mxu0 0.0
    %2355 = vmatprep.subr.mxu0 0.0
    %2356 = vmatpush2.msra.mxu0 0.0
    %2357 = vmatprep.subr.mxu0 0.0
    %2358 = vmatpush2.msra.mxu0 0.0
    %2359 = vmatprep.subr.mxu0 0.0
    %2360 = vmatpush2.msra.mxu0 0.0
    %2361 = vmatprep.subr.mxu0 0.0
    %2362 = vmatpush2.msra.mxu0 0.0
    %2363 = vmatprep.subr.mxu0 0.0
    %2364 = vmatpush2.msra.mxu0 0.0
    %2365 = vmatprep.subr.mxu0 0.0
    %2366 = vmatpush2.msra.mxu0 0.0
    %2367 = vmatprep.subr.mxu0 0.0
    %2368 = vmatpush2.msra.mxu0 0.0
    %2369 = vmatprep.subr.mxu0 0.0
    %2370 = vmatpush2.msra.mxu0 0.0
    %2371 = vmatprep.subr.mxu0 0.0
    %2372 = vmatpush2.msra.mxu0 0.0
    %2373 = vmatprep.subr.mxu0 0.0
    %2374 = vmatpush2.msra.mxu0 0.0
    %2375 = vmatprep.subr.mxu0 0.0
    %2376 = vmatpush2.msra.mxu0 0.0
    %2377 = vmatprep.subr.mxu0 0.0
    %2378 = vmatpush2.msra.mxu0 0.0
    %2379 = vmatprep.subr.mxu0 0.0
    %2380 = vmatpush2.msra.mxu0 0.0
    %2381 = vmatprep.subr.mxu0 0.0
    %2382 = vmatpush2.msra.mxu0 0.0
    %2383 = vmatprep.subr.mxu0 0.0
    %2384 = vmatpush2.msra.mxu0 0.0
    %2385 = vmatprep.mubr.f32.mxu0 0.0
    %2386 = vmatmul.mubr.f32.gmra.mxu0 %v2288
    %v2387 = vpop.f32.mrf.mxu0
    %v2388 = vadd.f32 %v2319, %v2387
    %v2389 = vpop.f32.mrf.mxu0
    %2390 = vmatprep.mubr.f32.mxu0 0.0
    %2391 = vmatmul.mubr.f32.gmra.mxu0 %v2289
    %v2392 = vpop.f32.mrf.mxu0
    %v2393 = vadd.f32 %v2319, %v2392
    %v2394 = vpop.f32.mrf.mxu0
    %2395 = vmatprep.mubr.f32.mxu0 0.0
    %2396 = vmatmul.mubr.f32.gmra.mxu0 %v2290
    %v2397 = vpop.f32.mrf.mxu0
    %v2398 = vadd.f32 %v2319, %v2397
    %v2399 = vpop.f32.mrf.mxu0
    %2400 = vmatprep.mubr.f32.mxu0 0.0
    %2401 = vmatmul.mubr.f32.gmra.mxu0 %v2291
    %v2402 = vpop.f32.mrf.mxu0
    %v2403 = vadd.f32 %v2319, %v2402
    %v2404 = vpop.f32.mrf.mxu0
    %2405 = vmatprep.mubr.f32.mxu0 0.0
    %2406 = vmatmul.mubr.f32.gmra.mxu0 %v2292
    %v2407 = vpop.f32.mrf.mxu0
    %v2408 = vadd.f32 %v2319, %v2407
    %v2409 = vpop.f32.mrf.mxu0
    %2410 = vmatprep.mubr.f32.mxu0 0.0
    %2411 = vmatmul.mubr.f32.gmra.mxu0 %v2293
    %v2412 = vpop.f32.mrf.mxu0
    %v2413 = vadd.f32 %v2319, %v2412
    %v2414 = vpop.f32.mrf.mxu0
    %2415 = vmatprep.mubr.f32.mxu0 0.0
    %2416 = vmatmul.mubr.f32.gmra.mxu0 %v2294
    %v2417 = vpop.f32.mrf.mxu0
    %v2418 = vadd.f32 %v2319, %v2417
    %v2419 = vpop.f32.mrf.mxu0
    %2420 = vmatprep.mubr.f32.mxu0 0.0
    %2421 = vmatmul.mubr.f32.gmra.mxu0 %v2295
    %v2422 = vpop.f32.mrf.mxu0
    %v2423 = vadd.f32 %v2319, %v2422
    %v2424 = vpop.f32.mrf.mxu0
    %2425 = vdwg.mxu0
    %v2426 = vadd.f32 %v2288, %v2388
    %v2427 = vadd.f32 %v2289, %v2393
    %v2428 = vadd.f32 %v2290, %v2398
    %v2429 = vadd.f32 %v2291, %v2403
    %v2430 = vadd.f32 %v2292, %v2408
    %v2431 = vadd.f32 %v2293, %v2413
    %v2432 = vadd.f32 %v2294, %v2418
    %v2433 = vadd.f32 %v2295, %v2423
    %s2434 = scalar_lea.vmem %s5, 2
    %v2435 = vld [vmem:[%s2434] sm:$0x1]
    %s2436 = scalar_lea.vmem %s6, 2
    %v2437 = vld [vmem:[%s2436] sm:$0x1]
    %2438 = vadd.xlane.f32.xlu0 %v2426
    %v2439 = vpop.xlane.xlu0 %2438
    %2440 = vadd.xlane.f32.xlu0 %v2427
    %v2441 = vpop.xlane.xlu0 %2440
    %2442 = vadd.xlane.f32.xlu0 %v2428
    %v2443 = vpop.xlane.xlu0 %2442
    %2444 = vadd.xlane.f32.xlu0 %v2429
    %v2445 = vpop.xlane.xlu0 %2444
    %2446 = vadd.xlane.f32.xlu0 %v2430
    %v2447 = vpop.xlane.xlu0 %2446
    %2448 = vadd.xlane.f32.xlu0 %v2431
    %v2449 = vpop.xlane.xlu0 %2448
    %2450 = vadd.xlane.f32.xlu0 %v2432
    %v2451 = vpop.xlane.xlu0 %2450
    %2452 = vadd.xlane.f32.xlu0 %v2433
    %v2453 = vpop.xlane.xlu0 %2452
    %v2454 = vmul.f32 %v2439, %v429
    %v2455 = vmul.f32 %v2441, %v429
    %v2456 = vmul.f32 %v2443, %v429
    %v2457 = vmul.f32 %v2445, %v429
    %v2458 = vmul.f32 %v2447, %v429
    %v2459 = vmul.f32 %v2449, %v429
    %v2460 = vmul.f32 %v2451, %v429
    %v2461 = vmul.f32 %v2453, %v429
    %v2462 = vsub.f32 %v2426, %v2454
    %v2463 = vsub.f32 %v2427, %v2455
    %v2464 = vsub.f32 %v2428, %v2456
    %v2465 = vsub.f32 %v2429, %v2457
    %v2466 = vsub.f32 %v2430, %v2458
    %v2467 = vsub.f32 %v2431, %v2459
    %v2468 = vsub.f32 %v2432, %v2460
    %v2469 = vsub.f32 %v2433, %v2461
    %v2470 = vmul.f32 %v2462, %v2462
    %v2471 = vmul.f32 %v2463, %v2463
    %v2472 = vmul.f32 %v2464, %v2464
    %v2473 = vmul.f32 %v2465, %v2465
    %v2474 = vmul.f32 %v2466, %v2466
    %v2475 = vmul.f32 %v2467, %v2467
    %v2476 = vmul.f32 %v2468, %v2468
    %v2477 = vmul.f32 %v2469, %v2469
    %2478 = vadd.xlane.f32.xlu0 %v2470
    %v2479 = vpop.xlane.xlu0 %2478
    %2480 = vadd.xlane.f32.xlu0 %v2471
    %v2481 = vpop.xlane.xlu0 %2480
    %2482 = vadd.xlane.f32.xlu0 %v2472
    %v2483 = vpop.xlane.xlu0 %2482
    %2484 = vadd.xlane.f32.xlu0 %v2473
    %v2485 = vpop.xlane.xlu0 %2484
    %2486 = vadd.xlane.f32.xlu0 %v2474
    %v2487 = vpop.xlane.xlu0 %2486
    %2488 = vadd.xlane.f32.xlu0 %v2475
    %v2489 = vpop.xlane.xlu0 %2488
    %2490 = vadd.xlane.f32.xlu0 %v2476
    %v2491 = vpop.xlane.xlu0 %2490
    %2492 = vadd.xlane.f32.xlu0 %v2477
    %v2493 = vpop.xlane.xlu0 %2492
    %v2494 = vmul.f32 %v2479, %v429
    %v2495 = vmul.f32 %v2481, %v429
    %v2496 = vmul.f32 %v2483, %v429
    %v2497 = vmul.f32 %v2485, %v429
    %v2498 = vmul.f32 %v2487, %v429
    %v2499 = vmul.f32 %v2489, %v429
    %v2500 = vmul.f32 %v2491, %v429
    %v2501 = vmul.f32 %v2493, %v429
    %v2502 = vadd.f32 %v2494, 1e-05
    %v2503 = vadd.f32 %v2495, 1e-05
    %v2504 = vadd.f32 %v2496, 1e-05
    %v2505 = vadd.f32 %v2497, 1e-05
    %v2506 = vadd.f32 %v2498, 1e-05
    %v2507 = vadd.f32 %v2499, 1e-05
    %v2508 = vadd.f32 %v2500, 1e-05
    %v2509 = vadd.f32 %v2501, 1e-05
    %v2510 = vrsqrt.pop %v2502
    %v2511 = vrsqrt.pop %v2503
    %v2512 = vrsqrt.pop %v2504
    %v2513 = vrsqrt.pop %v2505
    %v2514 = vrsqrt.pop %v2506
    %v2515 = vrsqrt.pop %v2507
    %v2516 = vrsqrt.pop %v2508
    %v2517 = vrsqrt.pop %v2509
    %v2518 = vmul.f32 %v2462, %v2510
    %v2519 = vmul.f32 %v2463, %v2511
    %v2520 = vmul.f32 %v2464, %v2512
    %v2521 = vmul.f32 %v2465, %v2513
    %v2522 = vmul.f32 %v2466, %v2514
    %v2523 = vmul.f32 %v2467, %v2515
    %v2524 = vmul.f32 %v2468, %v2516
    %v2525 = vmul.f32 %v2469, %v2517
    %v2527 = vlaneseq
    %v2528 = vshrl.u32 %v2527, 7
    %v2529 = vsub.s32 0, %v2528
    %v2530 = vrot.slane %v2435, %v2529
    %v2532 = vmul.f32 %v2518, %v2530
    %v2533 = vmul.f32 %v2519, %v2530
    %v2534 = vmul.f32 %v2520, %v2530
    %v2535 = vmul.f32 %v2521, %v2530
    %v2536 = vmul.f32 %v2522, %v2530
    %v2537 = vmul.f32 %v2523, %v2530
    %v2538 = vmul.f32 %v2524, %v2530
    %v2539 = vmul.f32 %v2525, %v2530
    %v2541 = vlaneseq
    %v2542 = vshrl.u32 %v2541, 7
    %v2543 = vsub.s32 0, %v2542
    %v2544 = vrot.slane %v2437, %v2543
    %v2546 = vadd.f32 %v2532, %v2544
    %v2547 = vadd.f32 %v2533, %v2544
    %v2548 = vadd.f32 %v2534, %v2544
    %v2549 = vadd.f32 %v2535, %v2544
    %v2550 = vadd.f32 %v2536, %v2544
    %v2551 = vadd.f32 %v2537, %v2544
    %v2552 = vadd.f32 %v2538, %v2544
    %v2553 = vadd.f32 %v2539, %v2544
    %s2554 = scalar_lea.vmem [#allocation5], 1024
    %v2555 = vld [vmem:[%s2554] sm:$0xff]
    %v2556 = vld [vmem:[%s2554 + $0x8] sm:$0xff]
    %v2557 = vld [vmem:[%s2554 + $0x10] sm:$0xff]
    %v2558 = vld [vmem:[%s2554 + $0x18] sm:$0xff]
    %v2559 = vld [vmem:[%s2554 + $0x20] sm:$0xff]
    %v2560 = vld [vmem:[%s2554 + $0x28] sm:$0xff]
    %v2561 = vld [vmem:[%s2554 + $0x30] sm:$0xff]
    %v2562 = vld [vmem:[%s2554 + $0x38] sm:$0xff]
    %v2563 = vld [vmem:[%s2554 + $0x40] sm:$0xff]
    %v2564 = vld [vmem:[%s2554 + $0x48] sm:$0xff]
    %v2565 = vld [vmem:[%s2554 + $0x50] sm:$0xff]
    %v2566 = vld [vmem:[%s2554 + $0x58] sm:$0xff]
    %v2567 = vld [vmem:[%s2554 + $0x60] sm:$0xff]
    %v2568 = vld [vmem:[%s2554 + $0x68] sm:$0xff]
    %v2569 = vld [vmem:[%s2554 + $0x70] sm:$0xff]
    %v2570 = vld [vmem:[%s2554 + $0x78] sm:$0xff]
    %v2571 = vld [vmem:[%s2554 + $0x80] sm:$0xff]
    %v2572 = vld [vmem:[%s2554 + $0x88] sm:$0xff]
    %v2573 = vld [vmem:[%s2554 + $0x90] sm:$0xff]
    %v2574 = vld [vmem:[%s2554 + $0x98] sm:$0xff]
    %v2575 = vld [vmem:[%s2554 + $0xa0] sm:$0xff]
    %v2576 = vld [vmem:[%s2554 + $0xa8] sm:$0xff]
    %v2577 = vld [vmem:[%s2554 + $0xb0] sm:$0xff]
    %v2578 = vld [vmem:[%s2554 + $0xb8] sm:$0xff]
    %v2579 = vld [vmem:[%s2554 + $0xc0] sm:$0xff]
    %v2580 = vld [vmem:[%s2554 + $0xc8] sm:$0xff]
    %v2581 = vld [vmem:[%s2554 + $0xd0] sm:$0xff]
    %v2582 = vld [vmem:[%s2554 + $0xd8] sm:$0xff]
    %v2583 = vld [vmem:[%s2554 + $0xe0] sm:$0xff]
    %v2584 = vld [vmem:[%s2554 + $0xe8] sm:$0xff]
    %v2585 = vld [vmem:[%s2554 + $0xf0] sm:$0xff]
    %v2586 = vld [vmem:[%s2554 + $0xf8] sm:$0xff]
    %v2587 = vld [vmem:[%s2554 + $0x100] sm:$0xff]
    %v2588 = vld [vmem:[%s2554 + $0x108] sm:$0xff]
    %v2589 = vld [vmem:[%s2554 + $0x110] sm:$0xff]
    %v2590 = vld [vmem:[%s2554 + $0x118] sm:$0xff]
    %v2591 = vld [vmem:[%s2554 + $0x120] sm:$0xff]
    %v2592 = vld [vmem:[%s2554 + $0x128] sm:$0xff]
    %v2593 = vld [vmem:[%s2554 + $0x130] sm:$0xff]
    %v2594 = vld [vmem:[%s2554 + $0x138] sm:$0xff]
    %v2595 = vld [vmem:[%s2554 + $0x140] sm:$0xff]
    %v2596 = vld [vmem:[%s2554 + $0x148] sm:$0xff]
    %v2597 = vld [vmem:[%s2554 + $0x150] sm:$0xff]
    %v2598 = vld [vmem:[%s2554 + $0x158] sm:$0xff]
    %v2599 = vld [vmem:[%s2554 + $0x160] sm:$0xff]
    %v2600 = vld [vmem:[%s2554 + $0x168] sm:$0xff]
    %v2601 = vld [vmem:[%s2554 + $0x170] sm:$0xff]
    %v2602 = vld [vmem:[%s2554 + $0x178] sm:$0xff]
    %v2603 = vld [vmem:[%s2554 + $0x180] sm:$0xff]
    %v2604 = vld [vmem:[%s2554 + $0x188] sm:$0xff]
    %v2605 = vld [vmem:[%s2554 + $0x190] sm:$0xff]
    %v2606 = vld [vmem:[%s2554 + $0x198] sm:$0xff]
    %v2607 = vld [vmem:[%s2554 + $0x1a0] sm:$0xff]
    %v2608 = vld [vmem:[%s2554 + $0x1a8] sm:$0xff]
    %v2609 = vld [vmem:[%s2554 + $0x1b0] sm:$0xff]
    %v2610 = vld [vmem:[%s2554 + $0x1b8] sm:$0xff]
    %v2611 = vld [vmem:[%s2554 + $0x1c0] sm:$0xff]
    %v2612 = vld [vmem:[%s2554 + $0x1c8] sm:$0xff]
    %v2613 = vld [vmem:[%s2554 + $0x1d0] sm:$0xff]
    %v2614 = vld [vmem:[%s2554 + $0x1d8] sm:$0xff]
    %v2615 = vld [vmem:[%s2554 + $0x1e0] sm:$0xff]
    %v2616 = vld [vmem:[%s2554 + $0x1e8] sm:$0xff]
    %v2617 = vld [vmem:[%s2554 + $0x1f0] sm:$0xff]
    %v2618 = vld [vmem:[%s2554 + $0x1f8] sm:$0xff]
    %s2619 = scalar_lea.vmem %s8, 8
    %v2620 = vld [vmem:[%s2619] sm:$0xf]
    %v2622 = vlaneseq
    %v2623 = vshrl.u32 %v2622, 7
    %v2624 = vsub.s32 0, %v2623
    %v2625 = vrot.slane %v2620, %v2624
    %v2626 = vlaneseq
    %v2627 = vshrl.u32 %v2626, 7
    %v2628 = vsub.s32 1, %v2627
    %v2629 = vrot.slane %v2620, %v2628
    %v2630 = vlaneseq
    %v2631 = vshrl.u32 %v2630, 7
    %v2632 = vsub.s32 2, %v2631
    %v2633 = vrot.slane %v2620, %v2632
    %v2634 = vlaneseq
    %v2635 = vshrl.u32 %v2634, 7
    %v2636 = vsub.s32 3, %v2635
    %v2637 = vrot.slane %v2620, %v2636
    %2642 = vmatprep.subr.mxu0 %v2616
    %2643 = vmatpush1.msra.mxu0 %v2615
    %2644 = vmatprep.subr.mxu0 %v2612
    %2645 = vmatpush1.msra.mxu0 %v2611
    %2646 = vmatprep.subr.mxu0 %v2608
    %2647 = vmatpush1.msra.mxu0 %v2607
    %2648 = vmatprep.subr.mxu0 %v2604
    %2649 = vmatpush1.msra.mxu0 %v2603
    %2650 = vmatprep.subr.mxu0 %v2600
    %2651 = vmatpush1.msra.mxu0 %v2599
    %2652 = vmatprep.subr.mxu0 %v2596
    %2653 = vmatpush1.msra.mxu0 %v2595
    %2654 = vmatprep.subr.mxu0 %v2592
    %2655 = vmatpush1.msra.mxu0 %v2591
    %2656 = vmatprep.subr.mxu0 %v2588
    %2657 = vmatpush1.msra.mxu0 %v2587
    %2658 = vmatprep.subr.mxu0 %v2584
    %2659 = vmatpush1.msra.mxu0 %v2583
    %2660 = vmatprep.subr.mxu0 %v2580
    %2661 = vmatpush1.msra.mxu0 %v2579
    %2662 = vmatprep.subr.mxu0 %v2576
    %2663 = vmatpush1.msra.mxu0 %v2575
    %2664 = vmatprep.subr.mxu0 %v2572
    %2665 = vmatpush1.msra.mxu0 %v2571
    %2666 = vmatprep.subr.mxu0 %v2568
    %2667 = vmatpush1.msra.mxu0 %v2567
    %2668 = vmatprep.subr.mxu0 %v2564
    %2669 = vmatpush1.msra.mxu0 %v2563
    %2670 = vmatprep.subr.mxu0 %v2560
    %2671 = vmatpush1.msra.mxu0 %v2559
    %2672 = vmatprep.subr.mxu0 %v2556
    %2673 = vmatpush1.msra.mxu0 %v2555
    %2674 = vmatprep.subr.mxu0 0.0
    %2675 = vmatpush2.msra.mxu0 0.0
    %2676 = vmatprep.subr.mxu0 0.0
    %2677 = vmatpush2.msra.mxu0 0.0
    %2678 = vmatprep.subr.mxu0 0.0
    %2679 = vmatpush2.msra.mxu0 0.0
    %2680 = vmatprep.subr.mxu0 0.0
    %2681 = vmatpush2.msra.mxu0 0.0
    %2682 = vmatprep.subr.mxu0 0.0
    %2683 = vmatpush2.msra.mxu0 0.0
    %2684 = vmatprep.subr.mxu0 0.0
    %2685 = vmatpush2.msra.mxu0 0.0
    %2686 = vmatprep.subr.mxu0 0.0
    %2687 = vmatpush2.msra.mxu0 0.0
    %2688 = vmatprep.subr.mxu0 0.0
    %2689 = vmatpush2.msra.mxu0 0.0
    %2690 = vmatprep.subr.mxu0 0.0
    %2691 = vmatpush2.msra.mxu0 0.0
    %2692 = vmatprep.subr.mxu0 0.0
    %2693 = vmatpush2.msra.mxu0 0.0
    %2694 = vmatprep.subr.mxu0 0.0
    %2695 = vmatpush2.msra.mxu0 0.0
    %2696 = vmatprep.subr.mxu0 0.0
    %2697 = vmatpush2.msra.mxu0 0.0
    %2698 = vmatprep.subr.mxu0 0.0
    %2699 = vmatpush2.msra.mxu0 0.0
    %2700 = vmatprep.subr.mxu0 0.0
    %2701 = vmatpush2.msra.mxu0 0.0
    %2702 = vmatprep.subr.mxu0 0.0
    %2703 = vmatpush2.msra.mxu0 0.0
    %2704 = vmatprep.subr.mxu0 0.0
    %2705 = vmatpush2.msra.mxu0 0.0
    %2706 = vmatprep.mubr.f32.mxu0 0.0
    %2707 = vmatmul.mubr.f32.gmra.mxu0 %v2546
    %v2708 = vpop.f32.mrf.mxu0
    %v2709 = vadd.f32 %v2625, %v2708
    %v2710 = vpop.f32.mrf.mxu0
    %v2711 = vadd.f32 %v2629, %v2710
    %2712 = vmatprep.mubr.f32.mxu0 0.0
    %2713 = vmatmul.mubr.f32.gmra.mxu0 %v2547
    %v2714 = vpop.f32.mrf.mxu0
    %v2715 = vadd.f32 %v2625, %v2714
    %v2716 = vpop.f32.mrf.mxu0
    %v2717 = vadd.f32 %v2629, %v2716
    %2718 = vmatprep.mubr.f32.mxu0 0.0
    %2719 = vmatmul.mubr.f32.gmra.mxu0 %v2548
    %v2720 = vpop.f32.mrf.mxu0
    %v2721 = vadd.f32 %v2625, %v2720
    %v2722 = vpop.f32.mrf.mxu0
    %v2723 = vadd.f32 %v2629, %v2722
    %2724 = vmatprep.mubr.f32.mxu0 0.0
    %2725 = vmatmul.mubr.f32.gmra.mxu0 %v2549
    %v2726 = vpop.f32.mrf.mxu0
    %v2727 = vadd.f32 %v2625, %v2726
    %v2728 = vpop.f32.mrf.mxu0
    %v2729 = vadd.f32 %v2629, %v2728
    %2730 = vmatprep.mubr.f32.mxu0 0.0
    %2731 = vmatmul.mubr.f32.gmra.mxu0 %v2550
    %v2732 = vpop.f32.mrf.mxu0
    %v2733 = vadd.f32 %v2625, %v2732
    %v2734 = vpop.f32.mrf.mxu0
    %v2735 = vadd.f32 %v2629, %v2734
    %2736 = vmatprep.mubr.f32.mxu0 0.0
    %2737 = vmatmul.mubr.f32.gmra.mxu0 %v2551
    %v2738 = vpop.f32.mrf.mxu0
    %v2739 = vadd.f32 %v2625, %v2738
    %v2740 = vpop.f32.mrf.mxu0
    %v2741 = vadd.f32 %v2629, %v2740
    %2742 = vmatprep.mubr.f32.mxu0 0.0
    %2743 = vmatmul.mubr.f32.gmra.mxu0 %v2552
    %v2744 = vpop.f32.mrf.mxu0
    %v2745 = vadd.f32 %v2625, %v2744
    %v2746 = vpop.f32.mrf.mxu0
    %v2747 = vadd.f32 %v2629, %v2746
    %2748 = vmatprep.mubr.f32.mxu0 0.0
    %2749 = vmatmul.mubr.f32.gmra.mxu0 %v2553
    %v2750 = vpop.f32.mrf.mxu0
    %v2751 = vadd.f32 %v2625, %v2750
    %v2752 = vpop.f32.mrf.mxu0
    %v2753 = vadd.f32 %v2629, %v2752
    %2754 = vdwg.mxu0
    %2755 = vmatprep.subr.mxu0 %v2618
    %2756 = vmatpush1.msra.mxu0 %v2617
    %2757 = vmatprep.subr.mxu0 %v2614
    %2758 = vmatpush1.msra.mxu0 %v2613
    %2759 = vmatprep.subr.mxu0 %v2610
    %2760 = vmatpush1.msra.mxu0 %v2609
    %2761 = vmatprep.subr.mxu0 %v2606
    %2762 = vmatpush1.msra.mxu0 %v2605
    %2763 = vmatprep.subr.mxu0 %v2602
    %2764 = vmatpush1.msra.mxu0 %v2601
    %2765 = vmatprep.subr.mxu0 %v2598
    %2766 = vmatpush1.msra.mxu0 %v2597
    %2767 = vmatprep.subr.mxu0 %v2594
    %2768 = vmatpush1.msra.mxu0 %v2593
    %2769 = vmatprep.subr.mxu0 %v2590
    %2770 = vmatpush1.msra.mxu0 %v2589
    %2771 = vmatprep.subr.mxu0 %v2586
    %2772 = vmatpush1.msra.mxu0 %v2585
    %2773 = vmatprep.subr.mxu0 %v2582
    %2774 = vmatpush1.msra.mxu0 %v2581
    %2775 = vmatprep.subr.mxu0 %v2578
    %2776 = vmatpush1.msra.mxu0 %v2577
    %2777 = vmatprep.subr.mxu0 %v2574
    %2778 = vmatpush1.msra.mxu0 %v2573
    %2779 = vmatprep.subr.mxu0 %v2570
    %2780 = vmatpush1.msra.mxu0 %v2569
    %2781 = vmatprep.subr.mxu0 %v2566
    %2782 = vmatpush1.msra.mxu0 %v2565
    %2783 = vmatprep.subr.mxu0 %v2562
    %2784 = vmatpush1.msra.mxu0 %v2561
    %2785 = vmatprep.subr.mxu0 %v2558
    %2786 = vmatpush1.msra.mxu0 %v2557
    %2787 = vmatprep.subr.mxu0 0.0
    %2788 = vmatpush2.msra.mxu0 0.0
    %2789 = vmatprep.subr.mxu0 0.0
    %2790 = vmatpush2.msra.mxu0 0.0
    %2791 = vmatprep.subr.mxu0 0.0
    %2792 = vmatpush2.msra.mxu0 0.0
    %2793 = vmatprep.subr.mxu0 0.0
    %2794 = vmatpush2.msra.mxu0 0.0
    %2795 = vmatprep.subr.mxu0 0.0
    %2796 = vmatpush2.msra.mxu0 0.0
    %2797 = vmatprep.subr.mxu0 0.0
    %2798 = vmatpush2.msra.mxu0 0.0
    %2799 = vmatprep.subr.mxu0 0.0
    %2800 = vmatpush2.msra.mxu0 0.0
    %2801 = vmatprep.subr.mxu0 0.0
    %2802 = vmatpush2.msra.mxu0 0.0
    %2803 = vmatprep.subr.mxu0 0.0
    %2804 = vmatpush2.msra.mxu0 0.0
    %2805 = vmatprep.subr.mxu0 0.0
    %2806 = vmatpush2.msra.mxu0 0.0
    %2807 = vmatprep.subr.mxu0 0.0
    %2808 = vmatpush2.msra.mxu0 0.0
    %2809 = vmatprep.subr.mxu0 0.0
    %2810 = vmatpush2.msra.mxu0 0.0
    %2811 = vmatprep.subr.mxu0 0.0
    %2812 = vmatpush2.msra.mxu0 0.0
    %2813 = vmatprep.subr.mxu0 0.0
    %2814 = vmatpush2.msra.mxu0 0.0
    %2815 = vmatprep.subr.mxu0 0.0
    %2816 = vmatpush2.msra.mxu0 0.0
    %2817 = vmatprep.subr.mxu0 0.0
    %2818 = vmatpush2.msra.mxu0 0.0
    %2819 = vmatprep.mubr.f32.mxu0 0.0
    %2820 = vmatmul.mubr.f32.gmra.mxu0 %v2546
    %v2821 = vpop.f32.mrf.mxu0
    %v2822 = vadd.f32 %v2633, %v2821
    %v2823 = vpop.f32.mrf.mxu0
    %v2824 = vadd.f32 %v2637, %v2823
    %2825 = vmatprep.mubr.f32.mxu0 0.0
    %2826 = vmatmul.mubr.f32.gmra.mxu0 %v2547
    %v2827 = vpop.f32.mrf.mxu0
    %v2828 = vadd.f32 %v2633, %v2827
    %v2829 = vpop.f32.mrf.mxu0
    %v2830 = vadd.f32 %v2637, %v2829
    %2831 = vmatprep.mubr.f32.mxu0 0.0
    %2832 = vmatmul.mubr.f32.gmra.mxu0 %v2548
    %v2833 = vpop.f32.mrf.mxu0
    %v2834 = vadd.f32 %v2633, %v2833
    %v2835 = vpop.f32.mrf.mxu0
    %v2836 = vadd.f32 %v2637, %v2835
    %2837 = vmatprep.mubr.f32.mxu0 0.0
    %2838 = vmatmul.mubr.f32.gmra.mxu0 %v2549
    %v2839 = vpop.f32.mrf.mxu0
    %v2840 = vadd.f32 %v2633, %v2839
    %v2841 = vpop.f32.mrf.mxu0
    %v2842 = vadd.f32 %v2637, %v2841
    %2843 = vmatprep.mubr.f32.mxu0 0.0
    %2844 = vmatmul.mubr.f32.gmra.mxu0 %v2550
    %v2845 = vpop.f32.mrf.mxu0
    %v2846 = vadd.f32 %v2633, %v2845
    %v2847 = vpop.f32.mrf.mxu0
    %v2848 = vadd.f32 %v2637, %v2847
    %2849 = vmatprep.mubr.f32.mxu0 0.0
    %2850 = vmatmul.mubr.f32.gmra.mxu0 %v2551
    %v2851 = vpop.f32.mrf.mxu0
    %v2852 = vadd.f32 %v2633, %v2851
    %v2853 = vpop.f32.mrf.mxu0
    %v2854 = vadd.f32 %v2637, %v2853
    %2855 = vmatprep.mubr.f32.mxu0 0.0
    %2856 = vmatmul.mubr.f32.gmra.mxu0 %v2552
    %v2857 = vpop.f32.mrf.mxu0
    %v2858 = vadd.f32 %v2633, %v2857
    %v2859 = vpop.f32.mrf.mxu0
    %v2860 = vadd.f32 %v2637, %v2859
    %2861 = vmatprep.mubr.f32.mxu0 0.0
    %2862 = vmatmul.mubr.f32.gmra.mxu0 %v2553
    %v2863 = vpop.f32.mrf.mxu0
    %v2864 = vadd.f32 %v2633, %v2863
    %v2865 = vpop.f32.mrf.mxu0
    %v2866 = vadd.f32 %v2637, %v2865
    %2867 = vdwg.mxu0
    %v2868 = vmax.f32 %v2709, 0.0
    %v2869 = vmax.f32 %v2711, 0.0
    %v2870 = vmax.f32 %v2822, 0.0
    %v2871 = vmax.f32 %v2824, 0.0
    %v2872 = vmax.f32 %v2715, 0.0
    %v2873 = vmax.f32 %v2717, 0.0
    %v2874 = vmax.f32 %v2828, 0.0
    %v2875 = vmax.f32 %v2830, 0.0
    %v2876 = vmax.f32 %v2721, 0.0
    %v2877 = vmax.f32 %v2723, 0.0
    %v2878 = vmax.f32 %v2834, 0.0
    %v2879 = vmax.f32 %v2836, 0.0
    %v2880 = vmax.f32 %v2727, 0.0
    %v2881 = vmax.f32 %v2729, 0.0
    %v2882 = vmax.f32 %v2840, 0.0
    %v2883 = vmax.f32 %v2842, 0.0
    %v2884 = vmax.f32 %v2733, 0.0
    %v2885 = vmax.f32 %v2735, 0.0
    %v2886 = vmax.f32 %v2846, 0.0
    %v2887 = vmax.f32 %v2848, 0.0
    %v2888 = vmax.f32 %v2739, 0.0
    %v2889 = vmax.f32 %v2741, 0.0
    %v2890 = vmax.f32 %v2852, 0.0
    %v2891 = vmax.f32 %v2854, 0.0
    %v2892 = vmax.f32 %v2745, 0.0
    %v2893 = vmax.f32 %v2747, 0.0
    %v2894 = vmax.f32 %v2858, 0.0
    %v2895 = vmax.f32 %v2860, 0.0
    %v2896 = vmax.f32 %v2751, 0.0
    %v2897 = vmax.f32 %v2753, 0.0
    %v2898 = vmax.f32 %v2864, 0.0
    %v2899 = vmax.f32 %v2866, 0.0
    %s2900 = scalar_lea.vmem [#allocation7], 1024
    %v2901 = vld [vmem:[%s2900] sm:$0xff]
    %v2902 = vld [vmem:[%s2900 + $0x8] sm:$0xff]
    %v2903 = vld [vmem:[%s2900 + $0x10] sm:$0xff]
    %v2904 = vld [vmem:[%s2900 + $0x18] sm:$0xff]
    %v2905 = vld [vmem:[%s2900 + $0x20] sm:$0xff]
    %v2906 = vld [vmem:[%s2900 + $0x28] sm:$0xff]
    %v2907 = vld [vmem:[%s2900 + $0x30] sm:$0xff]
    %v2908 = vld [vmem:[%s2900 + $0x38] sm:$0xff]
    %v2909 = vld [vmem:[%s2900 + $0x40] sm:$0xff]
    %v2910 = vld [vmem:[%s2900 + $0x48] sm:$0xff]
    %v2911 = vld [vmem:[%s2900 + $0x50] sm:$0xff]
    %v2912 = vld [vmem:[%s2900 + $0x58] sm:$0xff]
    %v2913 = vld [vmem:[%s2900 + $0x60] sm:$0xff]
    %v2914 = vld [vmem:[%s2900 + $0x68] sm:$0xff]
    %v2915 = vld [vmem:[%s2900 + $0x70] sm:$0xff]
    %v2916 = vld [vmem:[%s2900 + $0x78] sm:$0xff]
    %v2917 = vld [vmem:[%s2900 + $0x80] sm:$0xff]
    %v2918 = vld [vmem:[%s2900 + $0x88] sm:$0xff]
    %v2919 = vld [vmem:[%s2900 + $0x90] sm:$0xff]
    %v2920 = vld [vmem:[%s2900 + $0x98] sm:$0xff]
    %v2921 = vld [vmem:[%s2900 + $0xa0] sm:$0xff]
    %v2922 = vld [vmem:[%s2900 + $0xa8] sm:$0xff]
    %v2923 = vld [vmem:[%s2900 + $0xb0] sm:$0xff]
    %v2924 = vld [vmem:[%s2900 + $0xb8] sm:$0xff]
    %v2925 = vld [vmem:[%s2900 + $0xc0] sm:$0xff]
    %v2926 = vld [vmem:[%s2900 + $0xc8] sm:$0xff]
    %v2927 = vld [vmem:[%s2900 + $0xd0] sm:$0xff]
    %v2928 = vld [vmem:[%s2900 + $0xd8] sm:$0xff]
    %v2929 = vld [vmem:[%s2900 + $0xe0] sm:$0xff]
    %v2930 = vld [vmem:[%s2900 + $0xe8] sm:$0xff]
    %v2931 = vld [vmem:[%s2900 + $0xf0] sm:$0xff]
    %v2932 = vld [vmem:[%s2900 + $0xf8] sm:$0xff]
    %v2933 = vld [vmem:[%s2900 + $0x100] sm:$0xff]
    %v2934 = vld [vmem:[%s2900 + $0x108] sm:$0xff]
    %v2935 = vld [vmem:[%s2900 + $0x110] sm:$0xff]
    %v2936 = vld [vmem:[%s2900 + $0x118] sm:$0xff]
    %v2937 = vld [vmem:[%s2900 + $0x120] sm:$0xff]
    %v2938 = vld [vmem:[%s2900 + $0x128] sm:$0xff]
    %v2939 = vld [vmem:[%s2900 + $0x130] sm:$0xff]
    %v2940 = vld [vmem:[%s2900 + $0x138] sm:$0xff]
    %v2941 = vld [vmem:[%s2900 + $0x140] sm:$0xff]
    %v2942 = vld [vmem:[%s2900 + $0x148] sm:$0xff]
    %v2943 = vld [vmem:[%s2900 + $0x150] sm:$0xff]
    %v2944 = vld [vmem:[%s2900 + $0x158] sm:$0xff]
    %v2945 = vld [vmem:[%s2900 + $0x160] sm:$0xff]
    %v2946 = vld [vmem:[%s2900 + $0x168] sm:$0xff]
    %v2947 = vld [vmem:[%s2900 + $0x170] sm:$0xff]
    %v2948 = vld [vmem:[%s2900 + $0x178] sm:$0xff]
    %v2949 = vld [vmem:[%s2900 + $0x180] sm:$0xff]
    %v2950 = vld [vmem:[%s2900 + $0x188] sm:$0xff]
    %v2951 = vld [vmem:[%s2900 + $0x190] sm:$0xff]
    %v2952 = vld [vmem:[%s2900 + $0x198] sm:$0xff]
    %v2953 = vld [vmem:[%s2900 + $0x1a0] sm:$0xff]
    %v2954 = vld [vmem:[%s2900 + $0x1a8] sm:$0xff]
    %v2955 = vld [vmem:[%s2900 + $0x1b0] sm:$0xff]
    %v2956 = vld [vmem:[%s2900 + $0x1b8] sm:$0xff]
    %v2957 = vld [vmem:[%s2900 + $0x1c0] sm:$0xff]
    %v2958 = vld [vmem:[%s2900 + $0x1c8] sm:$0xff]
    %v2959 = vld [vmem:[%s2900 + $0x1d0] sm:$0xff]
    %v2960 = vld [vmem:[%s2900 + $0x1d8] sm:$0xff]
    %v2961 = vld [vmem:[%s2900 + $0x1e0] sm:$0xff]
    %v2962 = vld [vmem:[%s2900 + $0x1e8] sm:$0xff]
    %v2963 = vld [vmem:[%s2900 + $0x1f0] sm:$0xff]
    %v2964 = vld [vmem:[%s2900 + $0x1f8] sm:$0xff]
    %s2965 = scalar_lea.vmem %s10, 2
    %v2966 = vld [vmem:[%s2965] sm:$0x1]
    %v2968 = vlaneseq
    %v2969 = vshrl.u32 %v2968, 7
    %v2970 = vsub.s32 0, %v2969
    %v2971 = vrot.slane %v2966, %v2970
    %2973 = vmatprep.subr.mxu0 0.0
    %2974 = vmatpush1.msra.mxu0 %v2916
    %2975 = vmatprep.subr.mxu0 0.0
    %2976 = vmatpush1.msra.mxu0 %v2915
    %2977 = vmatprep.subr.mxu0 0.0
    %2978 = vmatpush1.msra.mxu0 %v2914
    %2979 = vmatprep.subr.mxu0 0.0
    %2980 = vmatpush1.msra.mxu0 %v2913
    %2981 = vmatprep.subr.mxu0 0.0
    %2982 = vmatpush1.msra.mxu0 %v2912
    %2983 = vmatprep.subr.mxu0 0.0
    %2984 = vmatpush1.msra.mxu0 %v2911
    %2985 = vmatprep.subr.mxu0 0.0
    %2986 = vmatpush1.msra.mxu0 %v2910
    %2987 = vmatprep.subr.mxu0 0.0
    %2988 = vmatpush1.msra.mxu0 %v2909
    %2989 = vmatprep.subr.mxu0 0.0
    %2990 = vmatpush1.msra.mxu0 %v2908
    %2991 = vmatprep.subr.mxu0 0.0
    %2992 = vmatpush1.msra.mxu0 %v2907
    %2993 = vmatprep.subr.mxu0 0.0
    %2994 = vmatpush1.msra.mxu0 %v2906
    %2995 = vmatprep.subr.mxu0 0.0
    %2996 = vmatpush1.msra.mxu0 %v2905
    %2997 = vmatprep.subr.mxu0 0.0
    %2998 = vmatpush1.msra.mxu0 %v2904
    %2999 = vmatprep.subr.mxu0 0.0
    %3000 = vmatpush1.msra.mxu0 %v2903
    %3001 = vmatprep.subr.mxu0 0.0
    %3002 = vmatpush1.msra.mxu0 %v2902
    %3003 = vmatprep.subr.mxu0 0.0
    %3004 = vmatpush1.msra.mxu0 %v2901
    %3005 = vmatprep.subr.mxu0 0.0
    %3006 = vmatpush2.msra.mxu0 %v2932
    %3007 = vmatprep.subr.mxu0 0.0
    %3008 = vmatpush2.msra.mxu0 %v2931
    %3009 = vmatprep.subr.mxu0 0.0
    %3010 = vmatpush2.msra.mxu0 %v2930
    %3011 = vmatprep.subr.mxu0 0.0
    %3012 = vmatpush2.msra.mxu0 %v2929
    %3013 = vmatprep.subr.mxu0 0.0
    %3014 = vmatpush2.msra.mxu0 %v2928
    %3015 = vmatprep.subr.mxu0 0.0
    %3016 = vmatpush2.msra.mxu0 %v2927
    %3017 = vmatprep.subr.mxu0 0.0
    %3018 = vmatpush2.msra.mxu0 %v2926
    %3019 = vmatprep.subr.mxu0 0.0
    %3020 = vmatpush2.msra.mxu0 %v2925
    %3021 = vmatprep.subr.mxu0 0.0
    %3022 = vmatpush2.msra.mxu0 %v2924
    %3023 = vmatprep.subr.mxu0 0.0
    %3024 = vmatpush2.msra.mxu0 %v2923
    %3025 = vmatprep.subr.mxu0 0.0
    %3026 = vmatpush2.msra.mxu0 %v2922
    %3027 = vmatprep.subr.mxu0 0.0
    %3028 = vmatpush2.msra.mxu0 %v2921
    %3029 = vmatprep.subr.mxu0 0.0
    %3030 = vmatpush2.msra.mxu0 %v2920
    %3031 = vmatprep.subr.mxu0 0.0
    %3032 = vmatpush2.msra.mxu0 %v2919
    %3033 = vmatprep.subr.mxu0 0.0
    %3034 = vmatpush2.msra.mxu0 %v2918
    %3035 = vmatprep.subr.mxu0 0.0
    %3036 = vmatpush2.msra.mxu0 %v2917
    %3037 = vmatprep.mubr.f32.mxu0 %v2869
    %3038 = vmatmul.mubr.f32.gmra.mxu0 %v2868
    %v3039 = vpop.f32.mrf.mxu0
    %v3040 = vadd.f32 %v2971, %v3039
    %v3041 = vpop.f32.mrf.mxu0
    %3042 = vmatprep.mubr.f32.mxu0 %v2873
    %3043 = vmatmul.mubr.f32.gmra.mxu0 %v2872
    %v3044 = vpop.f32.mrf.mxu0
    %v3045 = vadd.f32 %v2971, %v3044
    %v3046 = vpop.f32.mrf.mxu0
    %3047 = vmatprep.mubr.f32.mxu0 %v2877
    %3048 = vmatmul.mubr.f32.gmra.mxu0 %v2876
    %v3049 = vpop.f32.mrf.mxu0
    %v3050 = vadd.f32 %v2971, %v3049
    %v3051 = vpop.f32.mrf.mxu0
    %3052 = vmatprep.mubr.f32.mxu0 %v2881
    %3053 = vmatmul.mubr.f32.gmra.mxu0 %v2880
    %v3054 = vpop.f32.mrf.mxu0
    %v3055 = vadd.f32 %v2971, %v3054
    %v3056 = vpop.f32.mrf.mxu0
    %3057 = vmatprep.mubr.f32.mxu0 %v2885
    %3058 = vmatmul.mubr.f32.gmra.mxu0 %v2884
    %v3059 = vpop.f32.mrf.mxu0
    %v3060 = vadd.f32 %v2971, %v3059
    %v3061 = vpop.f32.mrf.mxu0
    %3062 = vmatprep.mubr.f32.mxu0 %v2889
    %3063 = vmatmul.mubr.f32.gmra.mxu0 %v2888
    %v3064 = vpop.f32.mrf.mxu0
    %v3065 = vadd.f32 %v2971, %v3064
    %v3066 = vpop.f32.mrf.mxu0
    %3067 = vmatprep.mubr.f32.mxu0 %v2893
    %3068 = vmatmul.mubr.f32.gmra.mxu0 %v2892
    %v3069 = vpop.f32.mrf.mxu0
    %v3070 = vadd.f32 %v2971, %v3069
    %v3071 = vpop.f32.mrf.mxu0
    %3072 = vmatprep.mubr.f32.mxu0 %v2897
    %3073 = vmatmul.mubr.f32.gmra.mxu0 %v2896
    %v3074 = vpop.f32.mrf.mxu0
    %v3075 = vadd.f32 %v2971, %v3074
    %v3076 = vpop.f32.mrf.mxu0
    %3077 = vdwg.mxu0
    %3078 = vmatprep.subr.mxu0 0.0
    %3079 = vmatpush1.msra.mxu0 %v2948
    %3080 = vmatprep.subr.mxu0 0.0
    %3081 = vmatpush1.msra.mxu0 %v2947
    %3082 = vmatprep.subr.mxu0 0.0
    %3083 = vmatpush1.msra.mxu0 %v2946
    %3084 = vmatprep.subr.mxu0 0.0
    %3085 = vmatpush1.msra.mxu0 %v2945
    %3086 = vmatprep.subr.mxu0 0.0
    %3087 = vmatpush1.msra.mxu0 %v2944
    %3088 = vmatprep.subr.mxu0 0.0
    %3089 = vmatpush1.msra.mxu0 %v2943
    %3090 = vmatprep.subr.mxu0 0.0
    %3091 = vmatpush1.msra.mxu0 %v2942
    %3092 = vmatprep.subr.mxu0 0.0
    %3093 = vmatpush1.msra.mxu0 %v2941
    %3094 = vmatprep.subr.mxu0 0.0
    %3095 = vmatpush1.msra.mxu0 %v2940
    %3096 = vmatprep.subr.mxu0 0.0
    %3097 = vmatpush1.msra.mxu0 %v2939
    %3098 = vmatprep.subr.mxu0 0.0
    %3099 = vmatpush1.msra.mxu0 %v2938
    %3100 = vmatprep.subr.mxu0 0.0
    %3101 = vmatpush1.msra.mxu0 %v2937
    %3102 = vmatprep.subr.mxu0 0.0
    %3103 = vmatpush1.msra.mxu0 %v2936
    %3104 = vmatprep.subr.mxu0 0.0
    %3105 = vmatpush1.msra.mxu0 %v2935
    %3106 = vmatprep.subr.mxu0 0.0
    %3107 = vmatpush1.msra.mxu0 %v2934
    %3108 = vmatprep.subr.mxu0 0.0
    %3109 = vmatpush1.msra.mxu0 %v2933
    %3110 = vmatprep.subr.mxu0 0.0
    %3111 = vmatpush2.msra.mxu0 %v2964
    %3112 = vmatprep.subr.mxu0 0.0
    %3113 = vmatpush2.msra.mxu0 %v2963
    %3114 = vmatprep.subr.mxu0 0.0
    %3115 = vmatpush2.msra.mxu0 %v2962
    %3116 = vmatprep.subr.mxu0 0.0
    %3117 = vmatpush2.msra.mxu0 %v2961
    %3118 = vmatprep.subr.mxu0 0.0
    %3119 = vmatpush2.msra.mxu0 %v2960
    %3120 = vmatprep.subr.mxu0 0.0
    %3121 = vmatpush2.msra.mxu0 %v2959
    %3122 = vmatprep.subr.mxu0 0.0
    %3123 = vmatpush2.msra.mxu0 %v2958
    %3124 = vmatprep.subr.mxu0 0.0
    %3125 = vmatpush2.msra.mxu0 %v2957
    %3126 = vmatprep.subr.mxu0 0.0
    %3127 = vmatpush2.msra.mxu0 %v2956
    %3128 = vmatprep.subr.mxu0 0.0
    %3129 = vmatpush2.msra.mxu0 %v2955
    %3130 = vmatprep.subr.mxu0 0.0
    %3131 = vmatpush2.msra.mxu0 %v2954
    %3132 = vmatprep.subr.mxu0 0.0
    %3133 = vmatpush2.msra.mxu0 %v2953
    %3134 = vmatprep.subr.mxu0 0.0
    %3135 = vmatpush2.msra.mxu0 %v2952
    %3136 = vmatprep.subr.mxu0 0.0
    %3137 = vmatpush2.msra.mxu0 %v2951
    %3138 = vmatprep.subr.mxu0 0.0
    %3139 = vmatpush2.msra.mxu0 %v2950
    %3140 = vmatprep.subr.mxu0 0.0
    %3141 = vmatpush2.msra.mxu0 %v2949
    %3142 = vmatprep.mubr.f32.mxu0 %v2871
    %3143 = vmatmul.mubr.f32.gmra.mxu0 %v2870
    %v3144 = vpop.f32.mrf.mxu0
    %v3145 = vadd.f32 %v3040, %v3144
    %v3146 = vpop.f32.mrf.mxu0
    %3147 = vmatprep.mubr.f32.mxu0 %v2875
    %3148 = vmatmul.mubr.f32.gmra.mxu0 %v2874
    %v3149 = vpop.f32.mrf.mxu0
    %v3150 = vadd.f32 %v3045, %v3149
    %v3151 = vpop.f32.mrf.mxu0
    %3152 = vmatprep.mubr.f32.mxu0 %v2879
    %3153 = vmatmul.mubr.f32.gmra.mxu0 %v2878
    %v3154 = vpop.f32.mrf.mxu0
    %v3155 = vadd.f32 %v3050, %v3154
    %v3156 = vpop.f32.mrf.mxu0
    %3157 = vmatprep.mubr.f32.mxu0 %v2883
    %3158 = vmatmul.mubr.f32.gmra.mxu0 %v2882
    %v3159 = vpop.f32.mrf.mxu0
    %v3160 = vadd.f32 %v3055, %v3159
    %v3161 = vpop.f32.mrf.mxu0
    %3162 = vmatprep.mubr.f32.mxu0 %v2887
    %3163 = vmatmul.mubr.f32.gmra.mxu0 %v2886
    %v3164 = vpop.f32.mrf.mxu0
    %v3165 = vadd.f32 %v3060, %v3164
    %v3166 = vpop.f32.mrf.mxu0
    %3167 = vmatprep.mubr.f32.mxu0 %v2891
    %3168 = vmatmul.mubr.f32.gmra.mxu0 %v2890
    %v3169 = vpop.f32.mrf.mxu0
    %v3170 = vadd.f32 %v3065, %v3169
    %v3171 = vpop.f32.mrf.mxu0
    %3172 = vmatprep.mubr.f32.mxu0 %v2895
    %3173 = vmatmul.mubr.f32.gmra.mxu0 %v2894
    %v3174 = vpop.f32.mrf.mxu0
    %v3175 = vadd.f32 %v3070, %v3174
    %v3176 = vpop.f32.mrf.mxu0
    %3177 = vmatprep.mubr.f32.mxu0 %v2899
    %3178 = vmatmul.mubr.f32.gmra.mxu0 %v2898
    %v3179 = vpop.f32.mrf.mxu0
    %v3180 = vadd.f32 %v3075, %v3179
    %v3181 = vpop.f32.mrf.mxu0
    %3182 = vdwg.mxu0
    %v3183 = vadd.f32 %v2546, %v3145
    %v3184 = vadd.f32 %v2547, %v3150
    %v3185 = vadd.f32 %v2548, %v3155
    %v3186 = vadd.f32 %v2549, %v3160
    %v3187 = vadd.f32 %v2550, %v3165
    %v3188 = vadd.f32 %v2551, %v3170
    %v3189 = vadd.f32 %v2552, %v3175
    %v3190 = vadd.f32 %v2553, %v3180
    %s3191 = scalar_lea.vmem %s11, 2
    %v3192 = vld [vmem:[%s3191] sm:$0x1]
    %s3193 = scalar_lea.vmem %s12, 2
    %v3194 = vld [vmem:[%s3193] sm:$0x1]
    %3195 = vadd.xlane.f32.xlu0 %v3183
    %v3196 = vpop.xlane.xlu0 %3195
    %3197 = vadd.xlane.f32.xlu0 %v3184
    %v3198 = vpop.xlane.xlu0 %3197
    %3199 = vadd.xlane.f32.xlu0 %v3185
    %v3200 = vpop.xlane.xlu0 %3199
    %3201 = vadd.xlane.f32.xlu0 %v3186
    %v3202 = vpop.xlane.xlu0 %3201
    %3203 = vadd.xlane.f32.xlu0 %v3187
    %v3204 = vpop.xlane.xlu0 %3203
    %3205 = vadd.xlane.f32.xlu0 %v3188
    %v3206 = vpop.xlane.xlu0 %3205
    %3207 = vadd.xlane.f32.xlu0 %v3189
    %v3208 = vpop.xlane.xlu0 %3207
    %3209 = vadd.xlane.f32.xlu0 %v3190
    %v3210 = vpop.xlane.xlu0 %3209
    %v3211 = vmul.f32 %v3196, %v429
    %v3212 = vmul.f32 %v3198, %v429
    %v3213 = vmul.f32 %v3200, %v429
    %v3214 = vmul.f32 %v3202, %v429
    %v3215 = vmul.f32 %v3204, %v429
    %v3216 = vmul.f32 %v3206, %v429
    %v3217 = vmul.f32 %v3208, %v429
    %v3218 = vmul.f32 %v3210, %v429
    %v3219 = vsub.f32 %v3183, %v3211
    %v3220 = vsub.f32 %v3184, %v3212
    %v3221 = vsub.f32 %v3185, %v3213
    %v3222 = vsub.f32 %v3186, %v3214
    %v3223 = vsub.f32 %v3187, %v3215
    %v3224 = vsub.f32 %v3188, %v3216
    %v3225 = vsub.f32 %v3189, %v3217
    %v3226 = vsub.f32 %v3190, %v3218
    %v3227 = vmul.f32 %v3219, %v3219
    %v3228 = vmul.f32 %v3220, %v3220
    %v3229 = vmul.f32 %v3221, %v3221
    %v3230 = vmul.f32 %v3222, %v3222
    %v3231 = vmul.f32 %v3223, %v3223
    %v3232 = vmul.f32 %v3224, %v3224
    %v3233 = vmul.f32 %v3225, %v3225
    %v3234 = vmul.f32 %v3226, %v3226
    %3235 = vadd.xlane.f32.xlu0 %v3227
    %v3236 = vpop.xlane.xlu0 %3235
    %3237 = vadd.xlane.f32.xlu0 %v3228
    %v3238 = vpop.xlane.xlu0 %3237
    %3239 = vadd.xlane.f32.xlu0 %v3229
    %v3240 = vpop.xlane.xlu0 %3239
    %3241 = vadd.xlane.f32.xlu0 %v3230
    %v3242 = vpop.xlane.xlu0 %3241
    %3243 = vadd.xlane.f32.xlu0 %v3231
    %v3244 = vpop.xlane.xlu0 %3243
    %3245 = vadd.xlane.f32.xlu0 %v3232
    %v3246 = vpop.xlane.xlu0 %3245
    %3247 = vadd.xlane.f32.xlu0 %v3233
    %v3248 = vpop.xlane.xlu0 %3247
    %3249 = vadd.xlane.f32.xlu0 %v3234
    %v3250 = vpop.xlane.xlu0 %3249
    %v3251 = vmul.f32 %v3236, %v429
    %v3252 = vmul.f32 %v3238, %v429
    %v3253 = vmul.f32 %v3240, %v429
    %v3254 = vmul.f32 %v3242, %v429
    %v3255 = vmul.f32 %v3244, %v429
    %v3256 = vmul.f32 %v3246, %v429
    %v3257 = vmul.f32 %v3248, %v429
    %v3258 = vmul.f32 %v3250, %v429
    %v3259 = vadd.f32 %v3251, 1e-05
    %v3260 = vadd.f32 %v3252, 1e-05
    %v3261 = vadd.f32 %v3253, 1e-05
    %v3262 = vadd.f32 %v3254, 1e-05
    %v3263 = vadd.f32 %v3255, 1e-05
    %v3264 = vadd.f32 %v3256, 1e-05
    %v3265 = vadd.f32 %v3257, 1e-05
    %v3266 = vadd.f32 %v3258, 1e-05
    %v3267 = vrsqrt.pop %v3259
    %v3268 = vrsqrt.pop %v3260
    %v3269 = vrsqrt.pop %v3261
    %v3270 = vrsqrt.pop %v3262
    %v3271 = vrsqrt.pop %v3263
    %v3272 = vrsqrt.pop %v3264
    %v3273 = vrsqrt.pop %v3265
    %v3274 = vrsqrt.pop %v3266
    %v3275 = vmul.f32 %v3219, %v3267
    %v3276 = vmul.f32 %v3220, %v3268
    %v3277 = vmul.f32 %v3221, %v3269
    %v3278 = vmul.f32 %v3222, %v3270
    %v3279 = vmul.f32 %v3223, %v3271
    %v3280 = vmul.f32 %v3224, %v3272
    %v3281 = vmul.f32 %v3225, %v3273
    %v3282 = vmul.f32 %v3226, %v3274
    %v3284 = vlaneseq
    %v3285 = vshrl.u32 %v3284, 7
    %v3286 = vsub.s32 0, %v3285
    %v3287 = vrot.slane %v3192, %v3286
    %v3289 = vmul.f32 %v3275, %v3287
    %v3290 = vmul.f32 %v3276, %v3287
    %v3291 = vmul.f32 %v3277, %v3287
    %v3292 = vmul.f32 %v3278, %v3287
    %v3293 = vmul.f32 %v3279, %v3287
    %v3294 = vmul.f32 %v3280, %v3287
    %v3295 = vmul.f32 %v3281, %v3287
    %v3296 = vmul.f32 %v3282, %v3287
    %v3298 = vlaneseq
    %v3299 = vshrl.u32 %v3298, 7
    %v3300 = vsub.s32 0, %v3299
    %v3301 = vrot.slane %v3194, %v3300
    %v3303 = vadd.f32 %v3289, %v3301
    %v3304 = vadd.f32 %v3290, %v3301
    %v3305 = vadd.f32 %v3291, %v3301
    %v3306 = vadd.f32 %v3292, %v3301
    %v3307 = vadd.f32 %v3293, %v3301
    %v3308 = vadd.f32 %v3294, %v3301
    %v3309 = vadd.f32 %v3295, %v3301
    %v3310 = vadd.f32 %v3296, %v3301
    %v3311 = vld [vmem:[#allocation8] sm:$0xff]
    %v3312 = vld [vmem:[#allocation8 + $0x8] sm:$0xff]
    %v3313 = vld [vmem:[#allocation8 + $0x10] sm:$0xff]
    %v3314 = vld [vmem:[#allocation8 + $0x18] sm:$0xff]
    %v3315 = vld [vmem:[#allocation8 + $0x20] sm:$0xff]
    %v3316 = vld [vmem:[#allocation8 + $0x28] sm:$0xff]
    %v3317 = vld [vmem:[#allocation8 + $0x30] sm:$0xff]
    %v3318 = vld [vmem:[#allocation8 + $0x38] sm:$0xff]
    %v3319 = vld [vmem:[#allocation8 + $0x40] sm:$0xff]
    %v3320 = vld [vmem:[#allocation8 + $0x48] sm:$0xff]
    %v3321 = vld [vmem:[#allocation8 + $0x50] sm:$0xff]
    %v3322 = vld [vmem:[#allocation8 + $0x58] sm:$0xff]
    %v3323 = vld [vmem:[#allocation8 + $0x60] sm:$0xff]
    %v3324 = vld [vmem:[#allocation8 + $0x68] sm:$0xff]
    %v3325 = vld [vmem:[#allocation8 + $0x70] sm:$0xff]
    %v3326 = vld [vmem:[#allocation8 + $0x78] sm:$0xff]
    %v3327 = vld [vmem:[%s14] sm:$0x1]
    %v3329 = vlaneseq
    %v3330 = vshrl.u32 %v3329, 7
    %v3331 = vsub.s32 0, %v3330
    %v3332 = vrot.slane %v3327, %v3331
    %3334 = vmatprep.subr.mxu0 0.0
    %3335 = vmatpush1.msra.mxu0 %v3326
    %3336 = vmatprep.subr.mxu0 0.0
    %3337 = vmatpush1.msra.mxu0 %v3325
    %3338 = vmatprep.subr.mxu0 0.0
    %3339 = vmatpush1.msra.mxu0 %v3324
    %3340 = vmatprep.subr.mxu0 0.0
    %3341 = vmatpush1.msra.mxu0 %v3323
    %3342 = vmatprep.subr.mxu0 0.0
    %3343 = vmatpush1.msra.mxu0 %v3322
    %3344 = vmatprep.subr.mxu0 0.0
    %3345 = vmatpush1.msra.mxu0 %v3321
    %3346 = vmatprep.subr.mxu0 0.0
    %3347 = vmatpush1.msra.mxu0 %v3320
    %3348 = vmatprep.subr.mxu0 0.0
    %3349 = vmatpush1.msra.mxu0 %v3319
    %3350 = vmatprep.subr.mxu0 0.0
    %3351 = vmatpush1.msra.mxu0 %v3318
    %3352 = vmatprep.subr.mxu0 0.0
    %3353 = vmatpush1.msra.mxu0 %v3317
    %3354 = vmatprep.subr.mxu0 0.0
    %3355 = vmatpush1.msra.mxu0 %v3316
    %3356 = vmatprep.subr.mxu0 0.0
    %3357 = vmatpush1.msra.mxu0 %v3315
    %3358 = vmatprep.subr.mxu0 0.0
    %3359 = vmatpush1.msra.mxu0 %v3314
    %3360 = vmatprep.subr.mxu0 0.0
    %3361 = vmatpush1.msra.mxu0 %v3313
    %3362 = vmatprep.subr.mxu0 0.0
    %3363 = vmatpush1.msra.mxu0 %v3312
    %3364 = vmatprep.subr.mxu0 0.0
    %3365 = vmatpush1.msra.mxu0 %v3311
    %3366 = vmatprep.subr.mxu0 0.0
    %3367 = vmatpush2.msra.mxu0 0.0
    %3368 = vmatprep.subr.mxu0 0.0
    %3369 = vmatpush2.msra.mxu0 0.0
    %3370 = vmatprep.subr.mxu0 0.0
    %3371 = vmatpush2.msra.mxu0 0.0
    %3372 = vmatprep.subr.mxu0 0.0
    %3373 = vmatpush2.msra.mxu0 0.0
    %3374 = vmatprep.subr.mxu0 0.0
    %3375 = vmatpush2.msra.mxu0 0.0
    %3376 = vmatprep.subr.mxu0 0.0
    %3377 = vmatpush2.msra.mxu0 0.0
    %3378 = vmatprep.subr.mxu0 0.0
    %3379 = vmatpush2.msra.mxu0 0.0
    %3380 = vmatprep.subr.mxu0 0.0
    %3381 = vmatpush2.msra.mxu0 0.0
    %3382 = vmatprep.subr.mxu0 0.0
    %3383 = vmatpush2.msra.mxu0 0.0
    %3384 = vmatprep.subr.mxu0 0.0
    %3385 = vmatpush2.msra.mxu0 0.0
    %3386 = vmatprep.subr.mxu0 0.0
    %3387 = vmatpush2.msra.mxu0 0.0
    %3388 = vmatprep.subr.mxu0 0.0
    %3389 = vmatpush2.msra.mxu0 0.0
    %3390 = vmatprep.subr.mxu0 0.0
    %3391 = vmatpush2.msra.mxu0 0.0
    %3392 = vmatprep.subr.mxu0 0.0
    %3393 = vmatpush2.msra.mxu0 0.0
    %3394 = vmatprep.subr.mxu0 0.0
    %3395 = vmatpush2.msra.mxu0 0.0
    %3396 = vmatprep.subr.mxu0 0.0
    %3397 = vmatpush2.msra.mxu0 0.0
    %3398 = vmatprep.mubr.f32.mxu0 0.0
    %3399 = vmatmul.mubr.f32.gmra.mxu0 %v3303
    %v3400 = vpop.f32.mrf.mxu0
    %v3401 = vadd.f32 %v3332, %v3400
    %v3402 = vpop.f32.mrf.mxu0
    %3403 = vmatprep.mubr.f32.mxu0 0.0
    %3404 = vmatmul.mubr.f32.gmra.mxu0 %v3304
    %v3405 = vpop.f32.mrf.mxu0
    %v3406 = vadd.f32 %v3332, %v3405
    %v3407 = vpop.f32.mrf.mxu0
    %3408 = vmatprep.mubr.f32.mxu0 0.0
    %3409 = vmatmul.mubr.f32.gmra.mxu0 %v3305
    %v3410 = vpop.f32.mrf.mxu0
    %v3411 = vadd.f32 %v3332, %v3410
    %v3412 = vpop.f32.mrf.mxu0
    %3413 = vmatprep.mubr.f32.mxu0 0.0
    %3414 = vmatmul.mubr.f32.gmra.mxu0 %v3306
    %v3415 = vpop.f32.mrf.mxu0
    %v3416 = vadd.f32 %v3332, %v3415
    %v3417 = vpop.f32.mrf.mxu0
    %3418 = vmatprep.mubr.f32.mxu0 0.0
    %3419 = vmatmul.mubr.f32.gmra.mxu0 %v3307
    %v3420 = vpop.f32.mrf.mxu0
    %v3421 = vadd.f32 %v3332, %v3420
    %v3422 = vpop.f32.mrf.mxu0
    %3423 = vmatprep.mubr.f32.mxu0 0.0
    %3424 = vmatmul.mubr.f32.gmra.mxu0 %v3308
    %v3425 = vpop.f32.mrf.mxu0
    %v3426 = vadd.f32 %v3332, %v3425
    %v3427 = vpop.f32.mrf.mxu0
    %3428 = vmatprep.mubr.f32.mxu0 0.0
    %3429 = vmatmul.mubr.f32.gmra.mxu0 %v3309
    %v3430 = vpop.f32.mrf.mxu0
    %v3431 = vadd.f32 %v3332, %v3430
    %v3432 = vpop.f32.mrf.mxu0
    %3433 = vmatprep.mubr.f32.mxu0 0.0
    %3434 = vmatmul.mubr.f32.gmra.mxu0 %v3310
    %v3435 = vpop.f32.mrf.mxu0
    %v3436 = vadd.f32 %v3332, %v3435
    %v3437 = vpop.f32.mrf.mxu0
    %3438 = vdwg.mxu0
    %v3439 = vmax.f32 %v3401, 0.0
    %v3440 = vmax.f32 %v3406, 0.0
    %v3441 = vmax.f32 %v3411, 0.0
    %v3442 = vmax.f32 %v3416, 0.0
    %v3443 = vmax.f32 %v3421, 0.0
    %v3444 = vmax.f32 %v3426, 0.0
    %v3445 = vmax.f32 %v3431, 0.0
    %v3446 = vmax.f32 %v3436, 0.0
    %v3447 = vld [vmem:[#allocation10] sm:$0xff]
    %v3448 = vld [vmem:[#allocation10 + $0x8] sm:$0xff]
    %v3449 = vld [vmem:[#allocation10 + $0x10] sm:$0xff]
    %v3450 = vld [vmem:[#allocation10 + $0x18] sm:$0xff]
    %v3451 = vld [vmem:[#allocation10 + $0x20] sm:$0xff]
    %v3452 = vld [vmem:[#allocation10 + $0x28] sm:$0xff]
    %v3453 = vld [vmem:[#allocation10 + $0x30] sm:$0xff]
    %v3454 = vld [vmem:[#allocation10 + $0x38] sm:$0xff]
    %v3455 = vld [vmem:[#allocation10 + $0x40] sm:$0xff]
    %v3456 = vld [vmem:[#allocation10 + $0x48] sm:$0xff]
    %v3457 = vld [vmem:[#allocation10 + $0x50] sm:$0xff]
    %v3458 = vld [vmem:[#allocation10 + $0x58] sm:$0xff]
    %v3459 = vld [vmem:[#allocation10 + $0x60] sm:$0xff]
    %v3460 = vld [vmem:[#allocation10 + $0x68] sm:$0xff]
    %v3461 = vld [vmem:[#allocation10 + $0x70] sm:$0xff]
    %v3462 = vld [vmem:[#allocation10 + $0x78] sm:$0xff]
    %v3463 = vld [vmem:[%s16] sm:$0x1]
    %v3465 = vlaneseq
    %v3466 = vshrl.u32 %v3465, 7
    %v3467 = vsub.s32 0, %v3466
    %v3468 = vrot.slane %v3463, %v3467
    %3470 = vmatprep.subr.mxu0 0.0
    %3471 = vmatpush1.msra.mxu0 %v3462
    %3472 = vmatprep.subr.mxu0 0.0
    %3473 = vmatpush1.msra.mxu0 %v3461
    %3474 = vmatprep.subr.mxu0 0.0
    %3475 = vmatpush1.msra.mxu0 %v3460
    %3476 = vmatprep.subr.mxu0 0.0
    %3477 = vmatpush1.msra.mxu0 %v3459
    %3478 = vmatprep.subr.mxu0 0.0
    %3479 = vmatpush1.msra.mxu0 %v3458
    %3480 = vmatprep.subr.mxu0 0.0
    %3481 = vmatpush1.msra.mxu0 %v3457
    %3482 = vmatprep.subr.mxu0 0.0
    %3483 = vmatpush1.msra.mxu0 %v3456
    %3484 = vmatprep.subr.mxu0 0.0
    %3485 = vmatpush1.msra.mxu0 %v3455
    %3486 = vmatprep.subr.mxu0 0.0
    %3487 = vmatpush1.msra.mxu0 %v3454
    %3488 = vmatprep.subr.mxu0 0.0
    %3489 = vmatpush1.msra.mxu0 %v3453
    %3490 = vmatprep.subr.mxu0 0.0
    %3491 = vmatpush1.msra.mxu0 %v3452
    %3492 = vmatprep.subr.mxu0 0.0
    %3493 = vmatpush1.msra.mxu0 %v3451
    %3494 = vmatprep.subr.mxu0 0.0
    %3495 = vmatpush1.msra.mxu0 %v3450
    %3496 = vmatprep.subr.mxu0 0.0
    %3497 = vmatpush1.msra.mxu0 %v3449
    %3498 = vmatprep.subr.mxu0 0.0
    %3499 = vmatpush1.msra.mxu0 %v3448
    %3500 = vmatprep.subr.mxu0 0.0
    %3501 = vmatpush1.msra.mxu0 %v3447
    %3502 = vmatprep.subr.mxu0 0.0
    %3503 = vmatpush2.msra.mxu0 0.0
    %3504 = vmatprep.subr.mxu0 0.0
    %3505 = vmatpush2.msra.mxu0 0.0
    %3506 = vmatprep.subr.mxu0 0.0
    %3507 = vmatpush2.msra.mxu0 0.0
    %3508 = vmatprep.subr.mxu0 0.0
    %3509 = vmatpush2.msra.mxu0 0.0
    %3510 = vmatprep.subr.mxu0 0.0
    %3511 = vmatpush2.msra.mxu0 0.0
    %3512 = vmatprep.subr.mxu0 0.0
    %3513 = vmatpush2.msra.mxu0 0.0
    %3514 = vmatprep.subr.mxu0 0.0
    %3515 = vmatpush2.msra.mxu0 0.0
    %3516 = vmatprep.subr.mxu0 0.0
    %3517 = vmatpush2.msra.mxu0 0.0
    %3518 = vmatprep.subr.mxu0 0.0
    %3519 = vmatpush2.msra.mxu0 0.0
    %3520 = vmatprep.subr.mxu0 0.0
    %3521 = vmatpush2.msra.mxu0 0.0
    %3522 = vmatprep.subr.mxu0 0.0
    %3523 = vmatpush2.msra.mxu0 0.0
    %3524 = vmatprep.subr.mxu0 0.0
    %3525 = vmatpush2.msra.mxu0 0.0
    %3526 = vmatprep.subr.mxu0 0.0
    %3527 = vmatpush2.msra.mxu0 0.0
    %3528 = vmatprep.subr.mxu0 0.0
    %3529 = vmatpush2.msra.mxu0 0.0
    %3530 = vmatprep.subr.mxu0 0.0
    %3531 = vmatpush2.msra.mxu0 0.0
    %3532 = vmatprep.subr.mxu0 0.0
    %3533 = vmatpush2.msra.mxu0 0.0
    %3534 = vmatprep.mubr.f32.mxu0 0.0
    %3535 = vmatmul.mubr.f32.gmra.mxu0 %v3439
    %v3536 = vpop.f32.mrf.mxu0
    %v3537 = vadd.f32 %v3468, %v3536
    %v3538 = vpop.f32.mrf.mxu0
    %3539 = vmatprep.mubr.f32.mxu0 0.0
    %3540 = vmatmul.mubr.f32.gmra.mxu0 %v3440
    %v3541 = vpop.f32.mrf.mxu0
    %v3542 = vadd.f32 %v3468, %v3541
    %v3543 = vpop.f32.mrf.mxu0
    %3544 = vmatprep.mubr.f32.mxu0 0.0
    %3545 = vmatmul.mubr.f32.gmra.mxu0 %v3441
    %v3546 = vpop.f32.mrf.mxu0
    %v3547 = vadd.f32 %v3468, %v3546
    %v3548 = vpop.f32.mrf.mxu0
    %3549 = vmatprep.mubr.f32.mxu0 0.0
    %3550 = vmatmul.mubr.f32.gmra.mxu0 %v3442
    %v3551 = vpop.f32.mrf.mxu0
    %v3552 = vadd.f32 %v3468, %v3551
    %v3553 = vpop.f32.mrf.mxu0
    %3554 = vmatprep.mubr.f32.mxu0 0.0
    %3555 = vmatmul.mubr.f32.gmra.mxu0 %v3443
    %v3556 = vpop.f32.mrf.mxu0
    %v3557 = vadd.f32 %v3468, %v3556
    %v3558 = vpop.f32.mrf.mxu0
    %3559 = vmatprep.mubr.f32.mxu0 0.0
    %3560 = vmatmul.mubr.f32.gmra.mxu0 %v3444
    %v3561 = vpop.f32.mrf.mxu0
    %v3562 = vadd.f32 %v3468, %v3561
    %v3563 = vpop.f32.mrf.mxu0
    %3564 = vmatprep.mubr.f32.mxu0 0.0
    %3565 = vmatmul.mubr.f32.gmra.mxu0 %v3445
    %v3566 = vpop.f32.mrf.mxu0
    %v3567 = vadd.f32 %v3468, %v3566
    %v3568 = vpop.f32.mrf.mxu0
    %3569 = vmatprep.mubr.f32.mxu0 0.0
    %3570 = vmatmul.mubr.f32.gmra.mxu0 %v3446
    %v3571 = vpop.f32.mrf.mxu0
    %v3572 = vadd.f32 %v3468, %v3571
    %v3573 = vpop.f32.mrf.mxu0
    %3574 = vdwg.mxu0
    %3575 = vst [vmem:[#allocation11] sm:$0xff] %v3537
    %3576 = vst [vmem:[#allocation11 + $0x8] sm:$0xff] %v3542
    %3577 = vst [vmem:[#allocation11 + $0x10] sm:$0xff] %v3547
    %3578 = vst [vmem:[#allocation11 + $0x18] sm:$0xff] %v3552
    %3579 = vst [vmem:[#allocation11 + $0x20] sm:$0xff] %v3557
    %3580 = vst [vmem:[#allocation11 + $0x28] sm:$0xff] %v3562
    %3581 = vst [vmem:[#allocation11 + $0x30] sm:$0xff] %v3567
    %3582 = vst [vmem:[#allocation11 + $0x38] sm:$0xff] %v3572
    // Predicated region
    $region90: #{tpu_custom_call.1} parent=1 // pred_check
      _
    $region91: #{tpu_custom_call.1} parent=1 // pred_check_branch
      %3584 = sbr.rel (0) target = $region93
    $region92: #{tpu_custom_call.1} parent=1 // pred_region
      %s3586 = ssub.s32 1024, 1024
      %3587 = vsyncadd [#allocation4], %s3586
      %s3588 = sshll.u32 [#allocation11], 4
      %s3589 = int_to_ptr.vmem [resolvable:$true] %s3588
      %3594 = dma.vmem_to_hbm [thread:$0]  %s3589, 1024, %s17, [#allocation4], 128, 128, 8
    $region93: #{tpu_custom_call.1} parent=1 // pred_fallthru
      _
    // Predicated region
    $region94: #{tpu_custom_call.1} parent=1 // pred_check
      _
    $region95: #{tpu_custom_call.1} parent=1 // pred_check_branch
      %3596 = sbr.rel (0) target = $region97
    $region96: #{tpu_custom_call.1} parent=1 // pred_region
      %3597 = dma.done [#allocation4], 1024
    $region97: #{tpu_custom_call.1} parent=1 // pred_fallthru
      _
    %3598 = vsyncpa [#allocation3], 1
    %3599 = vsyncpa [#allocation6], 1
    %3600 = vsyncpa [#allocation9], 1
    %3601 = vsyncpa [#allocation4], 1

</llo_original>
